<compile_context>
chip_gen: v6e
topology: v6e:2x2x1
jax: 0.10.0
libtpu: 0.0.40
codegen_flags: <defaults>
</compile_context>

<pallas_src>
import functools
import math

import jax
import jax.numpy as jnp
from jax import lax
from jax.experimental import pallas as pl
from jax.experimental.pallas import tpu as pltpu

_ROW = 16                         # row (sublane) padding unit — bf16-tile safe
_LANE = 128                       # lane padding unit
_VMEM_LIMIT = 48 * 1024 * 1024    # fits v7x (64 MiB physical), raises v5e/v6e defaults


# ----------------------------------------------------------------------------
# padding / tiling helpers
# ----------------------------------------------------------------------------
def _pad_axis(x, axis, mult, value=0):
    pad = (-x.shape[axis]) % mult
    if pad == 0:
        return x
    widths = [(0, 0)] * x.ndim
    widths[axis] = (0, pad)
    return jnp.pad(x, widths, constant_values=value)


def _pick_tile(dim, unit, cap=512):
    """dim must already be a multiple of `unit` (callers pad).  Returns the
    largest divisor of dim that is a multiple of unit and <= cap.  Never falls
    back to the (possibly huge) full dim.
    TODO(synk): raise cap to 1024 on v6e (128 MiB VMEM) via pltpu.get_tpu_info."""
    hi = min(dim, cap) // unit * unit
    for t in range(hi, unit - 1, -unit):
        if dim % t == 0:
            return t
    return unit


# ----------------------------------------------------------------------------
# general tiled linear: y = x @ w + b (+ residual)   (M,N,K tiled, fp32 acc)
# ----------------------------------------------------------------------------
def _matmul_bias_kernel(x_ref, w_ref, b_ref, o_ref, acc_ref):
    k = pl.program_id(2)

    @pl.when(k == 0)
    def _():
        acc_ref[...] = jnp.zeros_like(acc_ref)

    acc_ref[...] += jnp.dot(x_ref[...].astype(jnp.bfloat16), w_ref[...],
                            preferred_element_type=jnp.float32)

    @pl.when(k == pl.num_programs(2) - 1)
    def _():
        o_ref[...] = (acc_ref[...] + b_ref[...]).astype(o_ref.dtype)


def _matmul_bias_res_kernel(x_ref, w_ref, b_ref, r_ref, o_ref, acc_ref):
    k = pl.program_id(2)

    @pl.when(k == 0)
    def _():
        acc_ref[...] = jnp.zeros_like(acc_ref)

    acc_ref[...] += jnp.dot(x_ref[...].astype(jnp.bfloat16), w_ref[...],
                            preferred_element_type=jnp.float32)

    @pl.when(k == pl.num_programs(2) - 1)
    def _():
        o_ref[...] = (acc_ref[...] + b_ref[...]
                      + r_ref[...].astype(jnp.float32)).astype(o_ref.dtype)


def pallas_linear(x, w, b, *, residual=None, out_dtype=jnp.float32):
    """x: (M,K) float, w: (K,N) bf16, b: (N,) f32 -> (M,N) out_dtype."""
    M, K = x.shape
    N = w.shape[1]
    xp = _pad_axis(_pad_axis(x, 0, _ROW), 1, _LANE)
    wp = _pad_axis(_pad_axis(w.astype(jnp.bfloat16), 0, _LANE), 1, _LANE)
    bp = _pad_axis(b.reshape(1, N).astype(jnp.float32), 1, _LANE)
    Mp, Kp = xp.shape
    Np = wp.shape[1]
    tm = _pick_tile(Mp, _ROW)
    tn = _pick_tile(Np, _LANE)
    tk = _pick_tile(Kp, _LANE)
    grid = (Mp // tm, Np // tn, Kp // tk)

    in_specs = [
        pl.BlockSpec((tm, tk), lambda i, j, k: (i, k)),
        pl.BlockSpec((tk, tn), lambda i, j, k: (k, j)),
        pl.BlockSpec((1, tn), lambda i, j, k: (0, j)),
    ]
    args = [xp, wp, bp]
    kernel = _matmul_bias_kernel
    if residual is not None:
        rp = _pad_axis(_pad_axis(residual.astype(jnp.float32), 0, _ROW), 1, _LANE)
        in_specs.append(pl.BlockSpec((tm, tn), lambda i, j, k: (i, j)))
        args.append(rp)
        kernel = _matmul_bias_res_kernel

    out = pl.pallas_call(
        kernel,
        out_shape=jax.ShapeDtypeStruct((Mp, Np), out_dtype),
        grid=grid,
        in_specs=in_specs,
        out_specs=pl.BlockSpec((tm, tn), lambda i, j, k: (i, j)),
        scratch_shapes=[pltpu.VMEM((tm, tn), jnp.float32)],
        compiler_params=pltpu.CompilerParams(
            dimension_semantics=("parallel", "parallel", "arbitrary"),
            vmem_limit_bytes=_VMEM_LIMIT),
    )(*args)
    return out[:M, :N]


# ----------------------------------------------------------------------------
# Global/LocalEmbedding stand-in: L2norm(relu(x@w1+b1)@w2+b2)
# TODO(synk): BatchNorm -> identity.
# ----------------------------------------------------------------------------
def _mlp_norm_kernel(x_ref, w1_ref, b1_ref, w2_ref, b2_ref, o_ref):
    h = jnp.dot(x_ref[...].astype(jnp.bfloat16), w1_ref[...],
                preferred_element_type=jnp.float32) + b1_ref[...]
    h = jnp.maximum(h, 0.0)
    y = jnp.dot(h.astype(jnp.bfloat16), w2_ref[...],
                preferred_element_type=jnp.float32) + b2_ref[...]
    # F.normalize(..., dim=-1): y / max(||y||, 1e-12) == y * rsqrt(max(ss, 1e-24))
    ss = jnp.sum(y * y, axis=-1, keepdims=True)
    o_ref[...] = y * lax.rsqrt(jnp.maximum(ss, 1e-24))


def pallas_mlp_norm(x, w1, b1, w2, b2):
    M, Din = x.shape
    H = w1.shape[1]
    Dout = w2.shape[1]
    xp = _pad_axis(_pad_axis(x, 0, _ROW), 1, _LANE)
    w1p = _pad_axis(_pad_axis(w1.astype(jnp.bfloat16), 0, _LANE), 1, _LANE)
    b1p = _pad_axis(b1.reshape(1, H).astype(jnp.float32), 1, _LANE)
    w2p = _pad_axis(_pad_axis(w2.astype(jnp.bfloat16), 0, _LANE), 1, _LANE)
    b2p = _pad_axis(b2.reshape(1, Dout).astype(jnp.float32), 1, _LANE)
    Mp, Dinp = xp.shape
    Hp = w1p.shape[1]
    Doutp = w2p.shape[1]
    # tm <= 256: resident w1/w2 + (tm,H) fp32 intermediate must fit v7x VMEM.
    tm = _pick_tile(Mp, _ROW, cap=256)
    grid = (Mp // tm,)
    out = pl.pallas_call(
        _mlp_norm_kernel,
        out_shape=jax.ShapeDtypeStruct((Mp, Doutp), jnp.float32),
        grid=grid,
        in_specs=[
            pl.BlockSpec((tm, Dinp), lambda i: (i, 0)),
            # TODO(synk): constant-index weight blocks could be single-buffered
            # (pipeline_mode=pl.Buffered(1)) to halve their VMEM footprint.
            pl.BlockSpec((Dinp, Hp), lambda i: (0, 0)),
            pl.BlockSpec((1, Hp), lambda i: (0, 0)),
            pl.BlockSpec((Hp, Doutp), lambda i: (0, 0)),
            pl.BlockSpec((1, Doutp), lambda i: (0, 0)),
        ],
        out_specs=pl.BlockSpec((tm, Doutp), lambda i: (i, 0)),
        compiler_params=pltpu.CompilerParams(
            dimension_semantics=("parallel",),
            vmem_limit_bytes=_VMEM_LIMIT),
    )(xp, w1p, b1p, w2p, b2p)
    return out[:M, :Dout]


# ----------------------------------------------------------------------------
# Knowledge-source 'mean' fusion with the enc_proj matmul hoisted:
#   feats = ((sum_k m_k*E_k) @ W + b * msum) / (msum + 1e-9)
# (exactly equals sum_k((E_k@W + b) * m_k) / (msum + 1e-9) since m_k is scalar/row)
# ----------------------------------------------------------------------------
def _sk_fuse_kernel(se_ref, m_ref, w_ref, b_ref, o_ref):
    t = jnp.dot(se_ref[...].astype(jnp.bfloat16), w_ref[...],
                preferred_element_type=jnp.float32)
    m = m_ref[...]
    o_ref[...] = (t + b_ref[...] * m) / (m + 1e-9)


def pallas_sk_fuse(sum_emb, mask_sum, w, b):
    """sum_emb: (M, Dt) f32, mask_sum: (M, 1) f32, w: (Dt, Dt) bf16 -> (M, Dt) f32."""
    M, Dt = sum_emb.shape
    xp = _pad_axis(_pad_axis(sum_emb, 0, _ROW), 1, _LANE)
    mp = _pad_axis(mask_sum.astype(jnp.float32), 0, _ROW)
    wp = _pad_axis(_pad_axis(w.astype(jnp.bfloat16), 0, _LANE), 1, _LANE)
    bp = _pad_axis(b.reshape(1, Dt).astype(jnp.float32), 1, _LANE)
    Mp, Dtin = xp.shape
    Dtp = wp.shape[1]
    tm = _pick_tile(Mp, _ROW)
    grid = (Mp // tm,)
    out = pl.pallas_call(
        _sk_fuse_kernel,
        out_shape=jax.ShapeDtypeStruct((Mp, Dtp), jnp.float32),
        grid=grid,
        in_specs=[
            pl.BlockSpec((tm, Dtin), lambda i: (i, 0)),
            pl.BlockSpec((tm, 1), lambda i: (i, 0)),
            pl.BlockSpec((Dtin, Dtp), lambda i: (0, 0)),
            pl.BlockSpec((1, Dtp), lambda i: (0, 0)),
        ],
        out_specs=pl.BlockSpec((tm, Dtp), lambda i: (i, 0)),
        compiler_params=pltpu.CompilerParams(
            dimension_semantics=("parallel",),
            vmem_limit_bytes=_VMEM_LIMIT),
    )(xp, mp, wp, bp)
    return out[:M, :Dt]


# ----------------------------------------------------------------------------
# Fused K / V projections: one (M,D)x(D,2N) MXU dot, bf16 outputs.
# ----------------------------------------------------------------------------
def _kv_proj_kernel(x_ref, w_ref, b_ref, k_ref, v_ref):
    kv = jnp.dot(x_ref[...].astype(jnp.bfloat16), w_ref[...],
                 preferred_element_type=jnp.float32) + b_ref[...]
    n = k_ref.shape[-1]
    k_ref[...] = kv[:, :n].astype(k_ref.dtype)
    v_ref[...] = kv[:, n:].astype(v_ref.dtype)


def pallas_kv_proj(x, wk, bk, wv, bv):
    M, D = x.shape
    N = wk.shape[1]
    xp = _pad_axis(_pad_axis(x, 0, _ROW), 1, _LANE)
    Mp, Dp = xp.shape

    def _prep_w(w):
        return _pad_axis(_pad_axis(w.astype(jnp.bfloat16), 0, _LANE), 1, _LANE)

    wkp, wvp = _prep_w(wk), _prep_w(wv)
    Np = wkp.shape[1]
    wp = jnp.concatenate([wkp, wvp], axis=1)                     # (Dp, 2*Np)
    bp = jnp.concatenate(
        [_pad_axis(bk.reshape(1, N).astype(jnp.float32), 1, _LANE),
         _pad_axis(bv.reshape(1, N).astype(jnp.float32), 1, _LANE)], axis=1)
    tm = _pick_tile(Mp, _ROW)
    grid = (Mp // tm,)
    k_out, v_out = pl.pallas_call(
        _kv_proj_kernel,
        out_shape=(jax.ShapeDtypeStruct((Mp, Np), jnp.bfloat16),
                   jax.ShapeDtypeStruct((Mp, Np), jnp.bfloat16)),
        grid=grid,
        in_specs=[
            pl.BlockSpec((tm, Dp), lambda i: (i, 0)),
            pl.BlockSpec((Dp, 2 * Np), lambda i: (0, 0)),
            pl.BlockSpec((1, 2 * Np), lambda i: (0, 0)),
        ],
        out_specs=(pl.BlockSpec((tm, Np), lambda i: (i, 0)),
                   pl.BlockSpec((tm, Np), lambda i: (i, 0))),
        compiler_params=pltpu.CompilerParams(
            dimension_semantics=("parallel",),
            vmem_limit_bytes=_VMEM_LIMIT),
    )(xp, wp, bp)
    return k_out[:M, :N], v_out[:M, :N]


# ----------------------------------------------------------------------------
# Cross-attention over encoder_hidden_states (mask pre-folded into an additive
# bias in glue; K/V fed in bf16; bf16 output).
# ----------------------------------------------------------------------------
def _cross_attn_kernel(q_ref, k_ref, v_ref, bias_ref, o_ref, *, scale):
    q = q_ref[0].astype(jnp.bfloat16)          # (tt, D)
    k = k_ref[0]                               # (S, D) bf16
    v = v_ref[0]                               # (S, D) bf16
    s = lax.dot_general(q, k, (((1,), (1,)), ((), ())),
                        preferred_element_type=jnp.float32) * scale
    s = s + bias_ref[0]                        # additive encoder_attention_mask bias
    s = s - jnp.max(s, axis=-1, keepdims=True)
    p = jnp.exp(s)
    # approx reciprocal: ~1e-3 rel deviation from exact softmax (documented).
    p = p * pl.reciprocal(jnp.sum(p, axis=-1, keepdims=True), approx=True)
    o_ref[0] = jnp.dot(p.astype(jnp.bfloat16), v,
                       preferred_element_type=jnp.float32).astype(o_ref.dtype)


def pallas_cross_attention(q, k, v, attn_bias, *, scale):
    """q: (B,T,D), k/v: (B,S,D) bf16, attn_bias: (B,1,S) f32 -> (B,T,D) bf16."""
    B, T, D = q.shape
    S = k.shape[1]
    qp = _pad_axis(q, 1, _ROW)
    Tp = qp.shape[1]
    tt = _pick_tile(Tp, _ROW, cap=256)
    grid = (B, Tp // tt)
    out = pl.pallas_call(
        functools.partial(_cross_attn_kernel, scale=scale),
        out_shape=jax.ShapeDtypeStruct((B, Tp, D), jnp.bfloat16),
        grid=grid,
        in_specs=[
            pl.BlockSpec((1, tt, D), lambda b, t: (b, t, 0)),
            pl.BlockSpec((1, S, D), lambda b, t: (b, 0, 0)),
            pl.BlockSpec((1, S, D), lambda b, t: (b, 0, 0)),
            pl.BlockSpec((1, 1, S), lambda b, t: (b, 0, 0)),
        ],
        out_specs=pl.BlockSpec((1, tt, D), lambda b, t: (b, t, 0)),
        compiler_params=pltpu.CompilerParams(
            dimension_semantics=("parallel", "parallel"),
            vmem_limit_bytes=_VMEM_LIMIT),
    )(qp, k, v, attn_bias)
    return out[:, :T, :]


# ----------------------------------------------------------------------------
# Fused LM head + shifted masked cross-entropy (online softmax over vocab
# tiles; logits never written to HBM).  Row-tile axis is 'parallel' (v7x
# megacore); per-row masked NLL is emitted and reduced in glue.
# ----------------------------------------------------------------------------
def _lm_head_loss_kernel(h_ref, w_ref, b_ref, lab_ref, mask_ref, nll_ref,
                         m_sc, l_sc, tgt_sc):
    j = pl.program_id(1)
    nj = pl.num_programs(1)

    @pl.when(j == 0)
    def _():
        m_sc[...] = jnp.full_like(m_sc, -jnp.inf)
        l_sc[...] = jnp.zeros_like(l_sc)
        tgt_sc[...] = jnp.zeros_like(tgt_sc)

    logits = jnp.dot(h_ref[...], w_ref[...],
                     preferred_element_type=jnp.float32) + b_ref[...]   # (tm, tv)

    m_new = jnp.maximum(m_sc[...], jnp.max(logits, axis=-1, keepdims=True))
    l_sc[...] = (l_sc[...] * jnp.exp(m_sc[...] - m_new)
                 + jnp.sum(jnp.exp(logits - m_new), axis=-1, keepdims=True))
    m_sc[...] = m_new

    tv = logits.shape[-1]
    col = lax.broadcasted_iota(jnp.int32, logits.shape, 1) + j * tv
    tgt_sc[...] += jnp.sum(jnp.where(col == lab_ref[...], logits, 0.0),
                           axis=-1, keepdims=True)

    @pl.when(j == nj - 1)
    def _():
        nll_ref[...] = (m_sc[...] + jnp.log(l_sc[...]) - tgt_sc[...]) * mask_ref[...]


def pallas_lm_head_loss(h, w, b, labels, mask):
    """h: (M,D) bf16, w: (D,V) bf16, b: (V,) f32, labels: (M,) i32, mask: (M,) f32.
    Returns per-row masked NLL (M,) f32 (reduce + divide in glue)."""
    M, D = h.shape
    V = w.shape[1]
    hp = _pad_axis(_pad_axis(h, 0, _ROW), 1, _LANE)
    wp = _pad_axis(_pad_axis(w.astype(jnp.bfloat16), 0, _LANE), 1, _LANE)
    # padded vocab columns get a -1e30 bias -> exp underflows to 0, never a target
    bp = _pad_axis(b.reshape(1, V).astype(jnp.float32), 1, _LANE, value=-1e30)
    labp = _pad_axis(labels.reshape(M, 1).astype(jnp.int32), 0, _ROW)
    maskp = _pad_axis(mask.reshape(M, 1).astype(jnp.float32), 0, _ROW)
    Mp, Dp = hp.shape
    Vp = wp.shape[1]
    tm = _pick_tile(Mp, _ROW)
    tv = _pick_tile(Vp, _LANE)    # TODO(synk): per-chip tuning (1024 on v6e, Buffered(3) on v5e)
    grid = (Mp // tm, Vp // tv)   # vocab (reduction) axis innermost
    nll = pl.pallas_call(
        _lm_head_loss_kernel,
        out_shape=jax.ShapeDtypeStruct((Mp, 1), jnp.float32),
        grid=grid,
        in_specs=[
            pl.BlockSpec((tm, Dp), lambda i, j: (i, 0)),
            pl.BlockSpec((Dp, tv), lambda i, j: (0, j)),
            pl.BlockSpec((1, tv), lambda i, j: (0, j)),
            pl.BlockSpec((tm, 1), lambda i, j: (i, 0)),
            pl.BlockSpec((tm, 1), lambda i, j: (i, 0)),
        ],
        out_specs=pl.BlockSpec((tm, 1), lambda i, j: (i, 0)),
        scratch_shapes=[
            pltpu.VMEM((tm, 1), jnp.float32),   # running max
            pltpu.VMEM((tm, 1), jnp.float32),   # running sumexp
            pltpu.VMEM((tm, 1), jnp.float32),   # target logit
        ],
        compiler_params=pltpu.CompilerParams(
            dimension_semantics=("parallel", "arbitrary"),
            vmem_limit_bytes=_VMEM_LIMIT),
    )(hp, wp, bp, labp, maskp)
    return nll[:M, 0]


# ----------------------------------------------------------------------------
# Parameter construction (deterministic, synthetic; matmul weights in bf16)
# ----------------------------------------------------------------------------
def _dense(key, din, dout, scale=0.02):
    kw, _ = jax.random.split(key)
    w = (jax.random.normal(kw, (din, dout), jnp.float32) * scale).astype(jnp.bfloat16)
    return w, jnp.zeros((dout,), jnp.float32)


def _embed_head(key, din, hid, dout):
    k1, k2 = jax.random.split(key)
    w1, b1 = _dense(k1, din, hid)
    w2, b2 = _dense(k2, hid, dout)
    return dict(w1=w1, b1=b1, w2=w2, b2=b2)


def make_params(key, *, patch_dim, visual_dim, text_dim, output_dim, vocab):
    ks = jax.random.split(key, 16)
    p = {}
    p["patch_embed"] = _dense(ks[0], patch_dim, visual_dim)
    p["visual_local"] = _embed_head(ks[1], visual_dim, visual_dim, output_dim)
    p["visual_global"] = _embed_head(ks[2], visual_dim, visual_dim, output_dim)
    p["text_local"] = _embed_head(ks[3], text_dim, text_dim, output_dim)
    p["text_global"] = _embed_head(ks[4], text_dim, text_dim, output_dim)
    p["tok_emb"] = jax.random.normal(ks[5], (vocab, text_dim), jnp.float32) * 0.02
    p["enc_proj"] = _dense(ks[6], text_dim, text_dim)
    p["mod_type_emb"] = jax.random.normal(ks[7], (2, output_dim), jnp.float32) * 0.02
    p["dec_tok_emb"] = jax.random.normal(ks[8], (vocab, output_dim), jnp.float32) * 0.02
    p["wq"] = _dense(ks[9], output_dim, output_dim)
    p["wk"] = _dense(ks[10], output_dim, output_dim)
    p["wv"] = _dense(ks[11], output_dim, output_dim)
    p["wo"] = _dense(ks[12], output_dim, output_dim)
    p["lm_head"] = _dense(ks[13], output_dim, vocab)
    return p


# ----------------------------------------------------------------------------
# FineTune.forward (mode='train', data_name='mimic_cxr',
#                   text_decoder='bert', sk_fusion_strategy='mean')
# ----------------------------------------------------------------------------
def finetune_forward(params, images, report_ids, report_masks, sk_ids, sk_masks,
                     *, patch=4):
    B, C, H, W = images.shape
    Dv = params["patch_embed"][0].shape[1]
    Do = params["visual_local"]["w2"].shape[1]
    Dt = params["tok_emb"].shape[1]

    # ----- visual_forward_mimic_cxr (synthetic extractor) -----
    # TODO(synk): ResNet101 / ViT-B-32 backbone not replicated.
    hp, wp = H // patch, W // patch
    patches = images.reshape(B, C, hp, patch, wp, patch)
    patches = jnp.transpose(patches, (0, 2, 4, 1, 3, 5)).reshape(B, hp * wp, C * patch * patch)
    Np, Pd = patches.shape[1], patches.shape[2]
    att_feats = pallas_linear(patches.reshape(B * Np, Pd), *params["patch_embed"],
                              out_dtype=jnp.bfloat16).reshape(B, Np, Dv)
    fc_feats = jnp.mean(att_feats.astype(jnp.float32), axis=1)        # (B, Dv)

    # ----- local / global visual projections + L2 normalize -----
    vl = params["visual_local"]
    v_att = pallas_mlp_norm(att_feats.reshape(B * Np, Dv),
                            vl["w1"], vl["b1"], vl["w2"], vl["b2"]).reshape(B, Np, Do)
    vg = params["visual_global"]
    v_fc = pallas_mlp_norm(fc_feats, vg["w1"], vg["b1"], vg["w2"], vg["b2"])   # (B, Do)

    visual_feats = jnp.concatenate([v_fc[:, None, :], v_att], axis=1)          # (B, 1+Np, Do)
    encoder_attention_mask = jnp.ones((B, 1 + Np), jnp.int32)
    encoder_hidden_states = visual_feats + params["mod_type_emb"][0][None, None, :]

    # ----- region-knowledge 'mean' fusion (enc_proj hoisted out of the K loop) -----
    # TODO(synk): replace the XLA embedding gather with a scalar-prefetch row
    # gather feeding the fusion kernel directly.
    S = sk_ids[0].shape[1]
    ids_all = jnp.stack(sk_ids, axis=0)                                # (K, B, S)
    masks_all = jnp.stack(sk_masks, axis=0).astype(jnp.float32)        # (K, B, S)
    emb_all = params["tok_emb"][ids_all]                               # (K, B, S, Dt)
    sum_emb = jnp.sum(emb_all * masks_all[..., None], axis=0)          # (B, S, Dt)
    msum = jnp.sum(masks_all, axis=0)                                  # (B, S)
    feats = pallas_sk_fuse(sum_emb.reshape(B * S, Dt), msum.reshape(B * S, 1),
                           *params["enc_proj"])                        # (B*S, Dt)
    text_feats = feats.reshape(B, S, Dt)
    text_masks = jnp.where(msum != 0, 1, 0).astype(jnp.int32)          # (B, S)

    tl = params["text_local"]
    t_att = pallas_mlp_norm(text_feats[:, 1:, :].reshape(B * (S - 1), Dt),
                            tl["w1"], tl["b1"], tl["w2"], tl["b2"]).reshape(B, S - 1, Do)
    tg = params["text_global"]
    t_fc = pallas_mlp_norm(text_feats[:, 0, :], tg["w1"], tg["b1"], tg["w2"], tg["b2"])
    text_out = jnp.concatenate([t_fc[:, None, :], t_att], axis=1)      # (B, S, Do)
    text_out = text_out + params["mod_type_emb"][1][None, None, :]

    encoder_hidden_states = jnp.concatenate([encoder_hidden_states, text_out], axis=1)
    encoder_attention_mask = jnp.concatenate([encoder_attention_mask, text_masks], axis=1)

    # pad encoder sequence to a sublane multiple; padded keys are masked out.
    encoder_hidden_states = _pad_axis(encoder_hidden_states, 1, _ROW)
    encoder_attention_mask = _pad_axis(encoder_attention_mask, 1, _ROW)
    Se = encoder_hidden_states.shape[1]

    # ----- text_decoder_forward_bert (mode='train'), synthetic cross-attn block -----
    # TODO(synk): full BERT decoder stack / r2gen / cmn decoders not replicated.
    T = report_ids.shape[1]
    x = params["dec_tok_emb"][report_ids]                              # (B, T, Do) f32
    q = pallas_linear(x.reshape(B * T, Do), *params["wq"],
                      out_dtype=jnp.bfloat16).reshape(B, T, Do)
    k_proj, v_proj = pallas_kv_proj(encoder_hidden_states.reshape(B * Se, Do),
                                    params["wk"][0], params["wk"][1],
                                    params["wv"][0], params["wv"][1])
    attn_bias = (encoder_attention_mask.astype(jnp.float32) - 1.0)[:, None, :] * 1e9
    attn = pallas_cross_attention(q, k_proj.reshape(B, Se, Do),
                                  v_proj.reshape(B, Se, Do), attn_bias,
                                  scale=1.0 / math.sqrt(Do))           # (B, T, Do) bf16
    # output projection with the residual add fused into the matmul epilogue
    h = pallas_linear(attn.reshape(B * T, Do), *params["wo"],
                      residual=x.reshape(B * T, Do),
                      out_dtype=jnp.float32).reshape(B, T, Do)

    # ----- fused LM head + shifted, mask-weighted cross-entropy -----
    h_shift = h[:, :-1, :].reshape(B * (T - 1), Do).astype(jnp.bfloat16)
    shift_labels = report_ids[:, 1:].reshape(B * (T - 1)).astype(jnp.int32)
    shift_mask = report_masks[:, 1:].reshape(B * (T - 1)).astype(jnp.float32)
    nll = pallas_lm_head_loss(h_shift, params["lm_head"][0], params["lm_head"][1],
                              shift_labels, shift_mask)                # (M,) masked NLL
    lm_loss = jnp.sum(nll) / (jnp.sum(shift_mask) + 1e-9)

    return {"lm": lm_loss, "all_loss": lm_loss}


# ----------------------------------------------------------------------------
# Demo
# ----------------------------------------------------------------------------
if __name__ == "__main__":
    key = jax.random.PRNGKey(0)
    B, C, Hs, Ws = 2, 3, 16, 16
    patch = 4
    visual_dim = 128    # stand-in for 2048 / 768 (kept lane-dense: multiple of 128)
    text_dim = 128
    output_dim = 128
    vocab = 256
    S_sk = 8            # knowledge sequence length
    T_rep = 9           # report sequence length
    num_sk = 2

    k_params, k_img, k_rep, k_sk0, k_sk1 = jax.random.split(key, 5)
    params = make_params(k_params, patch_dim=C * patch * patch, visual_dim=visual_dim,
                         text_dim=text_dim, output_dim=output_dim, vocab=vocab)

    images = jax.random.normal(k_img, (B, C, Hs, Ws), jnp.float32)     # NCHW, like PyTorch
    report_ids = jax.random.randint(k_rep, (B, T_rep), 1, vocab, dtype=jnp.int32)
    report_masks = jnp.ones((B, T_rep), jnp.int32)

    sk_ids = [
        jax.random.randint(k_sk0, (B, S_sk), 1, vocab, dtype=jnp.int32),
        jax.random.randint(k_sk1, (B, S_sk), 1, vocab, dtype=jnp.int32),
    ]
    base_mask = (jnp.arange(S_sk)[None, :] < jnp.array([[S_sk], [S_sk - 2]])).astype(jnp.int32)
    sk_masks = [jnp.ones((B, S_sk), jnp.int32), base_mask]

    fwd = jax.jit(functools.partial(finetune_forward, patch=patch))
    out = fwd(params, images, report_ids, report_masks, sk_ids, sk_masks)
    jax.block_until_ready(out["all_loss"])
    assert out["lm"].shape == () and bool(jnp.isfinite(out["lm"]))
    print("KERNEL_OK")
</pallas_src>

<mosaic_0001>
module attributes {stable_mosaic.version = 11 : i64} {
  func.func @_sk_fuse_kernel(%arg0: i32, %arg1: memref<16x128xf32, #tpu.memory_space<vmem>>, %arg2: memref<16x1xf32, #tpu.memory_space<vmem>>, %arg3: memref<128x128xbf16, #tpu.memory_space<vmem>>, %arg4: memref<1x128xf32, #tpu.memory_space<vmem>>, %arg5: memref<16x128xf32, #tpu.memory_space<vmem>>) attributes {dimension_semantics = [#tpu.dimension_semantics<parallel>], iteration_bounds = array<i64: 1>, scalar_prefetch = 0 : i64, scratch_operands = 0 : i64, tpu.core_type = #tpu.core_type<tc>, window_params = [{transform_indices = @transform_0, window_bounds = array<i64: 16, 128>}, {transform_indices = @transform_1, window_bounds = array<i64: 16, 1>}, {pipeline_mode = #tpu.pipeline_mode<synchronous>, transform_indices = @transform_2, window_bounds = array<i64: 128, 128>}, {pipeline_mode = #tpu.pipeline_mode<synchronous>, transform_indices = @transform_3, window_bounds = array<i64: 1, 128>}, {transform_indices = @transform_4, window_bounds = array<i64: 16, 128>}]} {
    %c0 = arith.constant 0 : index
    %c0_0 = arith.constant 0 : index
    %0 = vector.load %arg1[%c0, %c0_0] : memref<16x128xf32, #tpu.memory_space<vmem>>, vector<16x128xf32>
    %1 = arith.truncf %0 : vector<16x128xf32> to vector<16x128xbf16>
    %c0_1 = arith.constant 0 : index
    %c0_2 = arith.constant 0 : index
    %2 = vector.load %arg3[%c0_1, %c0_2] : memref<128x128xbf16, #tpu.memory_space<vmem>>, vector<128x128xbf16>
    %cst = arith.constant dense<0.000000e+00> : vector<16x128xf32>
    %3 = tpu.matmul %1, %2, %cst {dimension_numbers = #tpu.dot_dimension_numbers<[1], [0], [0], [1], [0, 0, 1, 1], [], []>} : vector<16x128xbf16>, vector<128x128xbf16>, vector<16x128xf32> -> vector<16x128xf32>
    %c0_3 = arith.constant 0 : index
    %c0_4 = arith.constant 0 : index
    %4 = vector.load %arg2[%c0_3, %c0_4] : memref<16x1xf32, #tpu.memory_space<vmem>>, vector<16x1xf32>
    %c0_5 = arith.constant 0 : index
    %c0_6 = arith.constant 0 : index
    %5 = vector.load %arg4[%c0_5, %c0_6] : memref<1x128xf32, #tpu.memory_space<vmem>>, vector<1x128xf32>
    %6 = vector.broadcast %5 : vector<1x128xf32> to vector<16x128xf32>
    %7 = vector.broadcast %4 : vector<16x1xf32> to vector<16x128xf32>
    %8 = arith.mulf %6, %7 : vector<16x128xf32>
    %9 = arith.addf %3, %8 : vector<16x128xf32>
    %cst_7 = arith.constant 9.99999971E-10 : f32
    %10 = vector.broadcast %cst_7 : f32 to vector<16x1xf32>
    %11 = arith.addf %4, %10 : vector<16x1xf32>
    %12 = vector.broadcast %11 : vector<16x1xf32> to vector<16x128xf32>
    %13 = arith.divf %9, %12 : vector<16x128xf32>
    %c0_8 = arith.constant 0 : index
    %c0_9 = arith.constant 0 : index
    %14 = vector.load %arg5[%c0_8, %c0_9] : memref<16x128xf32, #tpu.memory_space<vmem>>, vector<16x128xf32>
    tpu.vector_store %arg5[%c0_8, %c0_9], %13 {strides = array<i32>} : memref<16x128xf32, #tpu.memory_space<vmem>>, vector<16x128xf32>,
    return
  }
  func.func @transform_0(%arg0: i32) -> (i32, i32) {
    %c0_i32 = arith.constant 0 : i32
    %c0_i32_0 = arith.constant 0 : i32
    return %arg0, %c0_i32 : i32, i32
  }
  func.func @transform_1(%arg0: i32) -> (i32, i32) {
    %c0_i32 = arith.constant 0 : i32
    %c0_i32_0 = arith.constant 0 : i32
    return %arg0, %c0_i32 : i32, i32
  }
  func.func @transform_2(%arg0: i32) -> (i32, i32) {
    %c0_i32 = arith.constant 0 : i32
    %c0_i32_0 = arith.constant 0 : i32
    %c0_i32_1 = arith.constant 0 : i32
    return %c0_i32, %c0_i32_0 : i32, i32
  }
  func.func @transform_3(%arg0: i32) -> (i32, i32) {
    %c0_i32 = arith.constant 0 : i32
    %c0_i32_0 = arith.constant 0 : i32
    %c0_i32_1 = arith.constant 0 : i32
    return %c0_i32, %c0_i32_0 : i32, i32
  }
  func.func @transform_4(%arg0: i32) -> (i32, i32) {
    %c0_i32 = arith.constant 0 : i32
    %c0_i32_0 = arith.constant 0 : i32
    return %arg0, %c0_i32 : i32, i32
  }
}

module attributes {stable_mosaic.version = 11 : i64} {
  func.func @_mlp_norm_kernel(%arg0: i32, %arg1: memref<16x128xf32, #tpu.memory_space<vmem>>, %arg2: memref<128x128xbf16, #tpu.memory_space<vmem>>, %arg3: memref<1x128xf32, #tpu.memory_space<vmem>>, %arg4: memref<128x128xbf16, #tpu.memory_space<vmem>>, %arg5: memref<1x128xf32, #tpu.memory_space<vmem>>, %arg6: memref<16x128xf32, #tpu.memory_space<vmem>>) attributes {dimension_semantics = [#tpu.dimension_semantics<parallel>], iteration_bounds = array<i64: 1>, scalar_prefetch = 0 : i64, scratch_operands = 0 : i64, tpu.core_type = #tpu.core_type<tc>, window_params = [{transform_indices = @transform_0, window_bounds = array<i64: 16, 128>}, {pipeline_mode = #tpu.pipeline_mode<synchronous>, transform_indices = @transform_1, window_bounds = array<i64: 128, 128>}, {pipeline_mode = #tpu.pipeline_mode<synchronous>, transform_indices = @transform_2, window_bounds = array<i64: 1, 128>}, {pipeline_mode = #tpu.pipeline_mode<synchronous>, transform_indices = @transform_3, window_bounds = array<i64: 128, 128>}, {pipeline_mode = #tpu.pipeline_mode<synchronous>, transform_indices = @transform_4, window_bounds = array<i64: 1, 128>}, {transform_indices = @transform_5, window_bounds = array<i64: 16, 128>}]} {
    %c0 = arith.constant 0 : index
    %c0_0 = arith.constant 0 : index
    %0 = vector.load %arg1[%c0, %c0_0] : memref<16x128xf32, #tpu.memory_space<vmem>>, vector<16x128xf32>
    %1 = arith.truncf %0 : vector<16x128xf32> to vector<16x128xbf16>
    %c0_1 = arith.constant 0 : index
    %c0_2 = arith.constant 0 : index
    %2 = vector.load %arg2[%c0_1, %c0_2] : memref<128x128xbf16, #tpu.memory_space<vmem>>, vector<128x128xbf16>
    %cst = arith.constant dense<0.000000e+00> : vector<16x128xf32>
    %3 = tpu.matmul %1, %2, %cst {dimension_numbers = #tpu.dot_dimension_numbers<[1], [0], [0], [1], [0, 0, 1, 1], [], []>} : vector<16x128xbf16>, vector<128x128xbf16>, vector<16x128xf32> -> vector<16x128xf32>
    %c0_3 = arith.constant 0 : index
    %c0_4 = arith.constant 0 : index
    %4 = vector.load %arg3[%c0_3, %c0_4] : memref<1x128xf32, #tpu.memory_space<vmem>>, vector<1x128xf32>
    %5 = vector.broadcast %4 : vector<1x128xf32> to vector<16x128xf32>
    %6 = arith.addf %3, %5 : vector<16x128xf32>
    %cst_5 = arith.constant 0.000000e+00 : f32
    %7 = vector.broadcast %cst_5 : f32 to vector<16x128xf32>
    %8 = arith.maximumf %6, %7 : vector<16x128xf32>
    %9 = arith.truncf %8 : vector<16x128xf32> to vector<16x128xbf16>
    %c0_6 = arith.constant 0 : index
    %c0_7 = arith.constant 0 : index
    %10 = vector.load %arg4[%c0_6, %c0_7] : memref<128x128xbf16, #tpu.memory_space<vmem>>, vector<128x128xbf16>
    %cst_8 = arith.constant dense<0.000000e+00> : vector<16x128xf32>
    %11 = tpu.matmul %9, %10, %cst_8 {dimension_numbers = #tpu.dot_dimension_numbers<[1], [0], [0], [1], [0, 0, 1, 1], [], []>} : vector<16x128xbf16>, vector<128x128xbf16>, vector<16x128xf32> -> vector<16x128xf32>
    %c0_9 = arith.constant 0 : index
    %c0_10 = arith.constant 0 : index
    %12 = vector.load %arg5[%c0_9, %c0_10] : memref<1x128xf32, #tpu.memory_space<vmem>>, vector<1x128xf32>
    %13 = vector.broadcast %12 : vector<1x128xf32> to vector<16x128xf32>
    %14 = arith.addf %11, %13 : vector<16x128xf32>
    %15 = arith.mulf %14, %14 : vector<16x128xf32>
    %cst_11 = arith.constant dense<0.000000e+00> : vector<16xf32>
    %16 = vector.multi_reduction <add>, %15, %cst_11 [1] : vector<16x128xf32> to vector<16xf32>
    %17 = vector.shape_cast %16 : vector<16xf32> to vector<16x1xf32>
    %cst_12 = arith.constant 1.000000e-24 : f32
    %18 = vector.broadcast %cst_12 : f32 to vector<16x1xf32>
    %19 = arith.maximumf %17, %18 : vector<16x1xf32>
    %20 = math.rsqrt %19 : vector<16x1xf32>
    %21 = vector.broadcast %20 : vector<16x1xf32> to vector<16x128xf32>
    %22 = arith.mulf %14, %21 : vector<16x128xf32>
    %c0_13 = arith.constant 0 : index
    %c0_14 = arith.constant 0 : index
    %23 = vector.load %arg6[%c0_13, %c0_14] : memref<16x128xf32, #tpu.memory_space<vmem>>, vector<16x128xf32>
    tpu.vector_store %arg6[%c0_13, %c0_14], %22 {strides = array<i32>} : memref<16x128xf32, #tpu.memory_space<vmem>>, vector<16x128xf32>,
    return
  }
  func.func @transform_0(%arg0: i32) -> (i32, i32) {
    %c0_i32 = arith.constant 0 : i32
    %c0_i32_0 = arith.constant 0 : i32
    return %arg0, %c0_i32 : i32, i32
  }
  func.func @transform_1(%arg0: i32) -> (i32, i32) {
    %c0_i32 = arith.constant 0 : i32
    %c0_i32_0 = arith.constant 0 : i32
    %c0_i32_1 = arith.constant 0 : i32
    return %c0_i32, %c0_i32_0 : i32, i32
  }
  func.func @transform_2(%arg0: i32) -> (i32, i32) {
    %c0_i32 = arith.constant 0 : i32
    %c0_i32_0 = arith.constant 0 : i32
    %c0_i32_1 = arith.constant 0 : i32
    return %c0_i32, %c0_i32_0 : i32, i32
  }
  func.func @transform_3(%arg0: i32) -> (i32, i32) {
    %c0_i32 = arith.constant 0 : i32
    %c0_i32_0 = arith.constant 0 : i32
    %c0_i32_1 = arith.constant 0 : i32
    return %c0_i32, %c0_i32_0 : i32, i32
  }
  func.func @transform_4(%arg0: i32) -> (i32, i32) {
    %c0_i32 = arith.constant 0 : i32
    %c0_i32_0 = arith.constant 0 : i32
    %c0_i32_1 = arith.constant 0 : i32
    return %c0_i32, %c0_i32_0 : i32, i32
  }
  func.func @transform_5(%arg0: i32) -> (i32, i32) {
    %c0_i32 = arith.constant 0 : i32
    %c0_i32_0 = arith.constant 0 : i32
    return %arg0, %c0_i32 : i32, i32
  }
}

module attributes {stable_mosaic.version = 11 : i64} {
  func.func @_matmul_bias_kernel(%arg0: i32, %arg1: i32, %arg2: i32, %arg3: memref<32x128xf32, #tpu.memory_space<vmem>>, %arg4: memref<128x128xbf16, #tpu.memory_space<vmem>>, %arg5: memref<1x128xf32, #tpu.memory_space<vmem>>, %arg6: memref<32x128xbf16, #tpu.memory_space<vmem>>, %arg7: memref<32x128xf32, #tpu.memory_space<vmem>>) attributes {dimension_semantics = [#tpu.dimension_semantics<parallel>, #tpu.dimension_semantics<parallel>, #tpu.dimension_semantics<arbitrary>], iteration_bounds = array<i64: 1, 1, 1>, scalar_prefetch = 0 : i64, scratch_operands = 1 : i64, tpu.core_type = #tpu.core_type<tc>, window_params = [{transform_indices = @transform_0, window_bounds = array<i64: 32, 128>}, {transform_indices = @transform_1, window_bounds = array<i64: 128, 128>}, {transform_indices = @transform_2, window_bounds = array<i64: 1, 128>}, {transform_indices = @transform_3, window_bounds = array<i64: 32, 128>}]} {
    %c0_i32 = arith.constant 0 : i32
    %0 = arith.cmpi eq, %arg2, %c0_i32 : i32
    %1 = arith.extui %0 : i1 to i32
    %c0_i32_0 = arith.constant 0 : i32
    %2 = arith.cmpi ne, %1, %c0_i32_0 : i32
    scf.if %2 {
      %cst_10 = arith.constant 0.000000e+00 : f32
      %13 = vector.broadcast %cst_10 : f32 to vector<32x128xf32>
      %c0_11 = arith.constant 0 : index
      %c0_12 = arith.constant 0 : index
      %14 = vector.load %arg7[%c0_11, %c0_12] : memref<32x128xf32, #tpu.memory_space<vmem>>, vector<32x128xf32>
      tpu.vector_store %arg7[%c0_11, %c0_12], %13 {strides = array<i32>} : memref<32x128xf32, #tpu.memory_space<vmem>>, vector<32x128xf32>,
    } else {
    }
    %c0 = arith.constant 0 : index
    %c0_1 = arith.constant 0 : index
    %3 = vector.load %arg7[%c0, %c0_1] : memref<32x128xf32, #tpu.memory_space<vmem>>, vector<32x128xf32>
    %c0_2 = arith.constant 0 : index
    %c0_3 = arith.constant 0 : index
    %4 = vector.load %arg3[%c0_2, %c0_3] : memref<32x128xf32, #tpu.memory_space<vmem>>, vector<32x128xf32>
    %5 = arith.truncf %4 : vector<32x128xf32> to vector<32x128xbf16>
    %c0_4 = arith.constant 0 : index
    %c0_5 = arith.constant 0 : index
    %6 = vector.load %arg4[%c0_4, %c0_5] : memref<128x128xbf16, #tpu.memory_space<vmem>>, vector<128x128xbf16>
    %cst = arith.constant dense<0.000000e+00> : vector<32x128xf32>
    %7 = tpu.matmul %5, %6, %cst {dimension_numbers = #tpu.dot_dimension_numbers<[1], [0], [0], [1], [0, 0, 1, 1], [], []>} : vector<32x128xbf16>, vector<128x128xbf16>, vector<32x128xf32> -> vector<32x128xf32>
    %8 = arith.addf %3, %7 : vector<32x128xf32>
    %c0_6 = arith.constant 0 : index
    %c0_7 = arith.constant 0 : index
    %9 = vector.load %arg7[%c0_6, %c0_7] : memref<32x128xf32, #tpu.memory_space<vmem>>, vector<32x128xf32>
    tpu.vector_store %arg7[%c0_6, %c0_7], %8 {strides = array<i32>} : memref<32x128xf32, #tpu.memory_space<vmem>>, vector<32x128xf32>,
    %c0_i32_8 = arith.constant 0 : i32
    %10 = arith.cmpi eq, %arg2, %c0_i32_8 : i32
    %11 = arith.extui %10 : i1 to i32
    %c0_i32_9 = arith.constant 0 : i32
    %12 = arith.cmpi ne, %11, %c0_i32_9 : i32
    scf.if %12 {
      %c0_10 = arith.constant 0 : index
      %c0_11 = arith.constant 0 : index
      %13 = vector.load %arg7[%c0_10, %c0_11] : memref<32x128xf32, #tpu.memory_space<vmem>>, vector<32x128xf32>
      %c0_12 = arith.constant 0 : index
      %c0_13 = arith.constant 0 : index
      %14 = vector.load %arg5[%c0_12, %c0_13] : memref<1x128xf32, #tpu.memory_space<vmem>>, vector<1x128xf32>
      %15 = vector.broadcast %14 : vector<1x128xf32> to vector<32x128xf32>
      %16 = arith.addf %13, %15 : vector<32x128xf32>
      %17 = arith.truncf %16 : vector<32x128xf32> to vector<32x128xbf16>
      %c0_14 = arith.constant 0 : index
      %c0_15 = arith.constant 0 : index
      %18 = vector.load %arg6[%c0_14, %c0_15] : memref<32x128xbf16, #tpu.memory_space<vmem>>, vector<32x128xbf16>
      tpu.vector_store %arg6[%c0_14, %c0_15], %17 {strides = array<i32>} : memref<32x128xbf16, #tpu.memory_space<vmem>>, vector<32x128xbf16>,
    } else {
    }
    return
  }
  func.func @transform_0(%arg0: i32, %arg1: i32, %arg2: i32) -> (i32, i32) {
    %c0_i32 = arith.constant 0 : i32
    return %arg0, %arg2 : i32, i32
  }
  func.func @transform_1(%arg0: i32, %arg1: i32, %arg2: i32) -> (i32, i32) {
    %c0_i32 = arith.constant 0 : i32
    return %arg2, %arg1 : i32, i32
  }
  func.func @transform_2(%arg0: i32, %arg1: i32, %arg2: i32) -> (i32, i32) {
    %c0_i32 = arith.constant 0 : i32
    %c0_i32_0 = arith.constant 0 : i32
    return %c0_i32, %arg1 : i32, i32
  }
  func.func @transform_3(%arg0: i32, %arg1: i32, %arg2: i32) -> (i32, i32) {
    %c0_i32 = arith.constant 0 : i32
    return %arg0, %arg1 : i32, i32
  }
}

module attributes {stable_mosaic.version = 11 : i64} {
  func.func @_kv_proj_kernel(%arg0: i32, %arg1: memref<64x128xf32, #tpu.memory_space<vmem>>, %arg2: memref<128x256xbf16, #tpu.memory_space<vmem>>, %arg3: memref<1x256xf32, #tpu.memory_space<vmem>>, %arg4: memref<64x128xbf16, #tpu.memory_space<vmem>>, %arg5: memref<64x128xbf16, #tpu.memory_space<vmem>>) attributes {dimension_semantics = [#tpu.dimension_semantics<parallel>], iteration_bounds = array<i64: 1>, scalar_prefetch = 0 : i64, scratch_operands = 0 : i64, tpu.core_type = #tpu.core_type<tc>, window_params = [{transform_indices = @transform_0, window_bounds = array<i64: 64, 128>}, {pipeline_mode = #tpu.pipeline_mode<synchronous>, transform_indices = @transform_1, window_bounds = array<i64: 128, 256>}, {pipeline_mode = #tpu.pipeline_mode<synchronous>, transform_indices = @transform_2, window_bounds = array<i64: 1, 256>}, {transform_indices = @transform_3, window_bounds = array<i64: 64, 128>}, {transform_indices = @transform_4, window_bounds = array<i64: 64, 128>}]} {
    %c0 = arith.constant 0 : index
    %c0_0 = arith.constant 0 : index
    %0 = vector.load %arg1[%c0, %c0_0] : memref<64x128xf32, #tpu.memory_space<vmem>>, vector<64x128xf32>
    %1 = arith.truncf %0 : vector<64x128xf32> to vector<64x128xbf16>
    %c0_1 = arith.constant 0 : index
    %c0_2 = arith.constant 0 : index
    %2 = vector.load %arg2[%c0_1, %c0_2] : memref<128x256xbf16, #tpu.memory_space<vmem>>, vector<128x256xbf16>
    %cst = arith.constant dense<0.000000e+00> : vector<64x256xf32>
    %3 = tpu.matmul %1, %2, %cst {dimension_numbers = #tpu.dot_dimension_numbers<[1], [0], [0], [1], [0, 0, 1, 1], [], []>} : vector<64x128xbf16>, vector<128x256xbf16>, vector<64x256xf32> -> vector<64x256xf32>
    %c0_3 = arith.constant 0 : index
    %c0_4 = arith.constant 0 : index
    %4 = vector.load %arg3[%c0_3, %c0_4] : memref<1x256xf32, #tpu.memory_space<vmem>>, vector<1x256xf32>
    %5 = vector.broadcast %4 : vector<1x256xf32> to vector<64x256xf32>
    %6 = arith.addf %3, %5 : vector<64x256xf32>
    %7 = vector.extract_strided_slice %6 {offsets = [0, 0], sizes = [64, 128], strides = [1, 1]} : vector<64x256xf32> to vector<64x128xf32>
    %8 = arith.truncf %7 : vector<64x128xf32> to vector<64x128xbf16>
    %c0_5 = arith.constant 0 : index
    %c0_6 = arith.constant 0 : index
    %9 = vector.load %arg4[%c0_5, %c0_6] : memref<64x128xbf16, #tpu.memory_space<vmem>>, vector<64x128xbf16>
    tpu.vector_store %arg4[%c0_5, %c0_6], %8 {strides = array<i32>} : memref<64x128xbf16, #tpu.memory_space<vmem>>, vector<64x128xbf16>,
    %10 = vector.extract_strided_slice %6 {offsets = [0, 128], sizes = [64, 128], strides = [1, 1]} : vector<64x256xf32> to vector<64x128xf32>
    %11 = arith.truncf %10 : vector<64x128xf32> to vector<64x128xbf16>
    %c0_7 = arith.constant 0 : index
    %c0_8 = arith.constant 0 : index
    %12 = vector.load %arg5[%c0_7, %c0_8] : memref<64x128xbf16, #tpu.memory_space<vmem>>, vector<64x128xbf16>
    tpu.vector_store %arg5[%c0_7, %c0_8], %11 {strides = array<i32>} : memref<64x128xbf16, #tpu.memory_space<vmem>>, vector<64x128xbf16>,
    return
  }
  func.func @transform_0(%arg0: i32) -> (i32, i32) {
    %c0_i32 = arith.constant 0 : i32
    %c0_i32_0 = arith.constant 0 : i32
    return %arg0, %c0_i32 : i32, i32
  }
  func.func @transform_1(%arg0: i32) -> (i32, i32) {
    %c0_i32 = arith.constant 0 : i32
    %c0_i32_0 = arith.constant 0 : i32
    %c0_i32_1 = arith.constant 0 : i32
    return %c0_i32, %c0_i32_0 : i32, i32
  }
  func.func @transform_2(%arg0: i32) -> (i32, i32) {
    %c0_i32 = arith.constant 0 : i32
    %c0_i32_0 = arith.constant 0 : i32
    %c0_i32_1 = arith.constant 0 : i32
    return %c0_i32, %c0_i32_0 : i32, i32
  }
  func.func @transform_3(%arg0: i32) -> (i32, i32) {
    %c0_i32 = arith.constant 0 : i32
    %c0_i32_0 = arith.constant 0 : i32
    return %arg0, %c0_i32 : i32, i32
  }
  func.func @transform_4(%arg0: i32) -> (i32, i32) {
    %c0_i32 = arith.constant 0 : i32
    %c0_i32_0 = arith.constant 0 : i32
    return %arg0, %c0_i32 : i32, i32
  }
}

module attributes {stable_mosaic.version = 11 : i64} {
  func.func @_mlp_norm_kernel(%arg0: i32, %arg1: memref<32x128xbf16, #tpu.memory_space<vmem>>, %arg2: memref<128x128xbf16, #tpu.memory_space<vmem>>, %arg3: memref<1x128xf32, #tpu.memory_space<vmem>>, %arg4: memref<128x128xbf16, #tpu.memory_space<vmem>>, %arg5: memref<1x128xf32, #tpu.memory_space<vmem>>, %arg6: memref<32x128xf32, #tpu.memory_space<vmem>>) attributes {dimension_semantics = [#tpu.dimension_semantics<parallel>], iteration_bounds = array<i64: 1>, scalar_prefetch = 0 : i64, scratch_operands = 0 : i64, tpu.core_type = #tpu.core_type<tc>, window_params = [{transform_indices = @transform_0, window_bounds = array<i64: 32, 128>}, {pipeline_mode = #tpu.pipeline_mode<synchronous>, transform_indices = @transform_1, window_bounds = array<i64: 128, 128>}, {pipeline_mode = #tpu.pipeline_mode<synchronous>, transform_indices = @transform_2, window_bounds = array<i64: 1, 128>}, {pipeline_mode = #tpu.pipeline_mode<synchronous>, transform_indices = @transform_3, window_bounds = array<i64: 128, 128>}, {pipeline_mode = #tpu.pipeline_mode<synchronous>, transform_indices = @transform_4, window_bounds = array<i64: 1, 128>}, {transform_indices = @transform_5, window_bounds = array<i64: 32, 128>}]} {
    %c0 = arith.constant 0 : index
    %c0_0 = arith.constant 0 : index
    %0 = vector.load %arg1[%c0, %c0_0] : memref<32x128xbf16, #tpu.memory_space<vmem>>, vector<32x128xbf16>
    %c0_1 = arith.constant 0 : index
    %c0_2 = arith.constant 0 : index
    %1 = vector.load %arg2[%c0_1, %c0_2] : memref<128x128xbf16, #tpu.memory_space<vmem>>, vector<128x128xbf16>
    %cst = arith.constant dense<0.000000e+00> : vector<32x128xf32>
    %2 = tpu.matmul %0, %1, %cst {dimension_numbers = #tpu.dot_dimension_numbers<[1], [0], [0], [1], [0, 0, 1, 1], [], []>} : vector<32x128xbf16>, vector<128x128xbf16>, vector<32x128xf32> -> vector<32x128xf32>
    %c0_3 = arith.constant 0 : index
    %c0_4 = arith.constant 0 : index
    %3 = vector.load %arg3[%c0_3, %c0_4] : memref<1x128xf32, #tpu.memory_space<vmem>>, vector<1x128xf32>
    %4 = vector.broadcast %3 : vector<1x128xf32> to vector<32x128xf32>
    %5 = arith.addf %2, %4 : vector<32x128xf32>
    %cst_5 = arith.constant 0.000000e+00 : f32
    %6 = vector.broadcast %cst_5 : f32 to vector<32x128xf32>
    %7 = arith.maximumf %5, %6 : vector<32x128xf32>
    %8 = arith.truncf %7 : vector<32x128xf32> to vector<32x128xbf16>
    %c0_6 = arith.constant 0 : index
    %c0_7 = arith.constant 0 : index
    %9 = vector.load %arg4[%c0_6, %c0_7] : memref<128x128xbf16, #tpu.memory_space<vmem>>, vector<128x128xbf16>
    %cst_8 = arith.constant dense<0.000000e+00> : vector<32x128xf32>
    %10 = tpu.matmul %8, %9, %cst_8 {dimension_numbers = #tpu.dot_dimension_numbers<[1], [0], [0], [1], [0, 0, 1, 1], [], []>} : vector<32x128xbf16>, vector<128x128xbf16>, vector<32x128xf32> -> vector<32x128xf32>
    %c0_9 = arith.constant 0 : index
    %c0_10 = arith.constant 0 : index
    %11 = vector.load %arg5[%c0_9, %c0_10] : memref<1x128xf32, #tpu.memory_space<vmem>>, vector<1x128xf32>
    %12 = vector.broadcast %11 : vector<1x128xf32> to vector<32x128xf32>
    %13 = arith.addf %10, %12 : vector<32x128xf32>
    %14 = arith.mulf %13, %13 : vector<32x128xf32>
    %cst_11 = arith.constant dense<0.000000e+00> : vector<32xf32>
    %15 = vector.multi_reduction <add>, %14, %cst_11 [1] : vector<32x128xf32> to vector<32xf32>
    %16 = vector.shape_cast %15 : vector<32xf32> to vector<32x1xf32>
    %cst_12 = arith.constant 1.000000e-24 : f32
    %17 = vector.broadcast %cst_12 : f32 to vector<32x1xf32>
    %18 = arith.maximumf %16, %17 : vector<32x1xf32>
    %19 = math.rsqrt %18 : vector<32x1xf32>
    %20 = vector.broadcast %19 : vector<32x1xf32> to vector<32x128xf32>
    %21 = arith.mulf %13, %20 : vector<32x128xf32>
    %c0_13 = arith.constant 0 : index
    %c0_14 = arith.constant 0 : index
    %22 = vector.load %arg6[%c0_13, %c0_14] : memref<32x128xf32, #tpu.memory_space<vmem>>, vector<32x128xf32>
    tpu.vector_store %arg6[%c0_13, %c0_14], %21 {strides = array<i32>} : memref<32x128xf32, #tpu.memory_space<vmem>>, vector<32x128xf32>,
    return
  }
  func.func @transform_0(%arg0: i32) -> (i32, i32) {
    %c0_i32 = arith.constant 0 : i32
    %c0_i32_0 = arith.constant 0 : i32
    return %arg0, %c0_i32 : i32, i32
  }
  func.func @transform_1(%arg0: i32) -> (i32, i32) {
    %c0_i32 = arith.constant 0 : i32
    %c0_i32_0 = arith.constant 0 : i32
    %c0_i32_1 = arith.constant 0 : i32
    return %c0_i32, %c0_i32_0 : i32, i32
  }
  func.func @transform_2(%arg0: i32) -> (i32, i32) {
    %c0_i32 = arith.constant 0 : i32
    %c0_i32_0 = arith.constant 0 : i32
    %c0_i32_1 = arith.constant 0 : i32
    return %c0_i32, %c0_i32_0 : i32, i32
  }
  func.func @transform_3(%arg0: i32) -> (i32, i32) {
    %c0_i32 = arith.constant 0 : i32
    %c0_i32_0 = arith.constant 0 : i32
    %c0_i32_1 = arith.constant 0 : i32
    return %c0_i32, %c0_i32_0 : i32, i32
  }
  func.func @transform_4(%arg0: i32) -> (i32, i32) {
    %c0_i32 = arith.constant 0 : i32
    %c0_i32_0 = arith.constant 0 : i32
    %c0_i32_1 = arith.constant 0 : i32
    return %c0_i32, %c0_i32_0 : i32, i32
  }
  func.func @transform_5(%arg0: i32) -> (i32, i32) {
    %c0_i32 = arith.constant 0 : i32
    %c0_i32_0 = arith.constant 0 : i32
    return %arg0, %c0_i32 : i32, i32
  }
}

module attributes {stable_mosaic.version = 11 : i64} {
  func.func @_cross_attn_kernel(%arg0: i32, %arg1: i32, %arg2: memref<1x16x128xbf16, #tpu.memory_space<vmem>>, %arg3: memref<1x32x128xbf16, #tpu.memory_space<vmem>>, %arg4: memref<1x32x128xbf16, #tpu.memory_space<vmem>>, %arg5: memref<1x1x32xf32, #tpu.memory_space<vmem>>, %arg6: memref<1x16x128xbf16, #tpu.memory_space<vmem>>) attributes {dimension_semantics = [#tpu.dimension_semantics<parallel>, #tpu.dimension_semantics<parallel>], iteration_bounds = array<i64: 2, 1>, scalar_prefetch = 0 : i64, scratch_operands = 0 : i64, tpu.core_type = #tpu.core_type<tc>, window_params = [{transform_indices = @transform_0, window_bounds = array<i64: 1, 16, 128>}, {transform_indices = @transform_1, window_bounds = array<i64: 1, 32, 128>}, {transform_indices = @transform_2, window_bounds = array<i64: 1, 32, 128>}, {transform_indices = @transform_3, window_bounds = array<i64: 1, 1, 32>}, {transform_indices = @transform_4, window_bounds = array<i64: 1, 16, 128>}]} {
    %c0 = arith.constant 0 : index
    %c0_0 = arith.constant 0 : index
    %c0_1 = arith.constant 0 : index
    %0 = vector.load %arg2[%c0, %c0_0, %c0_1] : memref<1x16x128xbf16, #tpu.memory_space<vmem>>, vector<1x16x128xbf16>
    %1 = vector.shape_cast %0 : vector<1x16x128xbf16> to vector<16x128xbf16>
    %c0_2 = arith.constant 0 : index
    %c0_3 = arith.constant 0 : index
    %c0_4 = arith.constant 0 : index
    %2 = vector.load %arg3[%c0_2, %c0_3, %c0_4] : memref<1x32x128xbf16, #tpu.memory_space<vmem>>, vector<1x32x128xbf16>
    %3 = vector.shape_cast %2 : vector<1x32x128xbf16> to vector<32x128xbf16>
    %c0_5 = arith.constant 0 : index
    %c0_6 = arith.constant 0 : index
    %c0_7 = arith.constant 0 : index
    %4 = vector.load %arg4[%c0_5, %c0_6, %c0_7] : memref<1x32x128xbf16, #tpu.memory_space<vmem>>, vector<1x32x128xbf16>
    %5 = vector.shape_cast %4 : vector<1x32x128xbf16> to vector<32x128xbf16>
    %cst = arith.constant dense<0.000000e+00> : vector<16x32xf32>
    %6 = tpu.matmul %1, %3, %cst {dimension_numbers = #tpu.dot_dimension_numbers<[1], [1], [0], [0], [0, 0, 1, 0], [], []>} : vector<16x128xbf16>, vector<32x128xbf16>, vector<16x32xf32> -> vector<16x32xf32>
    %cst_8 = arith.constant 0.0883883461 : f32
    %7 = vector.broadcast %cst_8 : f32 to vector<16x32xf32>
    %8 = arith.mulf %6, %7 : vector<16x32xf32>
    %c0_9 = arith.constant 0 : index
    %c0_10 = arith.constant 0 : index
    %c0_11 = arith.constant 0 : index
    %9 = vector.load %arg5[%c0_9, %c0_10, %c0_11] : memref<1x1x32xf32, #tpu.memory_space<vmem>>, vector<1x1x32xf32>
    %10 = vector.shape_cast %9 : vector<1x1x32xf32> to vector<1x32xf32>
    %11 = vector.broadcast %10 : vector<1x32xf32> to vector<16x32xf32>
    %12 = arith.addf %8, %11 : vector<16x32xf32>
    %cst_12 = arith.constant dense<0xFF800000> : vector<16xf32>
    %13 = vector.multi_reduction <maximumf>, %12, %cst_12 [1] : vector<16x32xf32> to vector<16xf32>
    %14 = vector.shape_cast %13 : vector<16xf32> to vector<16x1xf32>
    %15 = vector.broadcast %14 : vector<16x1xf32> to vector<16x32xf32>
    %16 = arith.subf %12, %15 : vector<16x32xf32>
    %17 = math.exp %16 : vector<16x32xf32>
    %cst_13 = arith.constant dense<0.000000e+00> : vector<16xf32>
    %18 = vector.multi_reduction <add>, %17, %cst_13 [1] : vector<16x32xf32> to vector<16xf32>
    %19 = vector.shape_cast %18 : vector<16xf32> to vector<16x1xf32>
    %20 = tpu.reciprocal %19 {approx = true} : vector<16x1xf32> -> vector<16x1xf32>
    %21 = vector.broadcast %20 : vector<16x1xf32> to vector<16x32xf32>
    %22 = arith.mulf %17, %21 : vector<16x32xf32>
    %23 = arith.truncf %22 : vector<16x32xf32> to vector<16x32xbf16>
    %cst_14 = arith.constant dense<0.000000e+00> : vector<16x128xf32>
    %24 = tpu.matmul %23, %5, %cst_14 {dimension_numbers = #tpu.dot_dimension_numbers<[1], [0], [0], [1], [0, 0, 1, 1], [], []>} : vector<16x32xbf16>, vector<32x128xbf16>, vector<16x128xf32> -> vector<16x128xf32>
    %25 = arith.truncf %24 : vector<16x128xf32> to vector<16x128xbf16>
    %c0_15 = arith.constant 0 : index
    %c0_16 = arith.constant 0 : index
    %c0_17 = arith.constant 0 : index
    %26 = vector.load %arg6[%c0_15, %c0_16, %c0_17] : memref<1x16x128xbf16, #tpu.memory_space<vmem>>, vector<1x16x128xbf16>
    %27 = vector.shape_cast %26 : vector<1x16x128xbf16> to vector<16x128xbf16>
    %28 = vector.shape_cast %25 : vector<16x128xbf16> to vector<1x16x128xbf16>
    tpu.vector_store %arg6[%c0_15, %c0_16, %c0_17], %28 {strides = array<i32>} : memref<1x16x128xbf16, #tpu.memory_space<vmem>>, vector<1x16x128xbf16>,
    return
  }
  func.func @transform_0(%arg0: i32, %arg1: i32) -> (i32, i32, i32) {
    %c0_i32 = arith.constant 0 : i32
    %c0_i32_0 = arith.constant 0 : i32
    return %arg0, %arg1, %c0_i32 : i32, i32, i32
  }
  func.func @transform_1(%arg0: i32, %arg1: i32) -> (i32, i32, i32) {
    %c0_i32 = arith.constant 0 : i32
    %c0_i32_0 = arith.constant 0 : i32
    %c0_i32_1 = arith.constant 0 : i32
    return %arg0, %c0_i32, %c0_i32_0 : i32, i32, i32
  }
  func.func @transform_2(%arg0: i32, %arg1: i32) -> (i32, i32, i32) {
    %c0_i32 = arith.constant 0 : i32
    %c0_i32_0 = arith.constant 0 : i32
    %c0_i32_1 = arith.constant 0 : i32
    return %arg0, %c0_i32, %c0_i32_0 : i32, i32, i32
  }
  func.func @transform_3(%arg0: i32, %arg1: i32) -> (i32, i32, i32) {
    %c0_i32 = arith.constant 0 : i32
    %c0_i32_0 = arith.constant 0 : i32
    %c0_i32_1 = arith.constant 0 : i32
    return %arg0, %c0_i32, %c0_i32_0 : i32, i32, i32
  }
  func.func @transform_4(%arg0: i32, %arg1: i32) -> (i32, i32, i32) {
    %c0_i32 = arith.constant 0 : i32
    %c0_i32_0 = arith.constant 0 : i32
    return %arg0, %arg1, %c0_i32 : i32, i32, i32
  }
}

module attributes {stable_mosaic.version = 11 : i64} {
  func.func @_matmul_bias_res_kernel(%arg0: i32, %arg1: i32, %arg2: i32, %arg3: memref<32x128xbf16, #tpu.memory_space<vmem>>, %arg4: memref<128x128xbf16, #tpu.memory_space<vmem>>, %arg5: memref<1x128xf32, #tpu.memory_space<vmem>>, %arg6: memref<32x128xf32, #tpu.memory_space<vmem>>, %arg7: memref<32x128xf32, #tpu.memory_space<vmem>>, %arg8: memref<32x128xf32, #tpu.memory_space<vmem>>) attributes {dimension_semantics = [#tpu.dimension_semantics<parallel>, #tpu.dimension_semantics<parallel>, #tpu.dimension_semantics<arbitrary>], iteration_bounds = array<i64: 1, 1, 1>, scalar_prefetch = 0 : i64, scratch_operands = 1 : i64, tpu.core_type = #tpu.core_type<tc>, window_params = [{transform_indices = @transform_0, window_bounds = array<i64: 32, 128>}, {transform_indices = @transform_1, window_bounds = array<i64: 128, 128>}, {transform_indices = @transform_2, window_bounds = array<i64: 1, 128>}, {transform_indices = @transform_3, window_bounds = array<i64: 32, 128>}, {transform_indices = @transform_4, window_bounds = array<i64: 32, 128>}]} {
    %c0_i32 = arith.constant 0 : i32
    %0 = arith.cmpi eq, %arg2, %c0_i32 : i32
    %1 = arith.extui %0 : i1 to i32
    %c0_i32_0 = arith.constant 0 : i32
    %2 = arith.cmpi ne, %1, %c0_i32_0 : i32
    scf.if %2 {
      %cst_10 = arith.constant 0.000000e+00 : f32
      %12 = vector.broadcast %cst_10 : f32 to vector<32x128xf32>
      %c0_11 = arith.constant 0 : index
      %c0_12 = arith.constant 0 : index
      %13 = vector.load %arg8[%c0_11, %c0_12] : memref<32x128xf32, #tpu.memory_space<vmem>>, vector<32x128xf32>
      tpu.vector_store %arg8[%c0_11, %c0_12], %12 {strides = array<i32>} : memref<32x128xf32, #tpu.memory_space<vmem>>, vector<32x128xf32>,
    } else {
    }
    %c0 = arith.constant 0 : index
    %c0_1 = arith.constant 0 : index
    %3 = vector.load %arg8[%c0, %c0_1] : memref<32x128xf32, #tpu.memory_space<vmem>>, vector<32x128xf32>
    %c0_2 = arith.constant 0 : index
    %c0_3 = arith.constant 0 : index
    %4 = vector.load %arg3[%c0_2, %c0_3] : memref<32x128xbf16, #tpu.memory_space<vmem>>, vector<32x128xbf16>
    %c0_4 = arith.constant 0 : index
    %c0_5 = arith.constant 0 : index
    %5 = vector.load %arg4[%c0_4, %c0_5] : memref<128x128xbf16, #tpu.memory_space<vmem>>, vector<128x128xbf16>
    %cst = arith.constant dense<0.000000e+00> : vector<32x128xf32>
    %6 = tpu.matmul %4, %5, %cst {dimension_numbers = #tpu.dot_dimension_numbers<[1], [0], [0], [1], [0, 0, 1, 1], [], []>} : vector<32x128xbf16>, vector<128x128xbf16>, vector<32x128xf32> -> vector<32x128xf32>
    %7 = arith.addf %3, %6 : vector<32x128xf32>
    %c0_6 = arith.constant 0 : index
    %c0_7 = arith.constant 0 : index
    %8 = vector.load %arg8[%c0_6, %c0_7] : memref<32x128xf32, #tpu.memory_space<vmem>>, vector<32x128xf32>
    tpu.vector_store %arg8[%c0_6, %c0_7], %7 {strides = array<i32>} : memref<32x128xf32, #tpu.memory_space<vmem>>, vector<32x128xf32>,
    %c0_i32_8 = arith.constant 0 : i32
    %9 = arith.cmpi eq, %arg2, %c0_i32_8 : i32
    %10 = arith.extui %9 : i1 to i32
    %c0_i32_9 = arith.constant 0 : i32
    %11 = arith.cmpi ne, %10, %c0_i32_9 : i32
    scf.if %11 {
      %c0_10 = arith.constant 0 : index
      %c0_11 = arith.constant 0 : index
      %12 = vector.load %arg8[%c0_10, %c0_11] : memref<32x128xf32, #tpu.memory_space<vmem>>, vector<32x128xf32>
      %c0_12 = arith.constant 0 : index
      %c0_13 = arith.constant 0 : index
      %13 = vector.load %arg5[%c0_12, %c0_13] : memref<1x128xf32, #tpu.memory_space<vmem>>, vector<1x128xf32>
      %14 = vector.broadcast %13 : vector<1x128xf32> to vector<32x128xf32>
      %15 = arith.addf %12, %14 : vector<32x128xf32>
      %c0_14 = arith.constant 0 : index
      %c0_15 = arith.constant 0 : index
      %16 = vector.load %arg6[%c0_14, %c0_15] : memref<32x128xf32, #tpu.memory_space<vmem>>, vector<32x128xf32>
      %17 = arith.addf %15, %16 : vector<32x128xf32>
      %c0_16 = arith.constant 0 : index
      %c0_17 = arith.constant 0 : index
      %18 = vector.load %arg7[%c0_16, %c0_17] : memref<32x128xf32, #tpu.memory_space<vmem>>, vector<32x128xf32>
      tpu.vector_store %arg7[%c0_16, %c0_17], %17 {strides = array<i32>} : memref<32x128xf32, #tpu.memory_space<vmem>>, vector<32x128xf32>,
    } else {
    }
    return
  }
  func.func @transform_0(%arg0: i32, %arg1: i32, %arg2: i32) -> (i32, i32) {
    %c0_i32 = arith.constant 0 : i32
    return %arg0, %arg2 : i32, i32
  }
  func.func @transform_1(%arg0: i32, %arg1: i32, %arg2: i32) -> (i32, i32) {
    %c0_i32 = arith.constant 0 : i32
    return %arg2, %arg1 : i32, i32
  }
  func.func @transform_2(%arg0: i32, %arg1: i32, %arg2: i32) -> (i32, i32) {
    %c0_i32 = arith.constant 0 : i32
    %c0_i32_0 = arith.constant 0 : i32
    return %c0_i32, %arg1 : i32, i32
  }
  func.func @transform_3(%arg0: i32, %arg1: i32, %arg2: i32) -> (i32, i32) {
    %c0_i32 = arith.constant 0 : i32
    return %arg0, %arg1 : i32, i32
  }
  func.func @transform_4(%arg0: i32, %arg1: i32, %arg2: i32) -> (i32, i32) {
    %c0_i32 = arith.constant 0 : i32
    return %arg0, %arg1 : i32, i32
  }
}

module attributes {stable_mosaic.version = 11 : i64} {
  func.func @_lm_head_loss_kernel(%arg0: i32, %arg1: i32, %arg2: memref<16x128xbf16, #tpu.memory_space<vmem>>, %arg3: memref<128x256xbf16, #tpu.memory_space<vmem>>, %arg4: memref<1x256xf32, #tpu.memory_space<vmem>>, %arg5: memref<16x1xi32, #tpu.memory_space<vmem>>, %arg6: memref<16x1xf32, #tpu.memory_space<vmem>>, %arg7: memref<16x1xf32, #tpu.memory_space<vmem>>, %arg8: memref<16x1xf32, #tpu.memory_space<vmem>>, %arg9: memref<16x1xf32, #tpu.memory_space<vmem>>, %arg10: memref<16x1xf32, #tpu.memory_space<vmem>>) attributes {dimension_semantics = [#tpu.dimension_semantics<parallel>, #tpu.dimension_semantics<arbitrary>], iteration_bounds = array<i64: 1, 1>, scalar_prefetch = 0 : i64, scratch_operands = 3 : i64, tpu.core_type = #tpu.core_type<tc>, window_params = [{transform_indices = @transform_0, window_bounds = array<i64: 16, 128>}, {transform_indices = @transform_1, window_bounds = array<i64: 128, 256>}, {transform_indices = @transform_2, window_bounds = array<i64: 1, 256>}, {transform_indices = @transform_3, window_bounds = array<i64: 16, 1>}, {transform_indices = @transform_4, window_bounds = array<i64: 16, 1>}, {transform_indices = @transform_5, window_bounds = array<i64: 16, 1>}]} {
    %c0_i32 = arith.constant 0 : i32
    %0 = arith.cmpi eq, %arg1, %c0_i32 : i32
    %1 = arith.extui %0 : i1 to i32
    %c0_i32_0 = arith.constant 0 : i32
    %2 = arith.cmpi ne, %1, %c0_i32_0 : i32
    scf.if %2 {
      %cst_28 = arith.constant 0xFF800000 : f32
      %43 = vector.broadcast %cst_28 : f32 to vector<16x1xf32>
      %c0_29 = arith.constant 0 : index
      %c0_30 = arith.constant 0 : index
      %44 = vector.load %arg8[%c0_29, %c0_30] : memref<16x1xf32, #tpu.memory_space<vmem>>, vector<16x1xf32>
      tpu.vector_store %arg8[%c0_29, %c0_30], %43 {strides = array<i32>} : memref<16x1xf32, #tpu.memory_space<vmem>>, vector<16x1xf32>,
      %cst_31 = arith.constant 0.000000e+00 : f32
      %45 = vector.broadcast %cst_31 : f32 to vector<16x1xf32>
      %c0_32 = arith.constant 0 : index
      %c0_33 = arith.constant 0 : index
      %46 = vector.load %arg9[%c0_32, %c0_33] : memref<16x1xf32, #tpu.memory_space<vmem>>, vector<16x1xf32>
      tpu.vector_store %arg9[%c0_32, %c0_33], %45 {strides = array<i32>} : memref<16x1xf32, #tpu.memory_space<vmem>>, vector<16x1xf32>,
      %cst_34 = arith.constant 0.000000e+00 : f32
      %47 = vector.broadcast %cst_34 : f32 to vector<16x1xf32>
      %c0_35 = arith.constant 0 : index
      %c0_36 = arith.constant 0 : index
      %48 = vector.load %arg10[%c0_35, %c0_36] : memref<16x1xf32, #tpu.memory_space<vmem>>, vector<16x1xf32>
      tpu.vector_store %arg10[%c0_35, %c0_36], %47 {strides = array<i32>} : memref<16x1xf32, #tpu.memory_space<vmem>>, vector<16x1xf32>,
    } else {
    }
    %c0 = arith.constant 0 : index
    %c0_1 = arith.constant 0 : index
    %3 = vector.load %arg2[%c0, %c0_1] : memref<16x128xbf16, #tpu.memory_space<vmem>>, vector<16x128xbf16>
    %c0_2 = arith.constant 0 : index
    %c0_3 = arith.constant 0 : index
    %4 = vector.load %arg3[%c0_2, %c0_3] : memref<128x256xbf16, #tpu.memory_space<vmem>>, vector<128x256xbf16>
    %cst = arith.constant dense<0.000000e+00> : vector<16x256xf32>
    %5 = tpu.matmul %3, %4, %cst {dimension_numbers = #tpu.dot_dimension_numbers<[1], [0], [0], [1], [0, 0, 1, 1], [], []>} : vector<16x128xbf16>, vector<128x256xbf16>, vector<16x256xf32> -> vector<16x256xf32>
    %c0_4 = arith.constant 0 : index
    %c0_5 = arith.constant 0 : index
    %6 = vector.load %arg4[%c0_4, %c0_5] : memref<1x256xf32, #tpu.memory_space<vmem>>, vector<1x256xf32>
    %7 = vector.broadcast %6 : vector<1x256xf32> to vector<16x256xf32>
    %8 = arith.addf %5, %7 : vector<16x256xf32>
    %c0_6 = arith.constant 0 : index
    %c0_7 = arith.constant 0 : index
    %9 = vector.load %arg8[%c0_6, %c0_7] : memref<16x1xf32, #tpu.memory_space<vmem>>, vector<16x1xf32>
    %cst_8 = arith.constant dense<0xFF800000> : vector<16xf32>
    %10 = vector.multi_reduction <maximumf>, %8, %cst_8 [1] : vector<16x256xf32> to vector<16xf32>
    %11 = vector.shape_cast %10 : vector<16xf32> to vector<16x1xf32>
    %12 = arith.maximumf %9, %11 : vector<16x1xf32>
    %c0_9 = arith.constant 0 : index
    %c0_10 = arith.constant 0 : index
    %13 = vector.load %arg9[%c0_9, %c0_10] : memref<16x1xf32, #tpu.memory_space<vmem>>, vector<16x1xf32>
    %c0_11 = arith.constant 0 : index
    %c0_12 = arith.constant 0 : index
    %14 = vector.load %arg8[%c0_11, %c0_12] : memref<16x1xf32, #tpu.memory_space<vmem>>, vector<16x1xf32>
    %15 = arith.subf %14, %12 : vector<16x1xf32>
    %16 = math.exp %15 : vector<16x1xf32>
    %17 = arith.mulf %13, %16 : vector<16x1xf32>
    %18 = vector.broadcast %12 : vector<16x1xf32> to vector<16x256xf32>
    %19 = arith.subf %8, %18 : vector<16x256xf32>
    %20 = math.exp %19 : vector<16x256xf32>
    %cst_13 = arith.constant dense<0.000000e+00> : vector<16xf32>
    %21 = vector.multi_reduction <add>, %20, %cst_13 [1] : vector<16x256xf32> to vector<16xf32>
    %22 = vector.shape_cast %21 : vector<16xf32> to vector<16x1xf32>
    %23 = arith.addf %17, %22 : vector<16x1xf32>
    %c0_14 = arith.constant 0 : index
    %c0_15 = arith.constant 0 : index
    %24 = vector.load %arg9[%c0_14, %c0_15] : memref<16x1xf32, #tpu.memory_space<vmem>>, vector<16x1xf32>
    tpu.vector_store %arg9[%c0_14, %c0_15], %23 {strides = array<i32>} : memref<16x1xf32, #tpu.memory_space<vmem>>, vector<16x1xf32>,
    %c0_16 = arith.constant 0 : index
    %c0_17 = arith.constant 0 : index
    %25 = vector.load %arg8[%c0_16, %c0_17] : memref<16x1xf32, #tpu.memory_space<vmem>>, vector<16x1xf32>
    tpu.vector_store %arg8[%c0_16, %c0_17], %12 {strides = array<i32>} : memref<16x1xf32, #tpu.memory_space<vmem>>, vector<16x1xf32>,
    %26 = tpu.iota {dimensions = array<i32: 1>} : vector<16x256xi32>
    %c256_i32 = arith.constant 256 : i32
    %27 = arith.muli %arg1, %c256_i32 : i32
    %28 = vector.broadcast %27 : i32 to vector<16x256xi32>
    %29 = arith.addi %26, %28 : vector<16x256xi32>
    %c0_18 = arith.constant 0 : index
    %c0_19 = arith.constant 0 : index
    %30 = vector.load %arg10[%c0_18, %c0_19] : memref<16x1xf32, #tpu.memory_space<vmem>>, vector<16x1xf32>
    %c0_20 = arith.constant 0 : index
    %c0_21 = arith.constant 0 : index
    %31 = vector.load %arg5[%c0_20, %c0_21] : memref<16x1xi32, #tpu.memory_space<vmem>>, vector<16x1xi32>
    %32 = vector.broadcast %31 : vector<16x1xi32> to vector<16x256xi32>
    %33 = arith.cmpi eq, %29, %32 : vector<16x256xi32>
    %cst_22 = arith.constant 0.000000e+00 : f32
    %34 = vector.broadcast %cst_22 : f32 to vector<16x256xf32>
    %35 = arith.select %33, %8, %34 : vector<16x256xi1>, vector<16x256xf32>
    %cst_23 = arith.constant dense<0.000000e+00> : vector<16xf32>
    %36 = vector.multi_reduction <add>, %35, %cst_23 [1] : vector<16x256xf32> to vector<16xf32>
    %37 = vector.shape_cast %36 : vector<16xf32> to vector<16x1xf32>
    %38 = arith.addf %30, %37 : vector<16x1xf32>
    %c0_24 = arith.constant 0 : index
    %c0_25 = arith.constant 0 : index
    %39 = vector.load %arg10[%c0_24, %c0_25] : memref<16x1xf32, #tpu.memory_space<vmem>>, vector<16x1xf32>
    tpu.vector_store %arg10[%c0_24, %c0_25], %38 {strides = array<i32>} : memref<16x1xf32, #tpu.memory_space<vmem>>, vector<16x1xf32>,
    %c0_i32_26 = arith.constant 0 : i32
    %40 = arith.cmpi eq, %arg1, %c0_i32_26 : i32
    %41 = arith.extui %40 : i1 to i32
    %c0_i32_27 = arith.constant 0 : i32
    %42 = arith.cmpi ne, %41, %c0_i32_27 : i32
    scf.if %42 {
      %c0_28 = arith.constant 0 : index
      %c0_29 = arith.constant 0 : index
      %43 = vector.load %arg8[%c0_28, %c0_29] : memref<16x1xf32, #tpu.memory_space<vmem>>, vector<16x1xf32>
      %c0_30 = arith.constant 0 : index
      %c0_31 = arith.constant 0 : index
      %44 = vector.load %arg9[%c0_30, %c0_31] : memref<16x1xf32, #tpu.memory_space<vmem>>, vector<16x1xf32>
      %45 = math.log %44 : vector<16x1xf32>
      %46 = arith.addf %43, %45 : vector<16x1xf32>
      %c0_32 = arith.constant 0 : index
      %c0_33 = arith.constant 0 : index
      %47 = vector.load %arg10[%c0_32, %c0_33] : memref<16x1xf32, #tpu.memory_space<vmem>>, vector<16x1xf32>
      %48 = arith.subf %46, %47 : vector<16x1xf32>
      %c0_34 = arith.constant 0 : index
      %c0_35 = arith.constant 0 : index
      %49 = vector.load %arg6[%c0_34, %c0_35] : memref<16x1xf32, #tpu.memory_space<vmem>>, vector<16x1xf32>
      %50 = arith.mulf %48, %49 : vector<16x1xf32>
      %c0_36 = arith.constant 0 : index
      %c0_37 = arith.constant 0 : index
      %51 = vector.load %arg7[%c0_36, %c0_37] : memref<16x1xf32, #tpu.memory_space<vmem>>, vector<16x1xf32>
      tpu.vector_store %arg7[%c0_36, %c0_37], %50 {strides = array<i32>} : memref<16x1xf32, #tpu.memory_space<vmem>>, vector<16x1xf32>,
    } else {
    }
    return
  }
  func.func @transform_0(%arg0: i32, %arg1: i32) -> (i32, i32) {
    %c0_i32 = arith.constant 0 : i32
    %c0_i32_0 = arith.constant 0 : i32
    return %arg0, %c0_i32 : i32, i32
  }
  func.func @transform_1(%arg0: i32, %arg1: i32) -> (i32, i32) {
    %c0_i32 = arith.constant 0 : i32
    %c0_i32_0 = arith.constant 0 : i32
    return %c0_i32, %arg1 : i32, i32
  }
  func.func @transform_2(%arg0: i32, %arg1: i32) -> (i32, i32) {
    %c0_i32 = arith.constant 0 : i32
    %c0_i32_0 = arith.constant 0 : i32
    return %c0_i32, %arg1 : i32, i32
  }
  func.func @transform_3(%arg0: i32, %arg1: i32) -> (i32, i32) {
    %c0_i32 = arith.constant 0 : i32
    %c0_i32_0 = arith.constant 0 : i32
    return %arg0, %c0_i32 : i32, i32
  }
  func.func @transform_4(%arg0: i32, %arg1: i32) -> (i32, i32) {
    %c0_i32 = arith.constant 0 : i32
    %c0_i32_0 = arith.constant 0 : i32
    return %arg0, %c0_i32 : i32, i32
  }
  func.func @transform_5(%arg0: i32, %arg1: i32) -> (i32, i32) {
    %c0_i32 = arith.constant 0 : i32
    %c0_i32_0 = arith.constant 0 : i32
    return %arg0, %c0_i32 : i32, i32
  }
}

</mosaic_0001>

<llo_original>
// kernel: finetune_forward.14
$region0: #{finetune_forward.14}
  #allocation0 [shape = 'u32[]', space=smem, size = 0x4, offset = 0x4, fixed_abs, tag = 'smem constant byte address 0x4 - core index']
  #allocation1 [shape = 'u32[144,128]{1,0:T(1,128)}', space=vmem, size = 0x12000, scoped, tag = 'internal scratch']
  %s0 = inlined_call_operand.vmem [shape: f32[16,128], index: 0, kind: input, shape index: {}]
  %s1 = inlined_call_operand.vmem [shape: f32[16,1], index: 1, kind: input, shape index: {}]
  %s2 = inlined_call_operand.vmem [shape: bf16[128,128], index: 2, kind: input, shape index: {}]
  %s3 = inlined_call_operand.vmem [shape: f32[1,128], index: 3, kind: input, shape index: {}]
  %s4 = inlined_call_operand.vmem [shape: f32[16,128], index: 4, kind: output, shape index: {}]
  %s5 = sld [smem:[#allocation0]]
  $region26: #{finetune_forward.14} parent=0
    _
  %s7 = ssub.s32 1, %s5
  %s8 = scalar_select 0, %s7, %s5
  // Predicated region
  $region2: #{finetune_forward.14} parent=0 // pred_check
    _
  $region3: #{finetune_forward.14} parent=0 // pred_check_branch
    %10 = sbr.rel (0) target = $region5
  $region4: #{finetune_forward.14} parent=0 // pred_region
    _
  $region5: #{finetune_forward.14} parent=0 // pred_fallthru
    _
  // Predicated region
  $region6: #{finetune_forward.14} parent=0 // pred_check
    _
  $region7: #{finetune_forward.14} parent=0 // pred_check_branch
    %12 = sbr.rel (0) target = $region9
  $region8: #{finetune_forward.14} parent=0 // pred_region
    _
  $region9: #{finetune_forward.14} parent=0 // pred_fallthru
    _
  // Predicated region
  $region10: #{finetune_forward.14} parent=0 // pred_check
    _
  $region11: #{finetune_forward.14} parent=0 // pred_check_branch
    %14 = sbr.rel (0) target = $region13
  $region12: #{finetune_forward.14} parent=0 // pred_region
    _
  $region13: #{finetune_forward.14} parent=0 // pred_fallthru
    _
  // Predicated region
  $region14: #{finetune_forward.14} parent=0 // pred_check
    _
  $region15: #{finetune_forward.14} parent=0 // pred_check_branch
    %16 = sbr.rel (0) target = $region17
  $region16: #{finetune_forward.14} parent=0 // pred_region
    _
  $region17: #{finetune_forward.14} parent=0 // pred_fallthru
    _
  %v18 = vld [vmem:[%s0] sm:$0xff]
  %v19 = vld [vmem:[%s0 + $0x8] sm:$0xff]
  %v20 = vpack.c.bf16 %v19, %v18
  %v21 = vld [vmem:[%s2] sm:$0xf]
  %v22 = vld [vmem:[%s2 + $0x4] sm:$0xf]
  %v23 = vld [vmem:[%s2 + $0x8] sm:$0xf]
  %v24 = vld [vmem:[%s2 + $0xc] sm:$0xf]
  %v25 = vld [vmem:[%s2 + $0x10] sm:$0xf]
  %v26 = vld [vmem:[%s2 + $0x14] sm:$0xf]
  %v27 = vld [vmem:[%s2 + $0x18] sm:$0xf]
  %v28 = vld [vmem:[%s2 + $0x1c] sm:$0xf]
  %v29 = vld [vmem:[%s2 + $0x20] sm:$0xf]
  %v30 = vld [vmem:[%s2 + $0x24] sm:$0xf]
  %v31 = vld [vmem:[%s2 + $0x28] sm:$0xf]
  %v32 = vld [vmem:[%s2 + $0x2c] sm:$0xf]
  %v33 = vld [vmem:[%s2 + $0x30] sm:$0xf]
  %v34 = vld [vmem:[%s2 + $0x34] sm:$0xf]
  %v35 = vld [vmem:[%s2 + $0x38] sm:$0xf]
  %v36 = vld [vmem:[%s2 + $0x3c] sm:$0xf]
  %v37 = vld [vmem:[%s1] sm:$0xff]
  %v38 = vld [vmem:[%s1 + $0x8] sm:$0xff]
  %v39 = vld [vmem:[%s3] sm:$0x1]
  %v41 = vlaneseq
  %v42 = vshrl.u32 %v41, 7
  %v43 = vsub.s32 0, %v42
  %v44 = vrot.slane %v39, %v43
  %47 = vset.pattern.permute.xlu0 0
  %48 = vperm.xlu0 %47, %v37
  %v49 = vpop.permute.xlu0 %48
  %52 = vset.pattern.permute.xlu0 0
  %53 = vperm.xlu0 %52, %v38
  %v54 = vpop.permute.xlu0 %53
  %v56 = vmul.f32 %v44, %v49
  %v57 = vmul.f32 %v44, %v54
  %v74 = vunpack.c.l.b16 %v21
  %v75 = vunpack.c.l.b16 %v22
  %v76 = vunpack.c.l.b16 %v23
  %v77 = vunpack.c.l.b16 %v24
  %v78 = vunpack.c.l.b16 %v25
  %v79 = vunpack.c.l.b16 %v26
  %v80 = vunpack.c.l.b16 %v27
  %v81 = vunpack.c.l.b16 %v28
  %v82 = vunpack.c.l.b16 %v29
  %v83 = vunpack.c.l.b16 %v30
  %v84 = vunpack.c.l.b16 %v31
  %v85 = vunpack.c.l.b16 %v32
  %v86 = vunpack.c.l.b16 %v33
  %v87 = vunpack.c.l.b16 %v34
  %v88 = vunpack.c.l.b16 %v35
  %v89 = vunpack.c.l.b16 %v36
  %v90 = vpack.c.b16 %v75, %v74
  %v91 = vpack.c.b16 %v77, %v76
  %v92 = vpack.c.b16 %v79, %v78
  %v93 = vpack.c.b16 %v81, %v80
  %v94 = vpack.c.b16 %v83, %v82
  %v95 = vpack.c.b16 %v85, %v84
  %v96 = vpack.c.b16 %v87, %v86
  %v97 = vpack.c.b16 %v89, %v88
  %106 = vmatprep.subr.bf16.mxu0 0
  %107 = vmatpush1.bf16.msra.mxu0 %v97
  %108 = vmatprep.subr.bf16.mxu0 0
  %109 = vmatpush1.bf16.msra.mxu0 %v96
  %110 = vmatprep.subr.bf16.mxu0 0
  %111 = vmatpush1.bf16.msra.mxu0 %v95
  %112 = vmatprep.subr.bf16.mxu0 0
  %113 = vmatpush1.bf16.msra.mxu0 %v94
  %114 = vmatprep.subr.bf16.mxu0 0
  %115 = vmatpush1.bf16.msra.mxu0 %v93
  %116 = vmatprep.subr.bf16.mxu0 0
  %117 = vmatpush1.bf16.msra.mxu0 %v92
  %118 = vmatprep.subr.bf16.mxu0 0
  %119 = vmatpush1.bf16.msra.mxu0 %v91
  %120 = vmatprep.subr.bf16.mxu0 0
  %121 = vmatpush1.bf16.msra.mxu0 %v90
  %122 = vmatprep.subr.bf16.mxu0 0
  %123 = vmatpush2.bf16.msra.mxu0 0
  %124 = vmatprep.subr.bf16.mxu0 0
  %125 = vmatpush2.bf16.msra.mxu0 0
  %126 = vmatprep.subr.bf16.mxu0 0
  %127 = vmatpush2.bf16.msra.mxu0 0
  %128 = vmatprep.subr.bf16.mxu0 0
  %129 = vmatpush2.bf16.msra.mxu0 0
  %130 = vmatprep.subr.bf16.mxu0 0
  %131 = vmatpush2.bf16.msra.mxu0 0
  %132 = vmatprep.subr.bf16.mxu0 0
  %133 = vmatpush2.bf16.msra.mxu0 0
  %134 = vmatprep.subr.bf16.mxu0 0
  %135 = vmatpush2.bf16.msra.mxu0 0
  %136 = vmatprep.subr.bf16.mxu0 0
  %137 = vmatpush2.bf16.msra.mxu0 0
  %138 = vmatprep.mubr.bf16.mxu0 0
  %139 = vmatmul.mubr.bf16.gmra.mxu0 %v20
  %v140 = vpop.f32.mrf.mxu0
  %v141 = vadd.f32 %v56, %v140
  %v142 = vpop.f32.mrf.mxu0
  %v143 = vpop.f32.mrf.mxu0
  %v144 = vadd.f32 %v57, %v143
  %v145 = vpop.f32.mrf.mxu0
  %146 = vdwg.mxu0
  %v147 = vadd.f32 %v37, 1e-09
  %v148 = vadd.f32 %v38, 1e-09
  %150 = vset.pattern.permute.xlu0 0
  %151 = vperm.xlu0 %150, %v147
  %v152 = vpop.permute.xlu0 %151
  %155 = vset.pattern.permute.xlu0 0
  %156 = vperm.xlu0 %155, %v148
  %v157 = vpop.permute.xlu0 %156
  %v159 = vrcp.pop %v152
  %v160 = vmul.f32 %v141, %v159
  %v161 = vrcp.pop %v157
  %v162 = vmul.f32 %v144, %v161
  %163 = vst [vmem:[%s4] sm:$0xff] %v160
  %164 = vst [vmem:[%s4 + $0x8] sm:$0xff] %v162
  // Predicated region
  $region18: #{finetune_forward.14} parent=0 // pred_check
    _
  $region19: #{finetune_forward.14} parent=0 // pred_check_branch
    %166 = sbr.rel (0) target = $region21
  $region20: #{finetune_forward.14} parent=0 // pred_region
    _
  $region21: #{finetune_forward.14} parent=0 // pred_fallthru
    _
  // Predicated region
  $region22: #{finetune_forward.14} parent=0 // pred_check
    _
  $region23: #{finetune_forward.14} parent=0 // pred_check_branch
    %168 = sbr.rel (0) target = $region25
  $region24: #{finetune_forward.14} parent=0 // pred_region
    _
  $region25: #{finetune_forward.14} parent=0 // pred_fallthru
    _

// kernel: finetune_forward.15
$region0: #{finetune_forward.15}
  #allocation0 [shape = 'u32[]', space=smem, size = 0x4, offset = 0x4, fixed_abs, tag = 'smem constant byte address 0x4 - core index']
  #allocation1 [shape = 'u32[144,128]{1,0:T(1,128)}', space=vmem, size = 0x12000, scoped, tag = 'internal scratch']
  %s0 = inlined_call_operand.vmem [shape: f32[16,128], index: 0, kind: input, shape index: {}]
  %s1 = inlined_call_operand.vmem [shape: bf16[128,128], index: 1, kind: input, shape index: {}]
  %s2 = inlined_call_operand.vmem [shape: f32[1,128], index: 2, kind: input, shape index: {}]
  %s3 = inlined_call_operand.vmem [shape: bf16[128,128], index: 3, kind: input, shape index: {}]
  %s4 = inlined_call_operand.vmem [shape: f32[1,128], index: 4, kind: input, shape index: {}]
  %s5 = inlined_call_operand.vmem [shape: f32[16,128], index: 5, kind: output, shape index: {}]
  %s6 = sld [smem:[#allocation0]]
  $region30: #{finetune_forward.15} parent=0
    _
  %s8 = ssub.s32 1, %s6
  %s9 = scalar_select 0, %s8, %s6
  // Predicated region
  $region2: #{finetune_forward.15} parent=0 // pred_check
    _
  $region3: #{finetune_forward.15} parent=0 // pred_check_branch
    %11 = sbr.rel (0) target = $region5
  $region4: #{finetune_forward.15} parent=0 // pred_region
    _
  $region5: #{finetune_forward.15} parent=0 // pred_fallthru
    _
  // Predicated region
  $region6: #{finetune_forward.15} parent=0 // pred_check
    _
  $region7: #{finetune_forward.15} parent=0 // pred_check_branch
    %13 = sbr.rel (0) target = $region9
  $region8: #{finetune_forward.15} parent=0 // pred_region
    _
  $region9: #{finetune_forward.15} parent=0 // pred_fallthru
    _
  // Predicated region
  $region10: #{finetune_forward.15} parent=0 // pred_check
    _
  $region11: #{finetune_forward.15} parent=0 // pred_check_branch
    %15 = sbr.rel (0) target = $region13
  $region12: #{finetune_forward.15} parent=0 // pred_region
    _
  $region13: #{finetune_forward.15} parent=0 // pred_fallthru
    _
  // Predicated region
  $region14: #{finetune_forward.15} parent=0 // pred_check
    _
  $region15: #{finetune_forward.15} parent=0 // pred_check_branch
    %17 = sbr.rel (0) target = $region17
  $region16: #{finetune_forward.15} parent=0 // pred_region
    _
  $region17: #{finetune_forward.15} parent=0 // pred_fallthru
    _
  // Predicated region
  $region18: #{finetune_forward.15} parent=0 // pred_check
    _
  $region19: #{finetune_forward.15} parent=0 // pred_check_branch
    %19 = sbr.rel (0) target = $region21
  $region20: #{finetune_forward.15} parent=0 // pred_region
    _
  $region21: #{finetune_forward.15} parent=0 // pred_fallthru
    _
  %v21 = vld [vmem:[%s0] sm:$0xff]
  %v22 = vld [vmem:[%s0 + $0x8] sm:$0xff]
  %v23 = vpack.c.bf16 %v22, %v21
  %v24 = vld [vmem:[%s1] sm:$0xf]
  %v25 = vld [vmem:[%s1 + $0x4] sm:$0xf]
  %v26 = vld [vmem:[%s1 + $0x8] sm:$0xf]
  %v27 = vld [vmem:[%s1 + $0xc] sm:$0xf]
  %v28 = vld [vmem:[%s1 + $0x10] sm:$0xf]
  %v29 = vld [vmem:[%s1 + $0x14] sm:$0xf]
  %v30 = vld [vmem:[%s1 + $0x18] sm:$0xf]
  %v31 = vld [vmem:[%s1 + $0x1c] sm:$0xf]
  %v32 = vld [vmem:[%s1 + $0x20] sm:$0xf]
  %v33 = vld [vmem:[%s1 + $0x24] sm:$0xf]
  %v34 = vld [vmem:[%s1 + $0x28] sm:$0xf]
  %v35 = vld [vmem:[%s1 + $0x2c] sm:$0xf]
  %v36 = vld [vmem:[%s1 + $0x30] sm:$0xf]
  %v37 = vld [vmem:[%s1 + $0x34] sm:$0xf]
  %v38 = vld [vmem:[%s1 + $0x38] sm:$0xf]
  %v39 = vld [vmem:[%s1 + $0x3c] sm:$0xf]
  %v40 = vld [vmem:[%s2] sm:$0x1]
  %v42 = vlaneseq
  %v43 = vshrl.u32 %v42, 7
  %v44 = vsub.s32 0, %v43
  %v45 = vrot.slane %v40, %v44
  %v63 = vunpack.c.l.b16 %v24
  %v64 = vunpack.c.l.b16 %v25
  %v65 = vunpack.c.l.b16 %v26
  %v66 = vunpack.c.l.b16 %v27
  %v67 = vunpack.c.l.b16 %v28
  %v68 = vunpack.c.l.b16 %v29
  %v69 = vunpack.c.l.b16 %v30
  %v70 = vunpack.c.l.b16 %v31
  %v71 = vunpack.c.l.b16 %v32
  %v72 = vunpack.c.l.b16 %v33
  %v73 = vunpack.c.l.b16 %v34
  %v74 = vunpack.c.l.b16 %v35
  %v75 = vunpack.c.l.b16 %v36
  %v76 = vunpack.c.l.b16 %v37
  %v77 = vunpack.c.l.b16 %v38
  %v78 = vunpack.c.l.b16 %v39
  %v79 = vpack.c.b16 %v64, %v63
  %v80 = vpack.c.b16 %v66, %v65
  %v81 = vpack.c.b16 %v68, %v67
  %v82 = vpack.c.b16 %v70, %v69
  %v83 = vpack.c.b16 %v72, %v71
  %v84 = vpack.c.b16 %v74, %v73
  %v85 = vpack.c.b16 %v76, %v75
  %v86 = vpack.c.b16 %v78, %v77
  %95 = vmatprep.subr.bf16.mxu0 0
  %96 = vmatpush1.bf16.msra.mxu0 %v86
  %97 = vmatprep.subr.bf16.mxu0 0
  %98 = vmatpush1.bf16.msra.mxu0 %v85
  %99 = vmatprep.subr.bf16.mxu0 0
  %100 = vmatpush1.bf16.msra.mxu0 %v84
  %101 = vmatprep.subr.bf16.mxu0 0
  %102 = vmatpush1.bf16.msra.mxu0 %v83
  %103 = vmatprep.subr.bf16.mxu0 0
  %104 = vmatpush1.bf16.msra.mxu0 %v82
  %105 = vmatprep.subr.bf16.mxu0 0
  %106 = vmatpush1.bf16.msra.mxu0 %v81
  %107 = vmatprep.subr.bf16.mxu0 0
  %108 = vmatpush1.bf16.msra.mxu0 %v80
  %109 = vmatprep.subr.bf16.mxu0 0
  %110 = vmatpush1.bf16.msra.mxu0 %v79
  %111 = vmatprep.subr.bf16.mxu0 0
  %112 = vmatpush2.bf16.msra.mxu0 0
  %113 = vmatprep.subr.bf16.mxu0 0
  %114 = vmatpush2.bf16.msra.mxu0 0
  %115 = vmatprep.subr.bf16.mxu0 0
  %116 = vmatpush2.bf16.msra.mxu0 0
  %117 = vmatprep.subr.bf16.mxu0 0
  %118 = vmatpush2.bf16.msra.mxu0 0
  %119 = vmatprep.subr.bf16.mxu0 0
  %120 = vmatpush2.bf16.msra.mxu0 0
  %121 = vmatprep.subr.bf16.mxu0 0
  %122 = vmatpush2.bf16.msra.mxu0 0
  %123 = vmatprep.subr.bf16.mxu0 0
  %124 = vmatpush2.bf16.msra.mxu0 0
  %125 = vmatprep.subr.bf16.mxu0 0
  %126 = vmatpush2.bf16.msra.mxu0 0
  %127 = vmatprep.mubr.bf16.mxu0 0
  %128 = vmatmul.mubr.bf16.gmra.mxu0 %v23
  %v129 = vpop.f32.mrf.mxu0
  %v130 = vadd.f32 %v45, %v129
  %v131 = vpop.f32.mrf.mxu0
  %v132 = vpop.f32.mrf.mxu0
  %v133 = vadd.f32 %v45, %v132
  %v134 = vpop.f32.mrf.mxu0
  %135 = vdwg.mxu0
  %v136 = vmax.f32 %v130, 0.0
  %v137 = vmax.f32 %v133, 0.0
  %v138 = vpack.c.bf16 %v137, %v136
  %v139 = vld [vmem:[%s3] sm:$0xf]
  %v140 = vld [vmem:[%s3 + $0x4] sm:$0xf]
  %v141 = vld [vmem:[%s3 + $0x8] sm:$0xf]
  %v142 = vld [vmem:[%s3 + $0xc] sm:$0xf]
  %v143 = vld [vmem:[%s3 + $0x10] sm:$0xf]
  %v144 = vld [vmem:[%s3 + $0x14] sm:$0xf]
  %v145 = vld [vmem:[%s3 + $0x18] sm:$0xf]
  %v146 = vld [vmem:[%s3 + $0x1c] sm:$0xf]
  %v147 = vld [vmem:[%s3 + $0x20] sm:$0xf]
  %v148 = vld [vmem:[%s3 + $0x24] sm:$0xf]
  %v149 = vld [vmem:[%s3 + $0x28] sm:$0xf]
  %v150 = vld [vmem:[%s3 + $0x2c] sm:$0xf]
  %v151 = vld [vmem:[%s3 + $0x30] sm:$0xf]
  %v152 = vld [vmem:[%s3 + $0x34] sm:$0xf]
  %v153 = vld [vmem:[%s3 + $0x38] sm:$0xf]
  %v154 = vld [vmem:[%s3 + $0x3c] sm:$0xf]
  %v155 = vld [vmem:[%s4] sm:$0x1]
  %v157 = vlaneseq
  %v158 = vshrl.u32 %v157, 7
  %v159 = vsub.s32 0, %v158
  %v160 = vrot.slane %v155, %v159
  %v178 = vunpack.c.l.b16 %v139
  %v179 = vunpack.c.l.b16 %v140
  %v180 = vunpack.c.l.b16 %v141
  %v181 = vunpack.c.l.b16 %v142
  %v182 = vunpack.c.l.b16 %v143
  %v183 = vunpack.c.l.b16 %v144
  %v184 = vunpack.c.l.b16 %v145
  %v185 = vunpack.c.l.b16 %v146
  %v186 = vunpack.c.l.b16 %v147
  %v187 = vunpack.c.l.b16 %v148
  %v188 = vunpack.c.l.b16 %v149
  %v189 = vunpack.c.l.b16 %v150
  %v190 = vunpack.c.l.b16 %v151
  %v191 = vunpack.c.l.b16 %v152
  %v192 = vunpack.c.l.b16 %v153
  %v193 = vunpack.c.l.b16 %v154
  %v194 = vpack.c.b16 %v179, %v178
  %v195 = vpack.c.b16 %v181, %v180
  %v196 = vpack.c.b16 %v183, %v182
  %v197 = vpack.c.b16 %v185, %v184
  %v198 = vpack.c.b16 %v187, %v186
  %v199 = vpack.c.b16 %v189, %v188
  %v200 = vpack.c.b16 %v191, %v190
  %v201 = vpack.c.b16 %v193, %v192
  %210 = vmatprep.subr.bf16.mxu0 0
  %211 = vmatpush1.bf16.msra.mxu0 %v201
  %212 = vmatprep.subr.bf16.mxu0 0
  %213 = vmatpush1.bf16.msra.mxu0 %v200
  %214 = vmatprep.subr.bf16.mxu0 0
  %215 = vmatpush1.bf16.msra.mxu0 %v199
  %216 = vmatprep.subr.bf16.mxu0 0
  %217 = vmatpush1.bf16.msra.mxu0 %v198
  %218 = vmatprep.subr.bf16.mxu0 0
  %219 = vmatpush1.bf16.msra.mxu0 %v197
  %220 = vmatprep.subr.bf16.mxu0 0
  %221 = vmatpush1.bf16.msra.mxu0 %v196
  %222 = vmatprep.subr.bf16.mxu0 0
  %223 = vmatpush1.bf16.msra.mxu0 %v195
  %224 = vmatprep.subr.bf16.mxu0 0
  %225 = vmatpush1.bf16.msra.mxu0 %v194
  %226 = vmatprep.subr.bf16.mxu0 0
  %227 = vmatpush2.bf16.msra.mxu0 0
  %228 = vmatprep.subr.bf16.mxu0 0
  %229 = vmatpush2.bf16.msra.mxu0 0
  %230 = vmatprep.subr.bf16.mxu0 0
  %231 = vmatpush2.bf16.msra.mxu0 0
  %232 = vmatprep.subr.bf16.mxu0 0
  %233 = vmatpush2.bf16.msra.mxu0 0
  %234 = vmatprep.subr.bf16.mxu0 0
  %235 = vmatpush2.bf16.msra.mxu0 0
  %236 = vmatprep.subr.bf16.mxu0 0
  %237 = vmatpush2.bf16.msra.mxu0 0
  %238 = vmatprep.subr.bf16.mxu0 0
  %239 = vmatpush2.bf16.msra.mxu0 0
  %240 = vmatprep.subr.bf16.mxu0 0
  %241 = vmatpush2.bf16.msra.mxu0 0
  %242 = vmatprep.mubr.bf16.mxu0 0
  %243 = vmatmul.mubr.bf16.gmra.mxu0 %v138
  %v244 = vpop.f32.mrf.mxu0
  %v245 = vadd.f32 %v160, %v244
  %v246 = vpop.f32.mrf.mxu0
  %v247 = vpop.f32.mrf.mxu0
  %v248 = vadd.f32 %v160, %v247
  %v249 = vpop.f32.mrf.mxu0
  %250 = vdwg.mxu0
  %v251 = vmul.f32 %v245, %v245
  %v252 = vmul.f32 %v248, %v248
  %253 = vadd.xlane.f32.xlu0 %v251
  %v254 = vpop.xlane.xlu0 %253
  %255 = vadd.xlane.f32.xlu0 %v252
  %v256 = vpop.xlane.xlu0 %255
  %v257 = vmax.f32 %v254, 1e-24
  %v258 = vmax.f32 %v256, 1e-24
  %v259 = vrsqrt.pop %v257
  %v260 = vrsqrt.pop %v258
  %v261 = vmul.f32 %v245, %v259
  %v262 = vmul.f32 %v248, %v260
  %263 = vst [vmem:[%s5] sm:$0xff] %v261
  %264 = vst [vmem:[%s5 + $0x8] sm:$0xff] %v262
  // Predicated region
  $region22: #{finetune_forward.15} parent=0 // pred_check
    _
  $region23: #{finetune_forward.15} parent=0 // pred_check_branch
    %266 = sbr.rel (0) target = $region25
  $region24: #{finetune_forward.15} parent=0 // pred_region
    _
  $region25: #{finetune_forward.15} parent=0 // pred_fallthru
    _
  // Predicated region
  $region26: #{finetune_forward.15} parent=0 // pred_check
    _
  $region27: #{finetune_forward.15} parent=0 // pred_check_branch
    %268 = sbr.rel (0) target = $region29
  $region28: #{finetune_forward.15} parent=0 // pred_region
    _
  $region29: #{finetune_forward.15} parent=0 // pred_fallthru
    _

// kernel: finetune_forward.11
$region0: #{finetune_forward.11}
  #allocation0 [shape = 'u32[]', space=smem, size = 0x4, offset = 0x4, fixed_abs, tag = 'smem constant byte address 0x4 - core index']
  #allocation1 [shape = 'u32[144,128]{1,0:T(1,128)}', space=vmem, size = 0x12000, scoped, tag = 'internal scratch']
  #allocation2 [shape = 'f32[32,128]{1,0:T(8,128)}', space=vmem, size = 0x4000, scoped, tag = 'scratch operand']
  %s0 = inlined_call_operand.vmem [shape: f32[32,128], index: 0, kind: input, shape index: {}]
  %s1 = inlined_call_operand.vmem [shape: bf16[128,128], index: 1, kind: input, shape index: {}]
  %s2 = inlined_call_operand.vmem [shape: f32[1,128], index: 2, kind: input, shape index: {}]
  %s3 = inlined_call_operand.vmem [shape: bf16[32,128], index: 3, kind: output, shape index: {}]
  %s4 = sld [smem:[#allocation0]]
  $region30: #{finetune_forward.11} parent=0
    _
  %s6 = ssub.s32 1, %s4
  %s7 = scalar_select 0, %s6, %s4
  // Predicated region
  $region2: #{finetune_forward.11} parent=0 // pred_check
    _
  $region3: #{finetune_forward.11} parent=0 // pred_check_branch
    %9 = sbr.rel (0) target = $region5
  $region4: #{finetune_forward.11} parent=0 // pred_region
    _
  $region5: #{finetune_forward.11} parent=0 // pred_fallthru
    _
  // Predicated region
  $region6: #{finetune_forward.11} parent=0 // pred_check
    _
  $region7: #{finetune_forward.11} parent=0 // pred_check_branch
    %11 = sbr.rel (0) target = $region9
  $region8: #{finetune_forward.11} parent=0 // pred_region
    _
  $region9: #{finetune_forward.11} parent=0 // pred_fallthru
    _
  // Predicated region
  $region10: #{finetune_forward.11} parent=0 // pred_check
    _
  $region11: #{finetune_forward.11} parent=0 // pred_check_branch
    %13 = sbr.rel (0) target = $region13
  $region12: #{finetune_forward.11} parent=0 // pred_region
    _
  $region13: #{finetune_forward.11} parent=0 // pred_fallthru
    _
  %p15 = scmp.eq.s32.totalorder 0, 0
  // Predicated region
  $region14: #{finetune_forward.11} parent=0 // pred_check
    %p16 = pneg %p15
  $region15: #{finetune_forward.11} parent=0 // pred_check_branch
    %18 = sbr.rel (%p16) target = $region17
  $region16: #{finetune_forward.11} parent=0 // pred_region
    %19 = vst [vmem:[#allocation2] sm:$0xff] 0.0
    %20 = vst [vmem:[#allocation2 + $0x8] sm:$0xff] 0.0
    %21 = vst [vmem:[#allocation2 + $0x10] sm:$0xff] 0.0
    %22 = vst [vmem:[#allocation2 + $0x18] sm:$0xff] 0.0
  $region17: #{finetune_forward.11} parent=0 // pred_fallthru
    _
  %v23 = vld [vmem:[#allocation2] sm:$0xff]
  %v24 = vld [vmem:[#allocation2 + $0x8] sm:$0xff]
  %v25 = vld [vmem:[#allocation2 + $0x10] sm:$0xff]
  %v26 = vld [vmem:[#allocation2 + $0x18] sm:$0xff]
  %v27 = vld [vmem:[%s0] sm:$0xff]
  %v28 = vld [vmem:[%s0 + $0x8] sm:$0xff]
  %v29 = vld [vmem:[%s0 + $0x10] sm:$0xff]
  %v30 = vld [vmem:[%s0 + $0x18] sm:$0xff]
  %v31 = vpack.c.bf16 %v28, %v27
  %v32 = vpack.c.bf16 %v30, %v29
  %v33 = vld [vmem:[%s1] sm:$0xf]
  %v34 = vld [vmem:[%s1 + $0x4] sm:$0xf]
  %v35 = vld [vmem:[%s1 + $0x8] sm:$0xf]
  %v36 = vld [vmem:[%s1 + $0xc] sm:$0xf]
  %v37 = vld [vmem:[%s1 + $0x10] sm:$0xf]
  %v38 = vld [vmem:[%s1 + $0x14] sm:$0xf]
  %v39 = vld [vmem:[%s1 + $0x18] sm:$0xf]
  %v40 = vld [vmem:[%s1 + $0x1c] sm:$0xf]
  %v41 = vld [vmem:[%s1 + $0x20] sm:$0xf]
  %v42 = vld [vmem:[%s1 + $0x24] sm:$0xf]
  %v43 = vld [vmem:[%s1 + $0x28] sm:$0xf]
  %v44 = vld [vmem:[%s1 + $0x2c] sm:$0xf]
  %v45 = vld [vmem:[%s1 + $0x30] sm:$0xf]
  %v46 = vld [vmem:[%s1 + $0x34] sm:$0xf]
  %v47 = vld [vmem:[%s1 + $0x38] sm:$0xf]
  %v48 = vld [vmem:[%s1 + $0x3c] sm:$0xf]
  %v65 = vunpack.c.l.b16 %v33
  %v66 = vunpack.c.l.b16 %v34
  %v67 = vunpack.c.l.b16 %v35
  %v68 = vunpack.c.l.b16 %v36
  %v69 = vunpack.c.l.b16 %v37
  %v70 = vunpack.c.l.b16 %v38
  %v71 = vunpack.c.l.b16 %v39
  %v72 = vunpack.c.l.b16 %v40
  %v73 = vunpack.c.l.b16 %v41
  %v74 = vunpack.c.l.b16 %v42
  %v75 = vunpack.c.l.b16 %v43
  %v76 = vunpack.c.l.b16 %v44
  %v77 = vunpack.c.l.b16 %v45
  %v78 = vunpack.c.l.b16 %v46
  %v79 = vunpack.c.l.b16 %v47
  %v80 = vunpack.c.l.b16 %v48
  %v81 = vpack.c.b16 %v66, %v65
  %v82 = vpack.c.b16 %v68, %v67
  %v83 = vpack.c.b16 %v70, %v69
  %v84 = vpack.c.b16 %v72, %v71
  %v85 = vpack.c.b16 %v74, %v73
  %v86 = vpack.c.b16 %v76, %v75
  %v87 = vpack.c.b16 %v78, %v77
  %v88 = vpack.c.b16 %v80, %v79
  %97 = vmatprep.subr.bf16.mxu0 0
  %98 = vmatpush1.bf16.msra.mxu0 %v88
  %99 = vmatprep.subr.bf16.mxu0 0
  %100 = vmatpush1.bf16.msra.mxu0 %v87
  %101 = vmatprep.subr.bf16.mxu0 0
  %102 = vmatpush1.bf16.msra.mxu0 %v86
  %103 = vmatprep.subr.bf16.mxu0 0
  %104 = vmatpush1.bf16.msra.mxu0 %v85
  %105 = vmatprep.subr.bf16.mxu0 0
  %106 = vmatpush1.bf16.msra.mxu0 %v84
  %107 = vmatprep.subr.bf16.mxu0 0
  %108 = vmatpush1.bf16.msra.mxu0 %v83
  %109 = vmatprep.subr.bf16.mxu0 0
  %110 = vmatpush1.bf16.msra.mxu0 %v82
  %111 = vmatprep.subr.bf16.mxu0 0
  %112 = vmatpush1.bf16.msra.mxu0 %v81
  %113 = vmatprep.subr.bf16.mxu0 0
  %114 = vmatpush2.bf16.msra.mxu0 0
  %115 = vmatprep.subr.bf16.mxu0 0
  %116 = vmatpush2.bf16.msra.mxu0 0
  %117 = vmatprep.subr.bf16.mxu0 0
  %118 = vmatpush2.bf16.msra.mxu0 0
  %119 = vmatprep.subr.bf16.mxu0 0
  %120 = vmatpush2.bf16.msra.mxu0 0
  %121 = vmatprep.subr.bf16.mxu0 0
  %122 = vmatpush2.bf16.msra.mxu0 0
  %123 = vmatprep.subr.bf16.mxu0 0
  %124 = vmatpush2.bf16.msra.mxu0 0
  %125 = vmatprep.subr.bf16.mxu0 0
  %126 = vmatpush2.bf16.msra.mxu0 0
  %127 = vmatprep.subr.bf16.mxu0 0
  %128 = vmatpush2.bf16.msra.mxu0 0
  %129 = vmatprep.mubr.bf16.mxu0 0
  %130 = vmatmul.mubr.bf16.gmra.mxu0 %v31
  %v131 = vpop.f32.mrf.mxu0
  %v132 = vadd.f32 0.0, %v131
  %v133 = vpop.f32.mrf.mxu0
  %v134 = vpop.f32.mrf.mxu0
  %v135 = vadd.f32 0.0, %v134
  %v136 = vpop.f32.mrf.mxu0
  %137 = vmatprep.mubr.bf16.mxu0 0
  %138 = vmatmul.mubr.bf16.gmra.mxu0 %v32
  %v139 = vpop.f32.mrf.mxu0
  %v140 = vadd.f32 0.0, %v139
  %v141 = vpop.f32.mrf.mxu0
  %v142 = vpop.f32.mrf.mxu0
  %v143 = vadd.f32 0.0, %v142
  %v144 = vpop.f32.mrf.mxu0
  %145 = vdwg.mxu0
  %v146 = vadd.f32 %v23, %v132
  %v147 = vadd.f32 %v24, %v135
  %v148 = vadd.f32 %v25, %v140
  %v149 = vadd.f32 %v26, %v143
  %150 = vst [vmem:[#allocation2] sm:$0xff] %v146
  %151 = vst [vmem:[#allocation2 + $0x8] sm:$0xff] %v147
  %152 = vst [vmem:[#allocation2 + $0x10] sm:$0xff] %v148
  %153 = vst [vmem:[#allocation2 + $0x18] sm:$0xff] %v149
  // Predicated region
  $region18: #{finetune_forward.11} parent=0 // pred_check
    %p154 = pneg %p15
  $region19: #{finetune_forward.11} parent=0 // pred_check_branch
    %156 = sbr.rel (%p154) target = $region21
  $region20: #{finetune_forward.11} parent=0 // pred_region
    %v157 = vld [vmem:[#allocation2] sm:$0xff]
    %v158 = vld [vmem:[#allocation2 + $0x8] sm:$0xff]
    %v159 = vld [vmem:[#allocation2 + $0x10] sm:$0xff]
    %v160 = vld [vmem:[#allocation2 + $0x18] sm:$0xff]
    %v161 = vld [vmem:[%s2] sm:$0x1]
    %v163 = vlaneseq
    %v164 = vshrl.u32 %v163, 7
    %v165 = vsub.s32 0, %v164
    %v166 = vrot.slane %v161, %v165
    %v168 = vadd.f32 %v157, %v166
    %v169 = vadd.f32 %v158, %v166
    %v170 = vadd.f32 %v159, %v166
    %v171 = vadd.f32 %v160, %v166
    %v172 = vpack.c.bf16 %v169, %v168
    %v173 = vpack.c.bf16 %v171, %v170
    %v176 = vunpack.c.l.b16 %v172
    %v177 = vunpack.c.h.b16 %v172
    %v178 = vunpack.c.l.b16 %v173
    %v179 = vunpack.c.h.b16 %v173
    %v180 = vpack.c.b16 %v176, %v176
    %v181 = vpack.c.b16 %v177, %v177
    %v182 = vpack.c.b16 %v178, %v178
    %v183 = vpack.c.b16 %v179, %v179
    %188 = vst [vmem:[%s3] sm:$0xf] %v180
    %189 = vst [vmem:[%s3 + $0x4] sm:$0xf] %v181
    %190 = vst [vmem:[%s3 + $0x8] sm:$0xf] %v182
    %191 = vst [vmem:[%s3 + $0xc] sm:$0xf] %v183
  $region21: #{finetune_forward.11} parent=0 // pred_fallthru
    _
  // Predicated region
  $region22: #{finetune_forward.11} parent=0 // pred_check
    _
  $region23: #{finetune_forward.11} parent=0 // pred_check_branch
    %193 = sbr.rel (0) target = $region25
  $region24: #{finetune_forward.11} parent=0 // pred_region
    _
  $region25: #{finetune_forward.11} parent=0 // pred_fallthru
    _
  // Predicated region
  $region26: #{finetune_forward.11} parent=0 // pred_check
    _
  $region27: #{finetune_forward.11} parent=0 // pred_check_branch
    %195 = sbr.rel (0) target = $region29
  $region28: #{finetune_forward.11} parent=0 // pred_region
    _
  $region29: #{finetune_forward.11} parent=0 // pred_fallthru
    _

// kernel: finetune_forward.18
$region0: #{finetune_forward.18}
  #allocation0 [shape = 'u32[]', space=smem, size = 0x4, offset = 0x4, fixed_abs, tag = 'smem constant byte address 0x4 - core index']
  #allocation1 [shape = 'u32[144,128]{1,0:T(1,128)}', space=vmem, size = 0x12000, scoped, tag = 'internal scratch']
  %s0 = inlined_call_operand.vmem [shape: f32[64,128], index: 0, kind: input, shape index: {}]
  %s1 = inlined_call_operand.vmem [shape: bf16[128,256], index: 1, kind: input, shape index: {}]
  %s2 = inlined_call_operand.vmem [shape: f32[1,256], index: 2, kind: input, shape index: {}]
  %s3 = inlined_call_operand.vmem [shape: bf16[64,128], index: 3, kind: output, shape index: {0}]
  %s4 = inlined_call_operand.vmem [shape: bf16[64,128], index: 4, kind: output, shape index: {1}]
  %5 = xla_tuple %s3, %s4
  %s6 = sld [smem:[#allocation0]]
  $region30: #{finetune_forward.18} parent=0
    _
  %s8 = ssub.s32 1, %s6
  %s9 = scalar_select 0, %s8, %s6
  // Predicated region
  $region2: #{finetune_forward.18} parent=0 // pred_check
    _
  $region3: #{finetune_forward.18} parent=0 // pred_check_branch
    %11 = sbr.rel (0) target = $region5
  $region4: #{finetune_forward.18} parent=0 // pred_region
    _
  $region5: #{finetune_forward.18} parent=0 // pred_fallthru
    _
  // Predicated region
  $region6: #{finetune_forward.18} parent=0 // pred_check
    _
  $region7: #{finetune_forward.18} parent=0 // pred_check_branch
    %13 = sbr.rel (0) target = $region9
  $region8: #{finetune_forward.18} parent=0 // pred_region
    _
  $region9: #{finetune_forward.18} parent=0 // pred_fallthru
    _
  // Predicated region
  $region10: #{finetune_forward.18} parent=0 // pred_check
    _
  $region11: #{finetune_forward.18} parent=0 // pred_check_branch
    %15 = sbr.rel (0) target = $region13
  $region12: #{finetune_forward.18} parent=0 // pred_region
    _
  $region13: #{finetune_forward.18} parent=0 // pred_fallthru
    _
  %v17 = vld [vmem:[%s0] sm:$0xff]
  %v18 = vld [vmem:[%s0 + $0x8] sm:$0xff]
  %v19 = vld [vmem:[%s0 + $0x10] sm:$0xff]
  %v20 = vld [vmem:[%s0 + $0x18] sm:$0xff]
  %v21 = vld [vmem:[%s0 + $0x20] sm:$0xff]
  %v22 = vld [vmem:[%s0 + $0x28] sm:$0xff]
  %v23 = vld [vmem:[%s0 + $0x30] sm:$0xff]
  %v24 = vld [vmem:[%s0 + $0x38] sm:$0xff]
  %v25 = vpack.c.bf16 %v18, %v17
  %v26 = vpack.c.bf16 %v20, %v19
  %v27 = vpack.c.bf16 %v22, %v21
  %v28 = vpack.c.bf16 %v24, %v23
  %v29 = vld [vmem:[%s1] sm:$0xff]
  %v30 = vld [vmem:[%s1 + $0x8] sm:$0xff]
  %v31 = vld [vmem:[%s1 + $0x10] sm:$0xff]
  %v32 = vld [vmem:[%s1 + $0x18] sm:$0xff]
  %v33 = vld [vmem:[%s1 + $0x20] sm:$0xff]
  %v34 = vld [vmem:[%s1 + $0x28] sm:$0xff]
  %v35 = vld [vmem:[%s1 + $0x30] sm:$0xff]
  %v36 = vld [vmem:[%s1 + $0x38] sm:$0xff]
  %v37 = vld [vmem:[%s1 + $0x40] sm:$0xff]
  %v38 = vld [vmem:[%s1 + $0x48] sm:$0xff]
  %v39 = vld [vmem:[%s1 + $0x50] sm:$0xff]
  %v40 = vld [vmem:[%s1 + $0x58] sm:$0xff]
  %v41 = vld [vmem:[%s1 + $0x60] sm:$0xff]
  %v42 = vld [vmem:[%s1 + $0x68] sm:$0xff]
  %v43 = vld [vmem:[%s1 + $0x70] sm:$0xff]
  %v44 = vld [vmem:[%s1 + $0x78] sm:$0xff]
  %v45 = vld [vmem:[%s2] sm:$0x3]
  %v47 = vlaneseq
  %v48 = vshrl.u32 %v47, 7
  %v49 = vsub.s32 0, %v48
  %v50 = vrot.slane %v45, %v49
  %v51 = vlaneseq
  %v52 = vshrl.u32 %v51, 7
  %v53 = vsub.s32 1, %v52
  %v54 = vrot.slane %v45, %v53
  %v73 = vunpack.c.l.b16 %v29
  %v74 = vunpack.c.h.b16 %v29
  %v75 = vunpack.c.l.b16 %v30
  %v76 = vunpack.c.h.b16 %v30
  %v77 = vunpack.c.l.b16 %v31
  %v78 = vunpack.c.h.b16 %v31
  %v79 = vunpack.c.l.b16 %v32
  %v80 = vunpack.c.h.b16 %v32
  %v81 = vunpack.c.l.b16 %v33
  %v82 = vunpack.c.h.b16 %v33
  %v83 = vunpack.c.l.b16 %v34
  %v84 = vunpack.c.h.b16 %v34
  %v85 = vunpack.c.l.b16 %v35
  %v86 = vunpack.c.h.b16 %v35
  %v87 = vunpack.c.l.b16 %v36
  %v88 = vunpack.c.h.b16 %v36
  %v89 = vunpack.c.l.b16 %v37
  %v90 = vunpack.c.h.b16 %v37
  %v91 = vunpack.c.l.b16 %v38
  %v92 = vunpack.c.h.b16 %v38
  %v93 = vunpack.c.l.b16 %v39
  %v94 = vunpack.c.h.b16 %v39
  %v95 = vunpack.c.l.b16 %v40
  %v96 = vunpack.c.h.b16 %v40
  %v97 = vunpack.c.l.b16 %v41
  %v98 = vunpack.c.h.b16 %v41
  %v99 = vunpack.c.l.b16 %v42
  %v100 = vunpack.c.h.b16 %v42
  %v101 = vunpack.c.l.b16 %v43
  %v102 = vunpack.c.h.b16 %v43
  %v103 = vunpack.c.l.b16 %v44
  %v104 = vunpack.c.h.b16 %v44
  %v105 = vpack.c.b16 %v75, %v73
  %v106 = vpack.c.b16 %v76, %v74
  %v107 = vpack.c.b16 %v79, %v77
  %v108 = vpack.c.b16 %v80, %v78
  %v109 = vpack.c.b16 %v83, %v81
  %v110 = vpack.c.b16 %v84, %v82
  %v111 = vpack.c.b16 %v87, %v85
  %v112 = vpack.c.b16 %v88, %v86
  %v113 = vpack.c.b16 %v91, %v89
  %v114 = vpack.c.b16 %v92, %v90
  %v115 = vpack.c.b16 %v95, %v93
  %v116 = vpack.c.b16 %v96, %v94
  %v117 = vpack.c.b16 %v99, %v97
  %v118 = vpack.c.b16 %v100, %v98
  %v119 = vpack.c.b16 %v103, %v101
  %v120 = vpack.c.b16 %v104, %v102
  %137 = vmatprep.subr.bf16.mxu0 %v120
  %138 = vmatpush1.bf16.msra.mxu0 %v119
  %139 = vmatprep.subr.bf16.mxu0 %v118
  %140 = vmatpush1.bf16.msra.mxu0 %v117
  %141 = vmatprep.subr.bf16.mxu0 %v116
  %142 = vmatpush1.bf16.msra.mxu0 %v115
  %143 = vmatprep.subr.bf16.mxu0 %v114
  %144 = vmatpush1.bf16.msra.mxu0 %v113
  %145 = vmatprep.subr.bf16.mxu0 %v112
  %146 = vmatpush1.bf16.msra.mxu0 %v111
  %147 = vmatprep.subr.bf16.mxu0 %v110
  %148 = vmatpush1.bf16.msra.mxu0 %v109
  %149 = vmatprep.subr.bf16.mxu0 %v108
  %150 = vmatpush1.bf16.msra.mxu0 %v107
  %151 = vmatprep.subr.bf16.mxu0 %v106
  %152 = vmatpush1.bf16.msra.mxu0 %v105
  %153 = vmatprep.subr.bf16.mxu0 0
  %154 = vmatpush2.bf16.msra.mxu0 0
  %155 = vmatprep.subr.bf16.mxu0 0
  %156 = vmatpush2.bf16.msra.mxu0 0
  %157 = vmatprep.subr.bf16.mxu0 0
  %158 = vmatpush2.bf16.msra.mxu0 0
  %159 = vmatprep.subr.bf16.mxu0 0
  %160 = vmatpush2.bf16.msra.mxu0 0
  %161 = vmatprep.subr.bf16.mxu0 0
  %162 = vmatpush2.bf16.msra.mxu0 0
  %163 = vmatprep.subr.bf16.mxu0 0
  %164 = vmatpush2.bf16.msra.mxu0 0
  %165 = vmatprep.subr.bf16.mxu0 0
  %166 = vmatpush2.bf16.msra.mxu0 0
  %167 = vmatprep.subr.bf16.mxu0 0
  %168 = vmatpush2.bf16.msra.mxu0 0
  %169 = vmatprep.mubr.bf16.mxu0 0
  %170 = vmatmul.mubr.bf16.gmra.mxu0 %v25
  %v171 = vpop.f32.mrf.mxu0
  %v172 = vadd.f32 %v50, %v171
  %v173 = vpop.f32.mrf.mxu0
  %v174 = vadd.f32 %v54, %v173
  %v175 = vpop.f32.mrf.mxu0
  %v176 = vadd.f32 %v50, %v175
  %v177 = vpop.f32.mrf.mxu0
  %v178 = vadd.f32 %v54, %v177
  %179 = vmatprep.mubr.bf16.mxu0 0
  %180 = vmatmul.mubr.bf16.gmra.mxu0 %v26
  %v181 = vpop.f32.mrf.mxu0
  %v182 = vadd.f32 %v50, %v181
  %v183 = vpop.f32.mrf.mxu0
  %v184 = vadd.f32 %v54, %v183
  %v185 = vpop.f32.mrf.mxu0
  %v186 = vadd.f32 %v50, %v185
  %v187 = vpop.f32.mrf.mxu0
  %v188 = vadd.f32 %v54, %v187
  %189 = vmatprep.mubr.bf16.mxu0 0
  %190 = vmatmul.mubr.bf16.gmra.mxu0 %v27
  %v191 = vpop.f32.mrf.mxu0
  %v192 = vadd.f32 %v50, %v191
  %v193 = vpop.f32.mrf.mxu0
  %v194 = vadd.f32 %v54, %v193
  %v195 = vpop.f32.mrf.mxu0
  %v196 = vadd.f32 %v50, %v195
  %v197 = vpop.f32.mrf.mxu0
  %v198 = vadd.f32 %v54, %v197
  %199 = vmatprep.mubr.bf16.mxu0 0
  %200 = vmatmul.mubr.bf16.gmra.mxu0 %v28
  %v201 = vpop.f32.mrf.mxu0
  %v202 = vadd.f32 %v50, %v201
  %v203 = vpop.f32.mrf.mxu0
  %v204 = vadd.f32 %v54, %v203
  %v205 = vpop.f32.mrf.mxu0
  %v206 = vadd.f32 %v50, %v205
  %v207 = vpop.f32.mrf.mxu0
  %v208 = vadd.f32 %v54, %v207
  %209 = vdwg.mxu0
  %v210 = vpack.c.bf16 %v176, %v172
  %v211 = vpack.c.bf16 %v186, %v182
  %v212 = vpack.c.bf16 %v196, %v192
  %v213 = vpack.c.bf16 %v206, %v202
  %v218 = vunpack.c.l.b16 %v210
  %v219 = vunpack.c.h.b16 %v210
  %v220 = vunpack.c.l.b16 %v211
  %v221 = vunpack.c.h.b16 %v211
  %v222 = vunpack.c.l.b16 %v212
  %v223 = vunpack.c.h.b16 %v212
  %v224 = vunpack.c.l.b16 %v213
  %v225 = vunpack.c.h.b16 %v213
  %v226 = vpack.c.b16 %v218, %v218
  %v227 = vpack.c.b16 %v219, %v219
  %v228 = vpack.c.b16 %v220, %v220
  %v229 = vpack.c.b16 %v221, %v221
  %v230 = vpack.c.b16 %v222, %v222
  %v231 = vpack.c.b16 %v223, %v223
  %v232 = vpack.c.b16 %v224, %v224
  %v233 = vpack.c.b16 %v225, %v225
  %242 = vst [vmem:[%s3] sm:$0xf] %v226
  %243 = vst [vmem:[%s3 + $0x4] sm:$0xf] %v227
  %244 = vst [vmem:[%s3 + $0x8] sm:$0xf] %v228
  %245 = vst [vmem:[%s3 + $0xc] sm:$0xf] %v229
  %246 = vst [vmem:[%s3 + $0x10] sm:$0xf] %v230
  %247 = vst [vmem:[%s3 + $0x14] sm:$0xf] %v231
  %248 = vst [vmem:[%s3 + $0x18] sm:$0xf] %v232
  %249 = vst [vmem:[%s3 + $0x1c] sm:$0xf] %v233
  %v250 = vpack.c.bf16 %v178, %v174
  %v251 = vpack.c.bf16 %v188, %v184
  %v252 = vpack.c.bf16 %v198, %v194
  %v253 = vpack.c.bf16 %v208, %v204
  %v258 = vunpack.c.l.b16 %v250
  %v259 = vunpack.c.h.b16 %v250
  %v260 = vunpack.c.l.b16 %v251
  %v261 = vunpack.c.h.b16 %v251
  %v262 = vunpack.c.l.b16 %v252
  %v263 = vunpack.c.h.b16 %v252
  %v264 = vunpack.c.l.b16 %v253
  %v265 = vunpack.c.h.b16 %v253
  %v266 = vpack.c.b16 %v258, %v258
  %v267 = vpack.c.b16 %v259, %v259
  %v268 = vpack.c.b16 %v260, %v260
  %v269 = vpack.c.b16 %v261, %v261
  %v270 = vpack.c.b16 %v262, %v262
  %v271 = vpack.c.b16 %v263, %v263
  %v272 = vpack.c.b16 %v264, %v264
  %v273 = vpack.c.b16 %v265, %v265
  %282 = vst [vmem:[%s4] sm:$0xf] %v266
  %283 = vst [vmem:[%s4 + $0x4] sm:$0xf] %v267
  %284 = vst [vmem:[%s4 + $0x8] sm:$0xf] %v268
  %285 = vst [vmem:[%s4 + $0xc] sm:$0xf] %v269
  %286 = vst [vmem:[%s4 + $0x10] sm:$0xf] %v270
  %287 = vst [vmem:[%s4 + $0x14] sm:$0xf] %v271
  %288 = vst [vmem:[%s4 + $0x18] sm:$0xf] %v272
  %289 = vst [vmem:[%s4 + $0x1c] sm:$0xf] %v273
  // Predicated region
  $region14: #{finetune_forward.18} parent=0 // pred_check
    _
  $region15: #{finetune_forward.18} parent=0 // pred_check_branch
    %291 = sbr.rel (0) target = $region17
  $region16: #{finetune_forward.18} parent=0 // pred_region
    _
  $region17: #{finetune_forward.18} parent=0 // pred_fallthru
    _
  // Predicated region
  $region18: #{finetune_forward.18} parent=0 // pred_check
    _
  $region19: #{finetune_forward.18} parent=0 // pred_check_branch
    %293 = sbr.rel (0) target = $region21
  $region20: #{finetune_forward.18} parent=0 // pred_region
    _
  $region21: #{finetune_forward.18} parent=0 // pred_fallthru
    _
  // Predicated region
  $region22: #{finetune_forward.18} parent=0 // pred_check
    _
  $region23: #{finetune_forward.18} parent=0 // pred_check_branch
    %295 = sbr.rel (0) target = $region25
  $region24: #{finetune_forward.18} parent=0 // pred_region
    _
  $region25: #{finetune_forward.18} parent=0 // pred_fallthru
    _
  // Predicated region
  $region26: #{finetune_forward.18} parent=0 // pred_check
    _
  $region27: #{finetune_forward.18} parent=0 // pred_check_branch
    %297 = sbr.rel (0) target = $region29
  $region28: #{finetune_forward.18} parent=0 // pred_region
    _
  $region29: #{finetune_forward.18} parent=0 // pred_fallthru
    _

// kernel: finetune_forward.12
$region0: #{finetune_forward.12}
  #allocation0 [shape = 'u32[]', space=smem, size = 0x4, offset = 0x4, fixed_abs, tag = 'smem constant byte address 0x4 - core index']
  #allocation1 [shape = 'u32[144,128]{1,0:T(1,128)}', space=vmem, size = 0x12000, scoped, tag = 'internal scratch']
  %s0 = inlined_call_operand.vmem [shape: bf16[32,128], index: 0, kind: input, shape index: {}]
  %s1 = inlined_call_operand.vmem [shape: bf16[128,128], index: 1, kind: input, shape index: {}]
  %s2 = inlined_call_operand.vmem [shape: f32[1,128], index: 2, kind: input, shape index: {}]
  %s3 = inlined_call_operand.vmem [shape: bf16[128,128], index: 3, kind: input, shape index: {}]
  %s4 = inlined_call_operand.vmem [shape: f32[1,128], index: 4, kind: input, shape index: {}]
  %s5 = inlined_call_operand.vmem [shape: f32[32,128], index: 5, kind: output, shape index: {}]
  %s6 = sld [smem:[#allocation0]]
  $region30: #{finetune_forward.12} parent=0
    _
  %s8 = ssub.s32 1, %s6
  %s9 = scalar_select 0, %s8, %s6
  // Predicated region
  $region2: #{finetune_forward.12} parent=0 // pred_check
    _
  $region3: #{finetune_forward.12} parent=0 // pred_check_branch
    %11 = sbr.rel (0) target = $region5
  $region4: #{finetune_forward.12} parent=0 // pred_region
    _
  $region5: #{finetune_forward.12} parent=0 // pred_fallthru
    _
  // Predicated region
  $region6: #{finetune_forward.12} parent=0 // pred_check
    _
  $region7: #{finetune_forward.12} parent=0 // pred_check_branch
    %13 = sbr.rel (0) target = $region9
  $region8: #{finetune_forward.12} parent=0 // pred_region
    _
  $region9: #{finetune_forward.12} parent=0 // pred_fallthru
    _
  // Predicated region
  $region10: #{finetune_forward.12} parent=0 // pred_check
    _
  $region11: #{finetune_forward.12} parent=0 // pred_check_branch
    %15 = sbr.rel (0) target = $region13
  $region12: #{finetune_forward.12} parent=0 // pred_region
    _
  $region13: #{finetune_forward.12} parent=0 // pred_fallthru
    _
  // Predicated region
  $region14: #{finetune_forward.12} parent=0 // pred_check
    _
  $region15: #{finetune_forward.12} parent=0 // pred_check_branch
    %17 = sbr.rel (0) target = $region17
  $region16: #{finetune_forward.12} parent=0 // pred_region
    _
  $region17: #{finetune_forward.12} parent=0 // pred_fallthru
    _
  // Predicated region
  $region18: #{finetune_forward.12} parent=0 // pred_check
    _
  $region19: #{finetune_forward.12} parent=0 // pred_check_branch
    %19 = sbr.rel (0) target = $region21
  $region20: #{finetune_forward.12} parent=0 // pred_region
    _
  $region21: #{finetune_forward.12} parent=0 // pred_fallthru
    _
  %v21 = vld [vmem:[%s0] sm:$0xf]
  %v22 = vld [vmem:[%s0 + $0x4] sm:$0xf]
  %v23 = vld [vmem:[%s0 + $0x8] sm:$0xf]
  %v24 = vld [vmem:[%s0 + $0xc] sm:$0xf]
  %v25 = vld [vmem:[%s1] sm:$0xf]
  %v26 = vld [vmem:[%s1 + $0x4] sm:$0xf]
  %v27 = vld [vmem:[%s1 + $0x8] sm:$0xf]
  %v28 = vld [vmem:[%s1 + $0xc] sm:$0xf]
  %v29 = vld [vmem:[%s1 + $0x10] sm:$0xf]
  %v30 = vld [vmem:[%s1 + $0x14] sm:$0xf]
  %v31 = vld [vmem:[%s1 + $0x18] sm:$0xf]
  %v32 = vld [vmem:[%s1 + $0x1c] sm:$0xf]
  %v33 = vld [vmem:[%s1 + $0x20] sm:$0xf]
  %v34 = vld [vmem:[%s1 + $0x24] sm:$0xf]
  %v35 = vld [vmem:[%s1 + $0x28] sm:$0xf]
  %v36 = vld [vmem:[%s1 + $0x2c] sm:$0xf]
  %v37 = vld [vmem:[%s1 + $0x30] sm:$0xf]
  %v38 = vld [vmem:[%s1 + $0x34] sm:$0xf]
  %v39 = vld [vmem:[%s1 + $0x38] sm:$0xf]
  %v40 = vld [vmem:[%s1 + $0x3c] sm:$0xf]
  %v41 = vld [vmem:[%s2] sm:$0x1]
  %v43 = vlaneseq
  %v44 = vshrl.u32 %v43, 7
  %v45 = vsub.s32 0, %v44
  %v46 = vrot.slane %v41, %v45
  %v52 = vunpack.c.l.b16 %v21
  %v53 = vunpack.c.l.b16 %v22
  %v54 = vunpack.c.l.b16 %v23
  %v55 = vunpack.c.l.b16 %v24
  %v56 = vpack.c.b16 %v53, %v52
  %v57 = vpack.c.b16 %v55, %v54
  %v76 = vunpack.c.l.b16 %v25
  %v77 = vunpack.c.l.b16 %v26
  %v78 = vunpack.c.l.b16 %v27
  %v79 = vunpack.c.l.b16 %v28
  %v80 = vunpack.c.l.b16 %v29
  %v81 = vunpack.c.l.b16 %v30
  %v82 = vunpack.c.l.b16 %v31
  %v83 = vunpack.c.l.b16 %v32
  %v84 = vunpack.c.l.b16 %v33
  %v85 = vunpack.c.l.b16 %v34
  %v86 = vunpack.c.l.b16 %v35
  %v87 = vunpack.c.l.b16 %v36
  %v88 = vunpack.c.l.b16 %v37
  %v89 = vunpack.c.l.b16 %v38
  %v90 = vunpack.c.l.b16 %v39
  %v91 = vunpack.c.l.b16 %v40
  %v92 = vpack.c.b16 %v77, %v76
  %v93 = vpack.c.b16 %v79, %v78
  %v94 = vpack.c.b16 %v81, %v80
  %v95 = vpack.c.b16 %v83, %v82
  %v96 = vpack.c.b16 %v85, %v84
  %v97 = vpack.c.b16 %v87, %v86
  %v98 = vpack.c.b16 %v89, %v88
  %v99 = vpack.c.b16 %v91, %v90
  %108 = vmatprep.subr.bf16.mxu0 0
  %109 = vmatpush1.bf16.msra.mxu0 %v99
  %110 = vmatprep.subr.bf16.mxu0 0
  %111 = vmatpush1.bf16.msra.mxu0 %v98
  %112 = vmatprep.subr.bf16.mxu0 0
  %113 = vmatpush1.bf16.msra.mxu0 %v97
  %114 = vmatprep.subr.bf16.mxu0 0
  %115 = vmatpush1.bf16.msra.mxu0 %v96
  %116 = vmatprep.subr.bf16.mxu0 0
  %117 = vmatpush1.bf16.msra.mxu0 %v95
  %118 = vmatprep.subr.bf16.mxu0 0
  %119 = vmatpush1.bf16.msra.mxu0 %v94
  %120 = vmatprep.subr.bf16.mxu0 0
  %121 = vmatpush1.bf16.msra.mxu0 %v93
  %122 = vmatprep.subr.bf16.mxu0 0
  %123 = vmatpush1.bf16.msra.mxu0 %v92
  %124 = vmatprep.subr.bf16.mxu0 0
  %125 = vmatpush2.bf16.msra.mxu0 0
  %126 = vmatprep.subr.bf16.mxu0 0
  %127 = vmatpush2.bf16.msra.mxu0 0
  %128 = vmatprep.subr.bf16.mxu0 0
  %129 = vmatpush2.bf16.msra.mxu0 0
  %130 = vmatprep.subr.bf16.mxu0 0
  %131 = vmatpush2.bf16.msra.mxu0 0
  %132 = vmatprep.subr.bf16.mxu0 0
  %133 = vmatpush2.bf16.msra.mxu0 0
  %134 = vmatprep.subr.bf16.mxu0 0
  %135 = vmatpush2.bf16.msra.mxu0 0
  %136 = vmatprep.subr.bf16.mxu0 0
  %137 = vmatpush2.bf16.msra.mxu0 0
  %138 = vmatprep.subr.bf16.mxu0 0
  %139 = vmatpush2.bf16.msra.mxu0 0
  %140 = vmatprep.mubr.bf16.mxu0 0
  %141 = vmatmul.mubr.bf16.gmra.mxu0 %v56
  %v142 = vpop.f32.mrf.mxu0
  %v143 = vadd.f32 %v46, %v142
  %v144 = vpop.f32.mrf.mxu0
  %v145 = vpop.f32.mrf.mxu0
  %v146 = vadd.f32 %v46, %v145
  %v147 = vpop.f32.mrf.mxu0
  %148 = vmatprep.mubr.bf16.mxu0 0
  %149 = vmatmul.mubr.bf16.gmra.mxu0 %v57
  %v150 = vpop.f32.mrf.mxu0
  %v151 = vadd.f32 %v46, %v150
  %v152 = vpop.f32.mrf.mxu0
  %v153 = vpop.f32.mrf.mxu0
  %v154 = vadd.f32 %v46, %v153
  %v155 = vpop.f32.mrf.mxu0
  %156 = vdwg.mxu0
  %v157 = vmax.f32 %v143, 0.0
  %v158 = vmax.f32 %v146, 0.0
  %v159 = vmax.f32 %v151, 0.0
  %v160 = vmax.f32 %v154, 0.0
  %v161 = vpack.c.bf16 %v158, %v157
  %v162 = vpack.c.bf16 %v160, %v159
  %v163 = vld [vmem:[%s3] sm:$0xf]
  %v164 = vld [vmem:[%s3 + $0x4] sm:$0xf]
  %v165 = vld [vmem:[%s3 + $0x8] sm:$0xf]
  %v166 = vld [vmem:[%s3 + $0xc] sm:$0xf]
  %v167 = vld [vmem:[%s3 + $0x10] sm:$0xf]
  %v168 = vld [vmem:[%s3 + $0x14] sm:$0xf]
  %v169 = vld [vmem:[%s3 + $0x18] sm:$0xf]
  %v170 = vld [vmem:[%s3 + $0x1c] sm:$0xf]
  %v171 = vld [vmem:[%s3 + $0x20] sm:$0xf]
  %v172 = vld [vmem:[%s3 + $0x24] sm:$0xf]
  %v173 = vld [vmem:[%s3 + $0x28] sm:$0xf]
  %v174 = vld [vmem:[%s3 + $0x2c] sm:$0xf]
  %v175 = vld [vmem:[%s3 + $0x30] sm:$0xf]
  %v176 = vld [vmem:[%s3 + $0x34] sm:$0xf]
  %v177 = vld [vmem:[%s3 + $0x38] sm:$0xf]
  %v178 = vld [vmem:[%s3 + $0x3c] sm:$0xf]
  %v179 = vld [vmem:[%s4] sm:$0x1]
  %v181 = vlaneseq
  %v182 = vshrl.u32 %v181, 7
  %v183 = vsub.s32 0, %v182
  %v184 = vrot.slane %v179, %v183
  %v202 = vunpack.c.l.b16 %v163
  %v203 = vunpack.c.l.b16 %v164
  %v204 = vunpack.c.l.b16 %v165
  %v205 = vunpack.c.l.b16 %v166
  %v206 = vunpack.c.l.b16 %v167
  %v207 = vunpack.c.l.b16 %v168
  %v208 = vunpack.c.l.b16 %v169
  %v209 = vunpack.c.l.b16 %v170
  %v210 = vunpack.c.l.b16 %v171
  %v211 = vunpack.c.l.b16 %v172
  %v212 = vunpack.c.l.b16 %v173
  %v213 = vunpack.c.l.b16 %v174
  %v214 = vunpack.c.l.b16 %v175
  %v215 = vunpack.c.l.b16 %v176
  %v216 = vunpack.c.l.b16 %v177
  %v217 = vunpack.c.l.b16 %v178
  %v218 = vpack.c.b16 %v203, %v202
  %v219 = vpack.c.b16 %v205, %v204
  %v220 = vpack.c.b16 %v207, %v206
  %v221 = vpack.c.b16 %v209, %v208
  %v222 = vpack.c.b16 %v211, %v210
  %v223 = vpack.c.b16 %v213, %v212
  %v224 = vpack.c.b16 %v215, %v214
  %v225 = vpack.c.b16 %v217, %v216
  %234 = vmatprep.subr.bf16.mxu0 0
  %235 = vmatpush1.bf16.msra.mxu0 %v225
  %236 = vmatprep.subr.bf16.mxu0 0
  %237 = vmatpush1.bf16.msra.mxu0 %v224
  %238 = vmatprep.subr.bf16.mxu0 0
  %239 = vmatpush1.bf16.msra.mxu0 %v223
  %240 = vmatprep.subr.bf16.mxu0 0
  %241 = vmatpush1.bf16.msra.mxu0 %v222
  %242 = vmatprep.subr.bf16.mxu0 0
  %243 = vmatpush1.bf16.msra.mxu0 %v221
  %244 = vmatprep.subr.bf16.mxu0 0
  %245 = vmatpush1.bf16.msra.mxu0 %v220
  %246 = vmatprep.subr.bf16.mxu0 0
  %247 = vmatpush1.bf16.msra.mxu0 %v219
  %248 = vmatprep.subr.bf16.mxu0 0
  %249 = vmatpush1.bf16.msra.mxu0 %v218
  %250 = vmatprep.subr.bf16.mxu0 0
  %251 = vmatpush2.bf16.msra.mxu0 0
  %252 = vmatprep.subr.bf16.mxu0 0
  %253 = vmatpush2.bf16.msra.mxu0 0
  %254 = vmatprep.subr.bf16.mxu0 0
  %255 = vmatpush2.bf16.msra.mxu0 0
  %256 = vmatprep.subr.bf16.mxu0 0
  %257 = vmatpush2.bf16.msra.mxu0 0
  %258 = vmatprep.subr.bf16.mxu0 0
  %259 = vmatpush2.bf16.msra.mxu0 0
  %260 = vmatprep.subr.bf16.mxu0 0
  %261 = vmatpush2.bf16.msra.mxu0 0
  %262 = vmatprep.subr.bf16.mxu0 0
  %263 = vmatpush2.bf16.msra.mxu0 0
  %264 = vmatprep.subr.bf16.mxu0 0
  %265 = vmatpush2.bf16.msra.mxu0 0
  %266 = vmatprep.mubr.bf16.mxu0 0
  %267 = vmatmul.mubr.bf16.gmra.mxu0 %v161
  %v268 = vpop.f32.mrf.mxu0
  %v269 = vadd.f32 %v184, %v268
  %v270 = vpop.f32.mrf.mxu0
  %v271 = vpop.f32.mrf.mxu0
  %v272 = vadd.f32 %v184, %v271
  %v273 = vpop.f32.mrf.mxu0
  %274 = vmatprep.mubr.bf16.mxu0 0
  %275 = vmatmul.mubr.bf16.gmra.mxu0 %v162
  %v276 = vpop.f32.mrf.mxu0
  %v277 = vadd.f32 %v184, %v276
  %v278 = vpop.f32.mrf.mxu0
  %v279 = vpop.f32.mrf.mxu0
  %v280 = vadd.f32 %v184, %v279
  %v281 = vpop.f32.mrf.mxu0
  %282 = vdwg.mxu0
  %v283 = vmul.f32 %v269, %v269
  %v284 = vmul.f32 %v272, %v272
  %v285 = vmul.f32 %v277, %v277
  %v286 = vmul.f32 %v280, %v280
  %287 = vadd.xlane.f32.xlu0 %v283
  %v288 = vpop.xlane.xlu0 %287
  %289 = vadd.xlane.f32.xlu0 %v284
  %v290 = vpop.xlane.xlu0 %289
  %291 = vadd.xlane.f32.xlu0 %v285
  %v292 = vpop.xlane.xlu0 %291
  %293 = vadd.xlane.f32.xlu0 %v286
  %v294 = vpop.xlane.xlu0 %293
  %v295 = vmax.f32 %v288, 1e-24
  %v296 = vmax.f32 %v290, 1e-24
  %v297 = vmax.f32 %v292, 1e-24
  %v298 = vmax.f32 %v294, 1e-24
  %v299 = vrsqrt.pop %v295
  %v300 = vrsqrt.pop %v296
  %v301 = vrsqrt.pop %v297
  %v302 = vrsqrt.pop %v298
  %v303 = vmul.f32 %v269, %v299
  %v304 = vmul.f32 %v272, %v300
  %v305 = vmul.f32 %v277, %v301
  %v306 = vmul.f32 %v280, %v302
  %307 = vst [vmem:[%s5] sm:$0xff] %v303
  %308 = vst [vmem:[%s5 + $0x8] sm:$0xff] %v304
  %309 = vst [vmem:[%s5 + $0x10] sm:$0xff] %v305
  %310 = vst [vmem:[%s5 + $0x18] sm:$0xff] %v306
  // Predicated region
  $region22: #{finetune_forward.12} parent=0 // pred_check
    _
  $region23: #{finetune_forward.12} parent=0 // pred_check_branch
    %312 = sbr.rel (0) target = $region25
  $region24: #{finetune_forward.12} parent=0 // pred_region
    _
  $region25: #{finetune_forward.12} parent=0 // pred_fallthru
    _
  // Predicated region
  $region26: #{finetune_forward.12} parent=0 // pred_check
    _
  $region27: #{finetune_forward.12} parent=0 // pred_check_branch
    %314 = sbr.rel (0) target = $region29
  $region28: #{finetune_forward.12} parent=0 // pred_region
    _
  $region29: #{finetune_forward.12} parent=0 // pred_fallthru
    _

// kernel: finetune_forward.19
$region0: #{finetune_forward.19}
  #allocation0 [shape = 'u32[]', space=smem, size = 0x4, offset = 0x4, fixed_abs, tag = 'smem constant byte address 0x4 - core index']
  #allocation1 [shape = 'u32[144,128]{1,0:T(1,128)}', space=vmem, size = 0x12000, scoped, tag = 'internal scratch']
  %s0 = inlined_call_operand.vmem [shape: bf16[2,16,128], index: 0, kind: input, shape index: {}]
  %s1 = inlined_call_operand.vmem [shape: bf16[2,32,128], index: 1, kind: input, shape index: {}]
  %s2 = inlined_call_operand.vmem [shape: bf16[2,32,128], index: 2, kind: input, shape index: {}]
  %s3 = inlined_call_operand.vmem [shape: f32[2,1,32], index: 3, kind: input, shape index: {}]
  %s4 = inlined_call_operand.vmem [shape: bf16[2,16,128], index: 4, kind: output, shape index: {}]
  %s5 = sld [smem:[#allocation0]]
  $region49: #{finetune_forward.19} parent=0
    _
  %s7 = ssub.s32 1, %s5
  %s8 = scalar_select 0, %s7, %s5
  loop: start=0, step=1, limit=4
  $region2: #{finetune_forward.19} parent=0 // loop_pre_header
    _
  $region3: #{finetune_forward.19} parent=0 // loop_header
    %s10 = sphi 0, %s14
    %p11 = scmp.ge.s32.totalorder %s10, 4
    %s17 = sphi 0, %s29
    %s18 = sphi 0, %s25
    %s19 = sphi 0, %s17
    %s20 = sphi 0, %s18
    %s21 = sphi 0, %s19
    %s22 = sphi 0, %s20
    %s34 = sphi 0, %s36
    %s37 = sphi 0, %s34
    %s38 = sphi 0, %s37
    %s54 = sphi 0, %s38
    %s60 = sphi 0, %s62
    %s63 = sphi 0, %s60
    %s64 = sphi 0, %s63
    %s80 = sphi 0, %s64
    %s86 = sphi 0, %s88
    %s89 = sphi 0, %s86
    %s90 = sphi 0, %s89
    %s106 = sphi 0, %s90
    %s112 = sphi 0, %s114
    %s115 = sphi 0, %s112
    %s116 = sphi 0, %s115
    %s132 = sphi 0, %s116
    %s140 = sphi 0, %s142
    %s143 = sphi 0, %s140
    %s144 = sphi 0, %s143
    %s160 = sphi 0, %s144
  $region4: #{finetune_forward.19} parent=0 // loop_header_branch
    %13 = sbr.rel (%p11) target = $region8
  $region5: #{finetune_forward.19} parent=0 // loop_body
    %s15 = ssub.s32 %s10, 1
    %s16 = ssub.s32 %s10, 2
    %s23 = sadd.s32 1, %s18
    %p24 = scmp.ge.s32.totalorder %s23, 1
    %s25 = scalar_select %p24, 0, %s23
    %s26 = sadd.s32 1, %s17
    %s27 = scalar_select %p24, %s26, %s17
    %p28 = scmp.ge.s32.totalorder %s27, 2
    %s29 = scalar_select %p28, 0, %s27
    %s30 = ssub.s32 %s17, %s29
    %s31 = ssub.s32 %s18, %s25
    %s32 = sor.u32 %s30, %s31
    %p33 = scmp.eq.s32.totalorder %s32, 0
    %s35 = sadd.s32 %s34, 1
    %s36 = scalar_select %p33, %s34, %s35
    %p39 = pneg %p33
    %p40 = scmp.eq.s32.totalorder %s10, 1
    %p41 = por %p39, %p40
    %p42 = scmp.ne.s32.totalorder %s34, %s37
    %p43 = scmp.eq.s32.totalorder %s10, 0
    %p44 = por %p42, %p43
    %p45 = scmp.ne.s32.totalorder %s34, %s37
    %p46 = scmp.eq.s32.totalorder %s15, 1
    %p47 = por %p45, %p46
    %p48 = scmp.ne.s32.totalorder %s37, %s38
    %p49 = scmp.eq.s32.totalorder %s15, 0
    %p50 = por %p48, %p49
    %p51 = scmp.ne.s32.totalorder %s37, %s38
    %p52 = scmp.eq.s32.totalorder %s16, 1
    %p53 = por %p51, %p52
    %p55 = scmp.ne.s32.totalorder %s38, %s54
    %p56 = scmp.eq.s32.totalorder %s16, 0
    %p57 = por %p55, %p56
    %s58 = ssub.s32 %s17, %s29
    %p59 = scmp.eq.s32.totalorder %s58, 0
    %s61 = sadd.s32 %s60, 1
    %s62 = scalar_select %p59, %s60, %s61
    %p65 = pneg %p59
    %p66 = scmp.eq.s32.totalorder %s10, 1
    %p67 = por %p65, %p66
    %p68 = scmp.ne.s32.totalorder %s60, %s63
    %p69 = scmp.eq.s32.totalorder %s10, 0
    %p70 = por %p68, %p69
    %p71 = scmp.ne.s32.totalorder %s60, %s63
    %p72 = scmp.eq.s32.totalorder %s15, 1
    %p73 = por %p71, %p72
    %p74 = scmp.ne.s32.totalorder %s63, %s64
    %p75 = scmp.eq.s32.totalorder %s15, 0
    %p76 = por %p74, %p75
    %p77 = scmp.ne.s32.totalorder %s63, %s64
    %p78 = scmp.eq.s32.totalorder %s16, 1
    %p79 = por %p77, %p78
    %p81 = scmp.ne.s32.totalorder %s64, %s80
    %p82 = scmp.eq.s32.totalorder %s16, 0
    %p83 = por %p81, %p82
    %s84 = ssub.s32 %s17, %s29
    %p85 = scmp.eq.s32.totalorder %s84, 0
    %s87 = sadd.s32 %s86, 1
    %s88 = scalar_select %p85, %s86, %s87
    %p91 = pneg %p85
    %p92 = scmp.eq.s32.totalorder %s10, 1
    %p93 = por %p91, %p92
    %p94 = scmp.ne.s32.totalorder %s86, %s89
    %p95 = scmp.eq.s32.totalorder %s10, 0
    %p96 = por %p94, %p95
    %p97 = scmp.ne.s32.totalorder %s86, %s89
    %p98 = scmp.eq.s32.totalorder %s15, 1
    %p99 = por %p97, %p98
    %p100 = scmp.ne.s32.totalorder %s89, %s90
    %p101 = scmp.eq.s32.totalorder %s15, 0
    %p102 = por %p100, %p101
    %p103 = scmp.ne.s32.totalorder %s89, %s90
    %p104 = scmp.eq.s32.totalorder %s16, 1
    %p105 = por %p103, %p104
    %p107 = scmp.ne.s32.totalorder %s90, %s106
    %p108 = scmp.eq.s32.totalorder %s16, 0
    %p109 = por %p107, %p108
    %s110 = ssub.s32 %s17, %s29
    %p111 = scmp.eq.s32.totalorder %s110, 0
    %s113 = sadd.s32 %s112, 1
    %s114 = scalar_select %p111, %s112, %s113
    %p117 = pneg %p111
    %p118 = scmp.eq.s32.totalorder %s10, 1
    %p119 = por %p117, %p118
    %p120 = scmp.ne.s32.totalorder %s112, %s115
    %p121 = scmp.eq.s32.totalorder %s10, 0
    %p122 = por %p120, %p121
    %p123 = scmp.ne.s32.totalorder %s112, %s115
    %p124 = scmp.eq.s32.totalorder %s15, 1
    %p125 = por %p123, %p124
    %p126 = scmp.ne.s32.totalorder %s115, %s116
    %p127 = scmp.eq.s32.totalorder %s15, 0
    %p128 = por %p126, %p127
    %p129 = scmp.ne.s32.totalorder %s115, %s116
    %p130 = scmp.eq.s32.totalorder %s16, 1
    %p131 = por %p129, %p130
    %p133 = scmp.ne.s32.totalorder %s116, %s132
    %p134 = scmp.eq.s32.totalorder %s16, 0
    %p135 = por %p133, %p134
    %s136 = ssub.s32 %s17, %s29
    %s137 = ssub.s32 %s18, %s25
    %s138 = sor.u32 %s136, %s137
    %p139 = scmp.eq.s32.totalorder %s138, 0
    %s141 = sadd.s32 %s140, 1
    %s142 = scalar_select %p139, %s140, %s141
    %p145 = pneg %p139
    %p146 = scmp.eq.s32.totalorder %s10, 1
    %p147 = por %p145, %p146
    %p148 = scmp.ne.s32.totalorder %s140, %s143
    %p149 = scmp.eq.s32.totalorder %s10, 0
    %p150 = por %p148, %p149
    %p151 = scmp.ne.s32.totalorder %s140, %s143
    %p152 = scmp.eq.s32.totalorder %s15, 1
    %p153 = por %p151, %p152
    %p154 = scmp.ne.s32.totalorder %s143, %s144
    %p155 = scmp.eq.s32.totalorder %s15, 0
    %p156 = por %p154, %p155
    %p157 = scmp.ne.s32.totalorder %s143, %s144
    %p158 = scmp.eq.s32.totalorder %s16, 1
    %p159 = por %p157, %p158
    %p161 = scmp.ne.s32.totalorder %s144, %s160
    %p162 = scmp.eq.s32.totalorder %s16, 0
    %p163 = por %p161, %p162
    %p164 = scmp.le.s32.totalorder 1, %s10
    %p165 = scmp.lt.s32.totalorder %s10, 3
    %p166 = pnand %p164, %p165
    %p167 = pneg %p166
    // Predicated region
    $region9: #{finetune_forward.19} parent=5 // pred_check
      _
    $region10: #{finetune_forward.19} parent=5 // pred_check_branch
      %169 = sbr.rel (%p166) target = $region12
    $region11: #{finetune_forward.19} parent=5 // pred_region
      %s170 = ssub.s32 %s10, 1
    $region12: #{finetune_forward.19} parent=5 // pred_fallthru
      _
    %p171 = scmp.lt.s32.totalorder %s10, 2
    // Predicated region
    $region13: #{finetune_forward.19} parent=5 // pred_check
      %p172 = pneg %p171
    $region14: #{finetune_forward.19} parent=5 // pred_check_branch
      %174 = sbr.rel (%p172) target = $region16
    $region15: #{finetune_forward.19} parent=5 // pred_region
      // Predicated region
      $region17: #{finetune_forward.19} parent=15 // pred_check
        %p175 = pneg %p44
      $region18: #{finetune_forward.19} parent=15 // pred_check_branch
        %177 = sbr.rel (%p175) target = $region20
      $region19: #{finetune_forward.19} parent=15 // pred_region
        %s178 = smul.u32 2, %s18
        %p179 = scmp.lt.s32.totalorder %s17, 1
        %s180 = scalar_select %p179, %s17, 1
        %p181 = scmp.lt.s32.totalorder %s178, 1
        %s182 = scalar_select %p181, %s178, 1
        %s183 = smul.addr %s180, 2
        %s184 = sadd.s32 %s182, %s183
        %s185 = smul.addr %s184, 4
        %s186 = scalar_lea.vmem %s0, %s185
        %s187 = smul.u32 2, %s18
      $region20: #{finetune_forward.19} parent=15 // pred_fallthru
        _
      // Predicated region
      $region21: #{finetune_forward.19} parent=15 // pred_check
        %p188 = pneg %p70
      $region22: #{finetune_forward.19} parent=15 // pred_check_branch
        %190 = sbr.rel (%p188) target = $region24
      $region23: #{finetune_forward.19} parent=15 // pred_region
        %p191 = scmp.lt.s32.totalorder %s17, 1
        %s192 = scalar_select %p191, %s17, 1
        %s193 = smul.addr %s192, 4
        %s194 = smul.addr %s193, 4
        %s195 = scalar_lea.vmem %s1, %s194
      $region24: #{finetune_forward.19} parent=15 // pred_fallthru
        _
      // Predicated region
      $region25: #{finetune_forward.19} parent=15 // pred_check
        %p196 = pneg %p96
      $region26: #{finetune_forward.19} parent=15 // pred_check_branch
        %198 = sbr.rel (%p196) target = $region28
      $region27: #{finetune_forward.19} parent=15 // pred_region
        %p199 = scmp.lt.s32.totalorder %s17, 1
        %s200 = scalar_select %p199, %s17, 1
        %s201 = smul.addr %s200, 4
        %s202 = smul.addr %s201, 4
        %s203 = scalar_lea.vmem %s2, %s202
      $region28: #{finetune_forward.19} parent=15 // pred_fallthru
        _
      // Predicated region
      $region29: #{finetune_forward.19} parent=15 // pred_check
        %p204 = pneg %p122
      $region30: #{finetune_forward.19} parent=15 // pred_check_branch
        %206 = sbr.rel (%p204) target = $region32
      $region31: #{finetune_forward.19} parent=15 // pred_region
        %p207 = scmp.lt.s32.totalorder %s17, 1
        %s208 = scalar_select %p207, %s17, 1
        %s209 = scalar_lea.vmem %s3, %s208
      $region32: #{finetune_forward.19} parent=15 // pred_fallthru
        _
    $region16: #{finetune_forward.19} parent=5 // pred_fallthru
      _
    %p210 = scmp.le.s32.totalorder 1, %s10
    %p211 = scmp.lt.s32.totalorder %s10, 3
    %p212 = pnand %p210, %p211
    %p213 = pneg %p212
    // Predicated region
    $region33: #{finetune_forward.19} parent=5 // pred_check
      _
    $region34: #{finetune_forward.19} parent=5 // pred_check_branch
      %215 = sbr.rel (%p212) target = $region36
    $region35: #{finetune_forward.19} parent=5 // pred_region
      %s216 = ssub.s32 %s10, 1
      %s217 = smul.u32 2, %s20
      %p218 = scmp.lt.s32.totalorder %s19, 1
      %s219 = scalar_select %p218, %s19, 1
      %p220 = scmp.lt.s32.totalorder %s217, 1
      %s221 = scalar_select %p220, %s217, 1
      %s222 = smul.addr %s219, 2
      %s223 = sadd.s32 %s221, %s222
      %s224 = smul.addr %s223, 4
      %s225 = scalar_lea.vmem %s0, %s224
      %p226 = pneg %p50
      %p227 = pneg %p47
      %p228 = scmp.lt.s32.totalorder %s19, 1
      %s229 = scalar_select %p228, %s19, 1
      %s230 = smul.addr %s229, 4
      %s231 = smul.addr %s230, 4
      %s232 = scalar_lea.vmem %s1, %s231
      %p233 = pneg %p76
      %p234 = pneg %p73
      %p235 = scmp.lt.s32.totalorder %s19, 1
      %s236 = scalar_select %p235, %s19, 1
      %s237 = smul.addr %s236, 4
      %s238 = smul.addr %s237, 4
      %s239 = scalar_lea.vmem %s2, %s238
      %p240 = pneg %p102
      %p241 = pneg %p99
      %p242 = scmp.lt.s32.totalorder %s19, 1
      %s243 = scalar_select %p242, %s19, 1
      %s244 = scalar_lea.vmem %s3, %s243
      %p245 = pneg %p128
      %p246 = pneg %p125
      %p247 = pneg %p156
      %p248 = pneg %p153
      %s249 = smul.u32 2, %s20
      %p250 = scmp.lt.s32.totalorder %s19, 1
      %s251 = scalar_select %p250, %s19, 1
      %p252 = scmp.lt.s32.totalorder %s249, 1
      %s253 = scalar_select %p252, %s249, 1
      %s254 = smul.addr %s251, 2
      %s255 = sadd.s32 %s253, %s254
      %s256 = smul.addr %s255, 4
      %s257 = scalar_lea.vmem %s4, %s256
      %s258 = smul.u32 2, %s20
      %p259 = scmp.lt.s32.totalorder %s19, 1
      %s260 = scalar_select %p259, %s19, 1
      %p261 = scmp.lt.s32.totalorder %s258, 1
      %s262 = scalar_select %p261, %s258, 1
      %s263 = smul.addr %s260, 2
      %s264 = sadd.s32 %s262, %s263
      %s265 = smul.addr %s264, 4
      %s266 = scalar_lea.vmem %s0, %s265
      %s267 = smul.u32 2, %s20
      %p268 = scmp.lt.s32.totalorder %s19, 1
      %s269 = scalar_select %p268, %s19, 1
      %s270 = smul.addr %s269, 4
      %s271 = smul.addr %s270, 4
      %s272 = scalar_lea.vmem %s1, %s271
      %p273 = scmp.lt.s32.totalorder %s19, 1
      %s274 = scalar_select %p273, %s19, 1
      %s275 = smul.addr %s274, 4
      %s276 = smul.addr %s275, 4
      %s277 = scalar_lea.vmem %s2, %s276
      %p278 = scmp.lt.s32.totalorder %s19, 1
      %s279 = scalar_select %p278, %s19, 1
      %s280 = scalar_lea.vmem %s3, %s279
      %s281 = smul.u32 2, %s20
      %p282 = scmp.lt.s32.totalorder %s19, 1
      %s283 = scalar_select %p282, %s19, 1
      %p284 = scmp.lt.s32.totalorder %s281, 1
      %s285 = scalar_select %p284, %s281, 1
      %s286 = smul.addr %s283, 2
      %s287 = sadd.s32 %s285, %s286
      %s288 = smul.addr %s287, 4
      %s289 = scalar_lea.vmem %s4, %s288
      %s290 = smul.u32 2, %s20
      %v292 = vld [vmem:[%s266] sm:$0xf]
      %v293 = vld [vmem:[%s266 + $0x4] sm:$0xf]
      %v294 = vld [vmem:[%s272] sm:$0xf]
      %v295 = vld [vmem:[%s272 + $0x4] sm:$0xf]
      %v296 = vld [vmem:[%s272 + $0x8] sm:$0xf]
      %v297 = vld [vmem:[%s272 + $0xc] sm:$0xf]
      %v298 = vld [vmem:[%s277] sm:$0xf]
      %v299 = vld [vmem:[%s277 + $0x4] sm:$0xf]
      %v300 = vld [vmem:[%s277 + $0x8] sm:$0xf]
      %v301 = vld [vmem:[%s277 + $0xc] sm:$0xf]
      %v304 = vunpack.c.l.b16 %v292
      %v305 = vunpack.c.l.b16 %v293
      %v306 = vpack.c.b16 %v305, %v304
      %v312 = vunpack.c.l.b16 %v294
      %v313 = vunpack.c.l.b16 %v295
      %v314 = vunpack.c.l.b16 %v296
      %v315 = vunpack.c.l.b16 %v297
      %v316 = vpack.c.b16 %v313, %v312
      %v317 = vpack.c.b16 %v315, %v314
      %320 = vmatprep.subr.bf16.mxu0 0
      %321 = vmatpush1.bf16.xpose.msra.mxu0 0
      %322 = vmatprep.subr.bf16.mxu0 0
      %323 = vmatpush1.bf16.xpose.msra.mxu0 0
      %324 = vmatprep.subr.bf16.mxu0 0
      %325 = vmatpush1.bf16.xpose.msra.mxu0 0
      %326 = vmatprep.subr.bf16.mxu0 0
      %327 = vmatpush1.bf16.xpose.msra.mxu0 0
      %328 = vmatprep.subr.bf16.mxu0 0
      %329 = vmatpush1.bf16.xpose.msra.mxu0 0
      %330 = vmatprep.subr.bf16.mxu0 0
      %331 = vmatpush1.bf16.xpose.msra.mxu0 0
      %332 = vmatprep.subr.bf16.mxu0 0
      %333 = vmatpush1.bf16.xpose.msra.mxu0 %v317
      %334 = vmatprep.subr.bf16.mxu0 0
      %335 = vmatpush1.bf16.xpose.msra.mxu0 %v316
      %336 = vmatprep.subr.bf16.mxu0 0
      %337 = vmatpush2.bf16.xpose.msra.mxu0 0
      %338 = vmatprep.subr.bf16.mxu0 0
      %339 = vmatpush2.bf16.xpose.msra.mxu0 0
      %340 = vmatprep.subr.bf16.mxu0 0
      %341 = vmatpush2.bf16.xpose.msra.mxu0 0
      %342 = vmatprep.subr.bf16.mxu0 0
      %343 = vmatpush2.bf16.xpose.msra.mxu0 0
      %344 = vmatprep.subr.bf16.mxu0 0
      %345 = vmatpush2.bf16.xpose.msra.mxu0 0
      %346 = vmatprep.subr.bf16.mxu0 0
      %347 = vmatpush2.bf16.xpose.msra.mxu0 0
      %348 = vmatprep.subr.bf16.mxu0 0
      %349 = vmatpush2.bf16.xpose.msra.mxu0 0
      %350 = vmatprep.subr.bf16.mxu0 0
      %351 = vmatpush2.bf16.xpose.msra.mxu0 0
      %352 = vmatprep.mubr.bf16.mxu0 0
      %353 = vmatmul.mubr.bf16.gmra.mxu0 %v306
      %v354 = vpop.f32.mrf.mxu0
      %v355 = vadd.f32 0.0, %v354
      %v356 = vpop.f32.mrf.mxu0
      %v357 = vpop.f32.mrf.mxu0
      %v358 = vadd.f32 0.0, %v357
      %v359 = vpop.f32.mrf.mxu0
      %360 = vdwg.mxu0
      %v361 = vmul.f32 %v355, 0.088388346
      %v362 = vmul.f32 %v358, 0.088388346
      %v363 = vld [vmem:[%s280] sm:$0x1]
      %v365 = vlaneseq
      %v366 = vshrl.u32 %v365, 7
      %v367 = vsub.s32 0, %v366
      %v368 = vrot.slane %v363, %v367
      %v370 = vadd.f32 %v361, %v368
      %v371 = vadd.f32 %v362, %v368
      %vm372 = vcmask 261120
      %v373 = vsel %vm372, %v370, -inf
      %374 = vmax.xlane.f32.xlu0 %v373
      %v375 = vpop.xlane.xlu0 %374
      %v376 = vsel %vm372, %v371, -inf
      %377 = vmax.xlane.f32.xlu0 %v376
      %v378 = vpop.xlane.xlu0 %377
      %v379 = vsub.f32 %v370, %v375
      %v380 = vsub.f32 %v371, %v378
      %v381 = vmul.f32 %v379, 1.442695
      %v382 = vpow.pop %v381
      %v383 = vmul.f32 %v380, 1.442695
      %v384 = vpow.pop %v383
      %v385 = vsel %vm372, %v382, 0.0
      %386 = vadd.xlane.f32.xlu0 %v385
      %v387 = vpop.xlane.xlu0 %386
      %v388 = vsel %vm372, %v384, 0.0
      %389 = vadd.xlane.f32.xlu0 %v388
      %v390 = vpop.xlane.xlu0 %389
      %v391 = vrcp.pop %v387
      %v392 = vrcp.pop %v390
      %v393 = vmul.f32 %v382, %v391
      %v394 = vmul.f32 %v384, %v392
      %v395 = vpack.c.bf16 %v394, %v393
      %v400 = vunpack.c.l.b16 %v298
      %v401 = vunpack.c.l.b16 %v299
      %v402 = vunpack.c.l.b16 %v300
      %v403 = vunpack.c.l.b16 %v301
      %v404 = vpack.c.b16 %v401, %v400
      %v405 = vpack.c.b16 %v403, %v402
      %v409 = vsel %vm372, %v395, 0
      %411 = vmatprep.subr.bf16.mxu0 0
      %412 = vmatpush1.bf16.msra.mxu0 0
      %413 = vmatprep.subr.bf16.mxu0 0
      %414 = vmatpush1.bf16.msra.mxu0 0
      %415 = vmatprep.subr.bf16.mxu0 0
      %416 = vmatpush1.bf16.msra.mxu0 0
      %417 = vmatprep.subr.bf16.mxu0 0
      %418 = vmatpush1.bf16.msra.mxu0 0
      %419 = vmatprep.subr.bf16.mxu0 0
      %420 = vmatpush1.bf16.msra.mxu0 0
      %421 = vmatprep.subr.bf16.mxu0 0
      %422 = vmatpush1.bf16.msra.mxu0 0
      %423 = vmatprep.subr.bf16.mxu0 0
      %424 = vmatpush1.bf16.msra.mxu0 %v405
      %425 = vmatprep.subr.bf16.mxu0 0
      %426 = vmatpush1.bf16.msra.mxu0 %v404
      %427 = vmatprep.subr.bf16.mxu0 0
      %428 = vmatpush2.bf16.msra.mxu0 0
      %429 = vmatprep.subr.bf16.mxu0 0
      %430 = vmatpush2.bf16.msra.mxu0 0
      %431 = vmatprep.subr.bf16.mxu0 0
      %432 = vmatpush2.bf16.msra.mxu0 0
      %433 = vmatprep.subr.bf16.mxu0 0
      %434 = vmatpush2.bf16.msra.mxu0 0
      %435 = vmatprep.subr.bf16.mxu0 0
      %436 = vmatpush2.bf16.msra.mxu0 0
      %437 = vmatprep.subr.bf16.mxu0 0
      %438 = vmatpush2.bf16.msra.mxu0 0
      %439 = vmatprep.subr.bf16.mxu0 0
      %440 = vmatpush2.bf16.msra.mxu0 0
      %441 = vmatprep.subr.bf16.mxu0 0
      %442 = vmatpush2.bf16.msra.mxu0 0
      %443 = vmatprep.mubr.bf16.mxu0 0
      %444 = vmatmul.mubr.bf16.gmra.mxu0 %v409
      %v445 = vpop.f32.mrf.mxu0
      %v446 = vadd.f32 0.0, %v445
      %v447 = vpop.f32.mrf.mxu0
      %v448 = vpop.f32.mrf.mxu0
      %v449 = vadd.f32 0.0, %v448
      %v450 = vpop.f32.mrf.mxu0
      %451 = vdwg.mxu0
      %v452 = vpack.c.bf16 %v449, %v446
      %v454 = vunpack.c.l.b16 %v452
      %v455 = vunpack.c.h.b16 %v452
      %v456 = vpack.c.b16 %v454, %v454
      %v457 = vpack.c.b16 %v455, %v455
      %460 = vst [vmem:[%s289] sm:$0xf] %v456
      %461 = vst [vmem:[%s289 + $0x4] sm:$0xf] %v457
      %s462 = smul.u32 2, %s20
      %p463 = scmp.lt.s32.totalorder %s19, 1
      %s464 = scalar_select %p463, %s19, 1
      %p465 = scmp.lt.s32.totalorder %s462, 1
      %s466 = scalar_select %p465, %s462, 1
      %s467 = smul.addr %s464, 2
      %s468 = sadd.s32 %s466, %s467
      %s469 = smul.addr %s468, 4
      %s470 = scalar_lea.vmem %s4, %s469
      // Predicated region
      $region37: #{finetune_forward.19} parent=35 // pred_check
        %p471 = pneg %p153
      $region38: #{finetune_forward.19} parent=35 // pred_check_branch
        %473 = sbr.rel (%p471) target = $region40
      $region39: #{finetune_forward.19} parent=35 // pred_region
        %s474 = smul.u32 2, %s20
      $region40: #{finetune_forward.19} parent=35 // pred_fallthru
        _
    $region36: #{finetune_forward.19} parent=5 // pred_fallthru
      _
    %p475 = scmp.le.s32.totalorder 2, %s10
    // Predicated region
    $region41: #{finetune_forward.19} parent=5 // pred_check
      %p476 = pneg %p475
    $region42: #{finetune_forward.19} parent=5 // pred_check_branch
      %478 = sbr.rel (%p476) target = $region44
    $region43: #{finetune_forward.19} parent=5 // pred_region
      %s479 = ssub.s32 %s10, 2
      // Predicated region
      $region45: #{finetune_forward.19} parent=43 // pred_check
        %p480 = pneg %p159
      $region46: #{finetune_forward.19} parent=43 // pred_check_branch
        %482 = sbr.rel (%p480) target = $region48
      $region47: #{finetune_forward.19} parent=43 // pred_region
        %s483 = smul.u32 2, %s22
        %p484 = scmp.lt.s32.totalorder %s21, 1
        %s485 = scalar_select %p484, %s21, 1
        %p486 = scmp.lt.s32.totalorder %s483, 1
        %s487 = scalar_select %p486, %s483, 1
        %s488 = smul.addr %s485, 2
        %s489 = sadd.s32 %s487, %s488
        %s490 = smul.addr %s489, 4
        %s491 = scalar_lea.vmem %s4, %s490
      $region48: #{finetune_forward.19} parent=43 // pred_fallthru
        _
    $region44: #{finetune_forward.19} parent=5 // pred_fallthru
      _
  $region6: #{finetune_forward.19} parent=0 // loop_footer
    %s14 = sadd.s32 1, %s10
  $region7: #{finetune_forward.19} parent=0 // loop_footer_branch
    %9 = sbr.rel target = $region3
  $region8: #{finetune_forward.19} parent=0 // loop_exit
    _

// kernel: finetune_forward.20
$region0: #{finetune_forward.20}
  #allocation0 [shape = 'u32[]', space=smem, size = 0x4, offset = 0x4, fixed_abs, tag = 'smem constant byte address 0x4 - core index']
  #allocation1 [shape = 'u32[144,128]{1,0:T(1,128)}', space=vmem, size = 0x12000, scoped, tag = 'internal scratch']
  #allocation2 [shape = 'f32[32,128]{1,0:T(8,128)}', space=vmem, size = 0x4000, scoped, tag = 'scratch operand']
  %s0 = inlined_call_operand.vmem [shape: bf16[32,128], index: 0, kind: input, shape index: {}]
  %s1 = inlined_call_operand.vmem [shape: bf16[128,128], index: 1, kind: input, shape index: {}]
  %s2 = inlined_call_operand.vmem [shape: f32[1,128], index: 2, kind: input, shape index: {}]
  %s3 = inlined_call_operand.vmem [shape: f32[32,128], index: 3, kind: input, shape index: {}]
  %s4 = inlined_call_operand.vmem [shape: f32[32,128], index: 4, kind: output, shape index: {}]
  %s5 = sld [smem:[#allocation0]]
  $region34: #{finetune_forward.20} parent=0
    _
  %s7 = ssub.s32 1, %s5
  %s8 = scalar_select 0, %s7, %s5
  // Predicated region
  $region2: #{finetune_forward.20} parent=0 // pred_check
    _
  $region3: #{finetune_forward.20} parent=0 // pred_check_branch
    %10 = sbr.rel (0) target = $region5
  $region4: #{finetune_forward.20} parent=0 // pred_region
    _
  $region5: #{finetune_forward.20} parent=0 // pred_fallthru
    _
  // Predicated region
  $region6: #{finetune_forward.20} parent=0 // pred_check
    _
  $region7: #{finetune_forward.20} parent=0 // pred_check_branch
    %12 = sbr.rel (0) target = $region9
  $region8: #{finetune_forward.20} parent=0 // pred_region
    _
  $region9: #{finetune_forward.20} parent=0 // pred_fallthru
    _
  // Predicated region
  $region10: #{finetune_forward.20} parent=0 // pred_check
    _
  $region11: #{finetune_forward.20} parent=0 // pred_check_branch
    %14 = sbr.rel (0) target = $region13
  $region12: #{finetune_forward.20} parent=0 // pred_region
    _
  $region13: #{finetune_forward.20} parent=0 // pred_fallthru
    _
  // Predicated region
  $region14: #{finetune_forward.20} parent=0 // pred_check
    _
  $region15: #{finetune_forward.20} parent=0 // pred_check_branch
    %16 = sbr.rel (0) target = $region17
  $region16: #{finetune_forward.20} parent=0 // pred_region
    _
  $region17: #{finetune_forward.20} parent=0 // pred_fallthru
    _
  %p18 = scmp.eq.s32.totalorder 0, 0
  // Predicated region
  $region18: #{finetune_forward.20} parent=0 // pred_check
    %p19 = pneg %p18
  $region19: #{finetune_forward.20} parent=0 // pred_check_branch
    %21 = sbr.rel (%p19) target = $region21
  $region20: #{finetune_forward.20} parent=0 // pred_region
    %22 = vst [vmem:[#allocation2] sm:$0xff] 0.0
    %23 = vst [vmem:[#allocation2 + $0x8] sm:$0xff] 0.0
    %24 = vst [vmem:[#allocation2 + $0x10] sm:$0xff] 0.0
    %25 = vst [vmem:[#allocation2 + $0x18] sm:$0xff] 0.0
  $region21: #{finetune_forward.20} parent=0 // pred_fallthru
    _
  %v26 = vld [vmem:[#allocation2] sm:$0xff]
  %v27 = vld [vmem:[#allocation2 + $0x8] sm:$0xff]
  %v28 = vld [vmem:[#allocation2 + $0x10] sm:$0xff]
  %v29 = vld [vmem:[#allocation2 + $0x18] sm:$0xff]
  %v30 = vld [vmem:[%s0] sm:$0xf]
  %v31 = vld [vmem:[%s0 + $0x4] sm:$0xf]
  %v32 = vld [vmem:[%s0 + $0x8] sm:$0xf]
  %v33 = vld [vmem:[%s0 + $0xc] sm:$0xf]
  %v34 = vld [vmem:[%s1] sm:$0xf]
  %v35 = vld [vmem:[%s1 + $0x4] sm:$0xf]
  %v36 = vld [vmem:[%s1 + $0x8] sm:$0xf]
  %v37 = vld [vmem:[%s1 + $0xc] sm:$0xf]
  %v38 = vld [vmem:[%s1 + $0x10] sm:$0xf]
  %v39 = vld [vmem:[%s1 + $0x14] sm:$0xf]
  %v40 = vld [vmem:[%s1 + $0x18] sm:$0xf]
  %v41 = vld [vmem:[%s1 + $0x1c] sm:$0xf]
  %v42 = vld [vmem:[%s1 + $0x20] sm:$0xf]
  %v43 = vld [vmem:[%s1 + $0x24] sm:$0xf]
  %v44 = vld [vmem:[%s1 + $0x28] sm:$0xf]
  %v45 = vld [vmem:[%s1 + $0x2c] sm:$0xf]
  %v46 = vld [vmem:[%s1 + $0x30] sm:$0xf]
  %v47 = vld [vmem:[%s1 + $0x34] sm:$0xf]
  %v48 = vld [vmem:[%s1 + $0x38] sm:$0xf]
  %v49 = vld [vmem:[%s1 + $0x3c] sm:$0xf]
  %v54 = vunpack.c.l.b16 %v30
  %v55 = vunpack.c.l.b16 %v31
  %v56 = vunpack.c.l.b16 %v32
  %v57 = vunpack.c.l.b16 %v33
  %v58 = vpack.c.b16 %v55, %v54
  %v59 = vpack.c.b16 %v57, %v56
  %v78 = vunpack.c.l.b16 %v34
  %v79 = vunpack.c.l.b16 %v35
  %v80 = vunpack.c.l.b16 %v36
  %v81 = vunpack.c.l.b16 %v37
  %v82 = vunpack.c.l.b16 %v38
  %v83 = vunpack.c.l.b16 %v39
  %v84 = vunpack.c.l.b16 %v40
  %v85 = vunpack.c.l.b16 %v41
  %v86 = vunpack.c.l.b16 %v42
  %v87 = vunpack.c.l.b16 %v43
  %v88 = vunpack.c.l.b16 %v44
  %v89 = vunpack.c.l.b16 %v45
  %v90 = vunpack.c.l.b16 %v46
  %v91 = vunpack.c.l.b16 %v47
  %v92 = vunpack.c.l.b16 %v48
  %v93 = vunpack.c.l.b16 %v49
  %v94 = vpack.c.b16 %v79, %v78
  %v95 = vpack.c.b16 %v81, %v80
  %v96 = vpack.c.b16 %v83, %v82
  %v97 = vpack.c.b16 %v85, %v84
  %v98 = vpack.c.b16 %v87, %v86
  %v99 = vpack.c.b16 %v89, %v88
  %v100 = vpack.c.b16 %v91, %v90
  %v101 = vpack.c.b16 %v93, %v92
  %110 = vmatprep.subr.bf16.mxu0 0
  %111 = vmatpush1.bf16.msra.mxu0 %v101
  %112 = vmatprep.subr.bf16.mxu0 0
  %113 = vmatpush1.bf16.msra.mxu0 %v100
  %114 = vmatprep.subr.bf16.mxu0 0
  %115 = vmatpush1.bf16.msra.mxu0 %v99
  %116 = vmatprep.subr.bf16.mxu0 0
  %117 = vmatpush1.bf16.msra.mxu0 %v98
  %118 = vmatprep.subr.bf16.mxu0 0
  %119 = vmatpush1.bf16.msra.mxu0 %v97
  %120 = vmatprep.subr.bf16.mxu0 0
  %121 = vmatpush1.bf16.msra.mxu0 %v96
  %122 = vmatprep.subr.bf16.mxu0 0
  %123 = vmatpush1.bf16.msra.mxu0 %v95
  %124 = vmatprep.subr.bf16.mxu0 0
  %125 = vmatpush1.bf16.msra.mxu0 %v94
  %126 = vmatprep.subr.bf16.mxu0 0
  %127 = vmatpush2.bf16.msra.mxu0 0
  %128 = vmatprep.subr.bf16.mxu0 0
  %129 = vmatpush2.bf16.msra.mxu0 0
  %130 = vmatprep.subr.bf16.mxu0 0
  %131 = vmatpush2.bf16.msra.mxu0 0
  %132 = vmatprep.subr.bf16.mxu0 0
  %133 = vmatpush2.bf16.msra.mxu0 0
  %134 = vmatprep.subr.bf16.mxu0 0
  %135 = vmatpush2.bf16.msra.mxu0 0
  %136 = vmatprep.subr.bf16.mxu0 0
  %137 = vmatpush2.bf16.msra.mxu0 0
  %138 = vmatprep.subr.bf16.mxu0 0
  %139 = vmatpush2.bf16.msra.mxu0 0
  %140 = vmatprep.subr.bf16.mxu0 0
  %141 = vmatpush2.bf16.msra.mxu0 0
  %142 = vmatprep.mubr.bf16.mxu0 0
  %143 = vmatmul.mubr.bf16.gmra.mxu0 %v58
  %v144 = vpop.f32.mrf.mxu0
  %v145 = vadd.f32 0.0, %v144
  %v146 = vpop.f32.mrf.mxu0
  %v147 = vpop.f32.mrf.mxu0
  %v148 = vadd.f32 0.0, %v147
  %v149 = vpop.f32.mrf.mxu0
  %150 = vmatprep.mubr.bf16.mxu0 0
  %151 = vmatmul.mubr.bf16.gmra.mxu0 %v59
  %v152 = vpop.f32.mrf.mxu0
  %v153 = vadd.f32 0.0, %v152
  %v154 = vpop.f32.mrf.mxu0
  %v155 = vpop.f32.mrf.mxu0
  %v156 = vadd.f32 0.0, %v155
  %v157 = vpop.f32.mrf.mxu0
  %158 = vdwg.mxu0
  %v159 = vadd.f32 %v26, %v145
  %v160 = vadd.f32 %v27, %v148
  %v161 = vadd.f32 %v28, %v153
  %v162 = vadd.f32 %v29, %v156
  %163 = vst [vmem:[#allocation2] sm:$0xff] %v159
  %164 = vst [vmem:[#allocation2 + $0x8] sm:$0xff] %v160
  %165 = vst [vmem:[#allocation2 + $0x10] sm:$0xff] %v161
  %166 = vst [vmem:[#allocation2 + $0x18] sm:$0xff] %v162
  // Predicated region
  $region22: #{finetune_forward.20} parent=0 // pred_check
    %p167 = pneg %p18
  $region23: #{finetune_forward.20} parent=0 // pred_check_branch
    %169 = sbr.rel (%p167) target = $region25
  $region24: #{finetune_forward.20} parent=0 // pred_region
    %v170 = vld [vmem:[#allocation2] sm:$0xff]
    %v171 = vld [vmem:[#allocation2 + $0x8] sm:$0xff]
    %v172 = vld [vmem:[#allocation2 + $0x10] sm:$0xff]
    %v173 = vld [vmem:[#allocation2 + $0x18] sm:$0xff]
    %v174 = vld [vmem:[%s2] sm:$0x1]
    %v176 = vlaneseq
    %v177 = vshrl.u32 %v176, 7
    %v178 = vsub.s32 0, %v177
    %v179 = vrot.slane %v174, %v178
    %v181 = vadd.f32 %v170, %v179
    %v182 = vadd.f32 %v171, %v179
    %v183 = vadd.f32 %v172, %v179
    %v184 = vadd.f32 %v173, %v179
    %v185 = vld [vmem:[%s3] sm:$0xff]
    %v186 = vld [vmem:[%s3 + $0x8] sm:$0xff]
    %v187 = vld [vmem:[%s3 + $0x10] sm:$0xff]
    %v188 = vld [vmem:[%s3 + $0x18] sm:$0xff]
    %v189 = vadd.f32 %v181, %v185
    %v190 = vadd.f32 %v182, %v186
    %v191 = vadd.f32 %v183, %v187
    %v192 = vadd.f32 %v184, %v188
    %193 = vst [vmem:[%s4] sm:$0xff] %v189
    %194 = vst [vmem:[%s4 + $0x8] sm:$0xff] %v190
    %195 = vst [vmem:[%s4 + $0x10] sm:$0xff] %v191
    %196 = vst [vmem:[%s4 + $0x18] sm:$0xff] %v192
  $region25: #{finetune_forward.20} parent=0 // pred_fallthru
    _
  // Predicated region
  $region26: #{finetune_forward.20} parent=0 // pred_check
    _
  $region27: #{finetune_forward.20} parent=0 // pred_check_branch
    %198 = sbr.rel (0) target = $region29
  $region28: #{finetune_forward.20} parent=0 // pred_region
    _
  $region29: #{finetune_forward.20} parent=0 // pred_fallthru
    _
  // Predicated region
  $region30: #{finetune_forward.20} parent=0 // pred_check
    _
  $region31: #{finetune_forward.20} parent=0 // pred_check_branch
    %200 = sbr.rel (0) target = $region33
  $region32: #{finetune_forward.20} parent=0 // pred_region
    _
  $region33: #{finetune_forward.20} parent=0 // pred_fallthru
    _

// kernel: finetune_forward.21
$region0: #{finetune_forward.21}
  #allocation0 [shape = 'u32[]', space=smem, size = 0x4, offset = 0x4, fixed_abs, tag = 'smem constant byte address 0x4 - core index']
  #allocation1 [shape = 'u32[144,128]{1,0:T(1,128)}', space=vmem, size = 0x12000, scoped, tag = 'internal scratch']
  #allocation2 [shape = 'f32[16,1]{1,0:T(8,128)}', space=vmem, size = 0x2000, scoped, tag = 'scratch operand']
  #allocation3 [shape = 'f32[16,1]{1,0:T(8,128)}', space=vmem, size = 0x2000, scoped, tag = 'scratch operand']
  #allocation4 [shape = 'f32[16,1]{1,0:T(8,128)}', space=vmem, size = 0x2000, scoped, tag = 'scratch operand']
  %s0 = inlined_call_operand.vmem [shape: bf16[16,128], index: 0, kind: input, shape index: {}]
  %s1 = inlined_call_operand.vmem [shape: bf16[128,256], index: 1, kind: input, shape index: {}]
  %s2 = inlined_call_operand.vmem [shape: f32[1,256], index: 2, kind: input, shape index: {}]
  %s3 = inlined_call_operand.vmem [shape: s32[16,1], index: 3, kind: input, shape index: {}]
  %s4 = inlined_call_operand.vmem [shape: f32[16,1], index: 4, kind: input, shape index: {}]
  %s5 = inlined_call_operand.vmem [shape: f32[16,1], index: 5, kind: output, shape index: {}]
  %s6 = sld [smem:[#allocation0]]
  $region38: #{finetune_forward.21} parent=0
    _
  %s8 = ssub.s32 1, %s6
  %s9 = scalar_select 0, %s8, %s6
  // Predicated region
  $region2: #{finetune_forward.21} parent=0 // pred_check
    _
  $region3: #{finetune_forward.21} parent=0 // pred_check_branch
    %11 = sbr.rel (0) target = $region5
  $region4: #{finetune_forward.21} parent=0 // pred_region
    _
  $region5: #{finetune_forward.21} parent=0 // pred_fallthru
    _
  // Predicated region
  $region6: #{finetune_forward.21} parent=0 // pred_check
    _
  $region7: #{finetune_forward.21} parent=0 // pred_check_branch
    %13 = sbr.rel (0) target = $region9
  $region8: #{finetune_forward.21} parent=0 // pred_region
    _
  $region9: #{finetune_forward.21} parent=0 // pred_fallthru
    _
  // Predicated region
  $region10: #{finetune_forward.21} parent=0 // pred_check
    _
  $region11: #{finetune_forward.21} parent=0 // pred_check_branch
    %15 = sbr.rel (0) target = $region13
  $region12: #{finetune_forward.21} parent=0 // pred_region
    _
  $region13: #{finetune_forward.21} parent=0 // pred_fallthru
    _
  // Predicated region
  $region14: #{finetune_forward.21} parent=0 // pred_check
    _
  $region15: #{finetune_forward.21} parent=0 // pred_check_branch
    %17 = sbr.rel (0) target = $region17
  $region16: #{finetune_forward.21} parent=0 // pred_region
    _
  $region17: #{finetune_forward.21} parent=0 // pred_fallthru
    _
  // Predicated region
  $region18: #{finetune_forward.21} parent=0 // pred_check
    _
  $region19: #{finetune_forward.21} parent=0 // pred_check_branch
    %19 = sbr.rel (0) target = $region21
  $region20: #{finetune_forward.21} parent=0 // pred_region
    _
  $region21: #{finetune_forward.21} parent=0 // pred_fallthru
    _
  %p21 = scmp.eq.s32.totalorder 0, 0
  // Predicated region
  $region22: #{finetune_forward.21} parent=0 // pred_check
    %p22 = pneg %p21
  $region23: #{finetune_forward.21} parent=0 // pred_check_branch
    %24 = sbr.rel (%p22) target = $region25
  $region24: #{finetune_forward.21} parent=0 // pred_region
    %vm25 = vcmask 7168
    %26 = vst.msk [vmem:[#allocation2] sm:$0xff] %vm25, -inf
    %27 = vst.msk [vmem:[#allocation2 + $0x8] sm:$0xff] %vm25, -inf
    %28 = vst.msk [vmem:[#allocation3] sm:$0xff] %vm25, 0.0
    %29 = vst.msk [vmem:[#allocation3 + $0x8] sm:$0xff] %vm25, 0.0
    %30 = vst.msk [vmem:[#allocation4] sm:$0xff] %vm25, 0.0
    %31 = vst.msk [vmem:[#allocation4 + $0x8] sm:$0xff] %vm25, 0.0
  $region25: #{finetune_forward.21} parent=0 // pred_fallthru
    _
  %v32 = vld [vmem:[%s0] sm:$0xf]
  %v33 = vld [vmem:[%s0 + $0x4] sm:$0xf]
  %v34 = vld [vmem:[%s1] sm:$0xff]
  %v35 = vld [vmem:[%s1 + $0x8] sm:$0xff]
  %v36 = vld [vmem:[%s1 + $0x10] sm:$0xff]
  %v37 = vld [vmem:[%s1 + $0x18] sm:$0xff]
  %v38 = vld [vmem:[%s1 + $0x20] sm:$0xff]
  %v39 = vld [vmem:[%s1 + $0x28] sm:$0xff]
  %v40 = vld [vmem:[%s1 + $0x30] sm:$0xff]
  %v41 = vld [vmem:[%s1 + $0x38] sm:$0xff]
  %v42 = vld [vmem:[%s1 + $0x40] sm:$0xff]
  %v43 = vld [vmem:[%s1 + $0x48] sm:$0xff]
  %v44 = vld [vmem:[%s1 + $0x50] sm:$0xff]
  %v45 = vld [vmem:[%s1 + $0x58] sm:$0xff]
  %v46 = vld [vmem:[%s1 + $0x60] sm:$0xff]
  %v47 = vld [vmem:[%s1 + $0x68] sm:$0xff]
  %v48 = vld [vmem:[%s1 + $0x70] sm:$0xff]
  %v49 = vld [vmem:[%s1 + $0x78] sm:$0xff]
  %v50 = vld [vmem:[%s2] sm:$0x3]
  %v52 = vlaneseq
  %v53 = vshrl.u32 %v52, 7
  %v54 = vsub.s32 0, %v53
  %v55 = vrot.slane %v50, %v54
  %v56 = vlaneseq
  %v57 = vshrl.u32 %v56, 7
  %v58 = vsub.s32 1, %v57
  %v59 = vrot.slane %v50, %v58
  %v64 = vunpack.c.l.b16 %v32
  %v65 = vunpack.c.l.b16 %v33
  %v66 = vpack.c.b16 %v65, %v64
  %v84 = vunpack.c.l.b16 %v34
  %v85 = vunpack.c.h.b16 %v34
  %v86 = vunpack.c.l.b16 %v35
  %v87 = vunpack.c.h.b16 %v35
  %v88 = vunpack.c.l.b16 %v36
  %v89 = vunpack.c.h.b16 %v36
  %v90 = vunpack.c.l.b16 %v37
  %v91 = vunpack.c.h.b16 %v37
  %v92 = vunpack.c.l.b16 %v38
  %v93 = vunpack.c.h.b16 %v38
  %v94 = vunpack.c.l.b16 %v39
  %v95 = vunpack.c.h.b16 %v39
  %v96 = vunpack.c.l.b16 %v40
  %v97 = vunpack.c.h.b16 %v40
  %v98 = vunpack.c.l.b16 %v41
  %v99 = vunpack.c.h.b16 %v41
  %v100 = vunpack.c.l.b16 %v42
  %v101 = vunpack.c.h.b16 %v42
  %v102 = vunpack.c.l.b16 %v43
  %v103 = vunpack.c.h.b16 %v43
  %v104 = vunpack.c.l.b16 %v44
  %v105 = vunpack.c.h.b16 %v44
  %v106 = vunpack.c.l.b16 %v45
  %v107 = vunpack.c.h.b16 %v45
  %v108 = vunpack.c.l.b16 %v46
  %v109 = vunpack.c.h.b16 %v46
  %v110 = vunpack.c.l.b16 %v47
  %v111 = vunpack.c.h.b16 %v47
  %v112 = vunpack.c.l.b16 %v48
  %v113 = vunpack.c.h.b16 %v48
  %v114 = vunpack.c.l.b16 %v49
  %v115 = vunpack.c.h.b16 %v49
  %v116 = vpack.c.b16 %v86, %v84
  %v117 = vpack.c.b16 %v87, %v85
  %v118 = vpack.c.b16 %v90, %v88
  %v119 = vpack.c.b16 %v91, %v89
  %v120 = vpack.c.b16 %v94, %v92
  %v121 = vpack.c.b16 %v95, %v93
  %v122 = vpack.c.b16 %v98, %v96
  %v123 = vpack.c.b16 %v99, %v97
  %v124 = vpack.c.b16 %v102, %v100
  %v125 = vpack.c.b16 %v103, %v101
  %v126 = vpack.c.b16 %v106, %v104
  %v127 = vpack.c.b16 %v107, %v105
  %v128 = vpack.c.b16 %v110, %v108
  %v129 = vpack.c.b16 %v111, %v109
  %v130 = vpack.c.b16 %v114, %v112
  %v131 = vpack.c.b16 %v115, %v113
  %148 = vmatprep.subr.bf16.mxu0 %v131
  %149 = vmatpush1.bf16.msra.mxu0 %v130
  %150 = vmatprep.subr.bf16.mxu0 %v129
  %151 = vmatpush1.bf16.msra.mxu0 %v128
  %152 = vmatprep.subr.bf16.mxu0 %v127
  %153 = vmatpush1.bf16.msra.mxu0 %v126
  %154 = vmatprep.subr.bf16.mxu0 %v125
  %155 = vmatpush1.bf16.msra.mxu0 %v124
  %156 = vmatprep.subr.bf16.mxu0 %v123
  %157 = vmatpush1.bf16.msra.mxu0 %v122
  %158 = vmatprep.subr.bf16.mxu0 %v121
  %159 = vmatpush1.bf16.msra.mxu0 %v120
  %160 = vmatprep.subr.bf16.mxu0 %v119
  %161 = vmatpush1.bf16.msra.mxu0 %v118
  %162 = vmatprep.subr.bf16.mxu0 %v117
  %163 = vmatpush1.bf16.msra.mxu0 %v116
  %164 = vmatprep.subr.bf16.mxu0 0
  %165 = vmatpush2.bf16.msra.mxu0 0
  %166 = vmatprep.subr.bf16.mxu0 0
  %167 = vmatpush2.bf16.msra.mxu0 0
  %168 = vmatprep.subr.bf16.mxu0 0
  %169 = vmatpush2.bf16.msra.mxu0 0
  %170 = vmatprep.subr.bf16.mxu0 0
  %171 = vmatpush2.bf16.msra.mxu0 0
  %172 = vmatprep.subr.bf16.mxu0 0
  %173 = vmatpush2.bf16.msra.mxu0 0
  %174 = vmatprep.subr.bf16.mxu0 0
  %175 = vmatpush2.bf16.msra.mxu0 0
  %176 = vmatprep.subr.bf16.mxu0 0
  %177 = vmatpush2.bf16.msra.mxu0 0
  %178 = vmatprep.subr.bf16.mxu0 0
  %179 = vmatpush2.bf16.msra.mxu0 0
  %180 = vmatprep.mubr.bf16.mxu0 0
  %181 = vmatmul.mubr.bf16.gmra.mxu0 %v66
  %v182 = vpop.f32.mrf.mxu0
  %v183 = vadd.f32 %v55, %v182
  %v184 = vpop.f32.mrf.mxu0
  %v185 = vadd.f32 %v59, %v184
  %v186 = vpop.f32.mrf.mxu0
  %v187 = vadd.f32 %v55, %v186
  %v188 = vpop.f32.mrf.mxu0
  %v189 = vadd.f32 %v59, %v188
  %190 = vdwg.mxu0
  %v191 = vld [vmem:[#allocation2] sm:$0xff]
  %v192 = vld [vmem:[#allocation2 + $0x8] sm:$0xff]
  %v193 = vmax.f32 %v183, %v185
  %194 = vmax.xlane.f32.xlu0 %v193
  %v195 = vpop.xlane.xlu0 %194
  %v196 = vmax.f32 %v187, %v189
  %197 = vmax.xlane.f32.xlu0 %v196
  %v198 = vpop.xlane.xlu0 %197
  %v199 = vmax.f32 %v191, %v195
  %v200 = vmax.f32 %v192, %v198
  %v201 = vld [vmem:[#allocation3] sm:$0xff]
  %v202 = vld [vmem:[#allocation3 + $0x8] sm:$0xff]
  %v203 = vsub.f32 %v191, %v199
  %v204 = vsub.f32 %v192, %v200
  %v205 = vmul.f32 %v203, 1.442695
  %v206 = vpow.pop %v205
  %v207 = vmul.f32 %v204, 1.442695
  %v208 = vpow.pop %v207
  %v209 = vmul.f32 %v201, %v206
  %v210 = vmul.f32 %v202, %v208
  %212 = vset.pattern.permute.xlu0 0
  %213 = vperm.xlu0 %212, %v199
  %v214 = vpop.permute.xlu0 %213
  %217 = vset.pattern.permute.xlu0 0
  %218 = vperm.xlu0 %217, %v200
  %v219 = vpop.permute.xlu0 %218
  %v221 = vsub.f32 %v183, %v214
  %v222 = vsub.f32 %v185, %v214
  %v223 = vsub.f32 %v187, %v219
  %v224 = vsub.f32 %v189, %v219
  %v225 = vmul.f32 %v221, 1.442695
  %v226 = vpow.pop %v225
  %v227 = vmul.f32 %v222, 1.442695
  %v228 = vpow.pop %v227
  %v229 = vmul.f32 %v223, 1.442695
  %v230 = vpow.pop %v229
  %v231 = vmul.f32 %v224, 1.442695
  %v232 = vpow.pop %v231
  %v233 = vadd.f32 %v226, %v228
  %234 = vadd.xlane.f32.xlu0 %v233
  %v235 = vpop.xlane.xlu0 %234
  %v236 = vadd.f32 %v230, %v232
  %237 = vadd.xlane.f32.xlu0 %v236
  %v238 = vpop.xlane.xlu0 %237
  %v239 = vadd.f32 %v209, %v235
  %v240 = vadd.f32 %v210, %v238
  %vm241 = vcmask 7168
  %242 = vst.msk [vmem:[#allocation3] sm:$0xff] %vm241, %v239
  %243 = vst.msk [vmem:[#allocation3 + $0x8] sm:$0xff] %vm241, %v240
  %244 = vst.msk [vmem:[#allocation2] sm:$0xff] %vm241, %v199
  %245 = vst.msk [vmem:[#allocation2 + $0x8] sm:$0xff] %vm241, %v200
  %v246 = vlaneseq
  %v247 = vand.u32 %v246, 127
  %v248 = vadd.s32 %v247, 128
  %s249 = smul.u32 0, 256
  %v250 = vstv %s249
  %v251 = vadd.s32 %v247, %v250
  %v252 = vadd.s32 %v248, %v250
  %v253 = vld [vmem:[#allocation4] sm:$0xff]
  %v254 = vld [vmem:[#allocation4 + $0x8] sm:$0xff]
  %v255 = vld [vmem:[%s3] sm:$0xff]
  %v256 = vld [vmem:[%s3 + $0x8] sm:$0xff]
  %257 = vset.pattern.permute.xlu0 0
  %258 = vperm.xlu0 %257, %v255
  %v259 = vpop.permute.xlu0 %258
  %260 = vset.pattern.permute.xlu0 0
  %261 = vperm.xlu0 %260, %v256
  %v262 = vpop.permute.xlu0 %261
  %vm263 = vcmp.eq.s32.totalorder %v251, %v259
  %vm264 = vcmp.eq.s32.totalorder %v252, %v259
  %vm265 = vcmp.eq.s32.totalorder %v251, %v262
  %vm266 = vcmp.eq.s32.totalorder %v252, %v262
  %v267 = vsel %vm263, %v183, 0.0
  %v268 = vsel %vm264, %v185, 0.0
  %v269 = vsel %vm265, %v187, 0.0
  %v270 = vsel %vm266, %v189, 0.0
  %v271 = vadd.f32 %v267, %v268
  %272 = vadd.xlane.f32.xlu0 %v271
  %v273 = vpop.xlane.xlu0 %272
  %v274 = vadd.f32 %v269, %v270
  %275 = vadd.xlane.f32.xlu0 %v274
  %v276 = vpop.xlane.xlu0 %275
  %v277 = vadd.f32 %v253, %v273
  %v278 = vadd.f32 %v254, %v276
  %279 = vst.msk [vmem:[#allocation4] sm:$0xff] %vm241, %v277
  %280 = vst.msk [vmem:[#allocation4 + $0x8] sm:$0xff] %vm241, %v278
  // Predicated region
  $region26: #{finetune_forward.21} parent=0 // pred_check
    %p281 = pneg %p21
  $region27: #{finetune_forward.21} parent=0 // pred_check_branch
    %283 = sbr.rel (%p281) target = $region29
  $region28: #{finetune_forward.21} parent=0 // pred_region
    %v284 = vld [vmem:[#allocation2] sm:$0xff]
    %v285 = vld [vmem:[#allocation2 + $0x8] sm:$0xff]
    %v286 = vld [vmem:[#allocation3] sm:$0xff]
    %v287 = vld [vmem:[#allocation3 + $0x8] sm:$0xff]
    %v288 = vlog2.pop %v286
    %v289 = vmul.f32 %v288, 0.6931472
    %v290 = vlog2.pop %v287
    %v291 = vmul.f32 %v290, 0.6931472
    %v292 = vadd.f32 %v284, %v289
    %v293 = vadd.f32 %v285, %v291
    %v294 = vld [vmem:[#allocation4] sm:$0xff]
    %v295 = vld [vmem:[#allocation4 + $0x8] sm:$0xff]
    %v296 = vsub.f32 %v292, %v294
    %v297 = vsub.f32 %v293, %v295
    %v298 = vld [vmem:[%s4] sm:$0xff]
    %v299 = vld [vmem:[%s4 + $0x8] sm:$0xff]
    %v300 = vmul.f32 %v296, %v298
    %v301 = vmul.f32 %v297, %v299
    %302 = vst.msk [vmem:[%s5] sm:$0xff] %vm241, %v300
    %303 = vst.msk [vmem:[%s5 + $0x8] sm:$0xff] %vm241, %v301
  $region29: #{finetune_forward.21} parent=0 // pred_fallthru
    _
  // Predicated region
  $region30: #{finetune_forward.21} parent=0 // pred_check
    _
  $region31: #{finetune_forward.21} parent=0 // pred_check_branch
    %305 = sbr.rel (0) target = $region33
  $region32: #{finetune_forward.21} parent=0 // pred_region
    _
  $region33: #{finetune_forward.21} parent=0 // pred_fallthru
    _
  // Predicated region
  $region34: #{finetune_forward.21} parent=0 // pred_check
    _
  $region35: #{finetune_forward.21} parent=0 // pred_check_branch
    %307 = sbr.rel (0) target = $region37
  $region36: #{finetune_forward.21} parent=0 // pred_region
    _
  $region37: #{finetune_forward.21} parent=0 // pred_fallthru
    _

</llo_original>
